<compile_context>
chip_gen: v7x
topology: tpu7x:2x2x1
jax: 0.10.0
libtpu: 0.0.40
codegen_flags: <defaults>
</compile_context>

<pallas_src>
import functools

import jax
import jax.numpy as jnp
from jax.experimental import pallas as pl
from jax.experimental.pallas import tpu as pltpu

EPS = 1e-5  # nn.LayerNorm default eps


def _layernorm(x, gamma, beta):
    # PyTorch LayerNorm: biased variance over the last dim (f32 math).
    mu = jnp.mean(x, axis=-1, keepdims=True)
    var = jnp.mean((x - mu) ** 2, axis=-1, keepdims=True)
    return (x - mu) * jax.lax.rsqrt(var + EPS) * gamma + beta


def _mha_f_branch_kernel(xq_ref, xkv_ref, wq_ref, wkv_ref, wt_ref,
                         cpack_ref, hpack_ref, a_ref, out_ref,
                         q_s, m_s, l_s, acc_s, k_cache, v_cache,
                         *, hidden, flat_out):
    # cpack rows: 0=g1, 1=be1, 2=g3, 3=be3, 4=bt      (width C, f32)
    # hpack rows: 0=bq, 1=bk, 2=bv, 3=g2, 4=be2       (width H, f32)
    H = hidden
    iq = pl.program_id(1)
    ik = pl.program_id(2)
    nfk = pl.num_programs(2)

    bb, tfq, C = xq_ref.shape
    _, tfk, _ = xkv_ref.shape
    scale = 1.0 / float(H) ** 0.5
    cdtype = k_cache.dtype                      # MXU operand dtype (bf16 / f32)

    g1 = cpack_ref[0:1, :]
    be1 = cpack_ref[1:2, :]

    # ---- fill K/V cache for kv-tile `ik`: only on the first q tile ----------
    @pl.when(iq == 0)
    def _fill_kv():
        xkv = xkv_ref[...].astype(jnp.float32).reshape(bb * tfk, C)
        xkvn = _layernorm(xkv, g1, be1).astype(cdtype)
        kv = jnp.dot(xkvn, wkv_ref[...],
                     preferred_element_type=jnp.float32)          # (bb*tfk, 2H)
        k = kv[:, :H] + hpack_ref[1:2, :]                          # + bk
        v = kv[:, H:] + hpack_ref[2:3, :]                          # + bv
        k_cache[ik] = k.reshape(bb, tfk, H).astype(cdtype)
        v_cache[ik] = v.reshape(bb, tfk, H).astype(cdtype)

    # ---- init per (batch-block, q-tile): project q once, reset softmax ------
    @pl.when(ik == 0)
    def _init_q():
        xq = xq_ref[...].astype(jnp.float32).reshape(bb * tfq, C)
        xqn = _layernorm(xq, g1, be1).astype(cdtype)
        q = jnp.dot(xqn, wq_ref[...], preferred_element_type=jnp.float32)
        q = (q + hpack_ref[0:1, :]) * scale        # pre-scale by 1/sqrt(H)
        q_s[...] = q.reshape(bb, tfq, H).astype(cdtype)
        m_s[...] = jnp.full(m_s.shape, -jnp.inf, m_s.dtype)
        l_s[...] = jnp.zeros(l_s.shape, l_s.dtype)
        acc_s[...] = jnp.zeros(acc_s.shape, acc_s.dtype)

    # ---- flash-style online softmax over the kv (frequency) axis ------------
    k = k_cache[ik]                                               # (bb, tfk, H)
    v = v_cache[ik]
    s = jax.lax.dot_general(
        q_s[...], k,
        dimension_numbers=(((2,), (2,)), ((0,), (0,))),
        preferred_element_type=jnp.float32)                       # (bb, tfq, tfk)

    m_prev = m_s[...]
    m_new = jnp.maximum(m_prev, jnp.max(s, axis=-1, keepdims=True))
    alpha = jnp.exp(m_prev - m_new)
    p = jnp.exp(s - m_new)
    l_s[...] = alpha * l_s[...] + jnp.sum(p, axis=-1, keepdims=True)
    acc_s[...] = alpha * acc_s[...] + jax.lax.dot_general(
        p.astype(cdtype), v,
        dimension_numbers=(((2,), (1,)), ((0,), (0,))),
        preferred_element_type=jnp.float32)
    m_s[...] = m_new

    # ---- finalize: LN2 -> transform_linear -> LN3 -> PReLU -> residual ------
    @pl.when(ik == nfk - 1)
    def _finalize():
        # approx reciprocal: per-row scale error absorbed by LayerNorm2 below.
        y = acc_s[...] * pl.reciprocal(l_s[...], approx=True)     # (bb, tfq, H)
        y = _layernorm(y.reshape(bb * tfq, H),
                       hpack_ref[3:4, :], hpack_ref[4:5, :])
        o = jnp.dot(y.astype(cdtype), wt_ref[...],
                    preferred_element_type=jnp.float32)
        o = o + cpack_ref[4:5, :]                                  # + bt
        o = _layernorm(o, cpack_ref[2:3, :], cpack_ref[3:4, :])
        a = a_ref[0]                                               # PReLU slope
        o = jnp.where(o >= 0.0, o, a * o)
        # TODO(synk): nn.Dropout(p=0.1) treated as identity (inference mode).
        o = o.reshape(bb, tfq, C) + xq_ref[...].astype(jnp.float32)  # residual
        if flat_out:
            out_ref[...] = o.reshape(bb, tfq * C).astype(out_ref.dtype)
        else:
            out_ref[...] = o.astype(out_ref.dtype)


def _pick_aligned_tile(total, target):
    """Largest divisor of `total` <= target, preferring MXU-width multiples
    (256 for v6e/v7x, also 128-aligned for v5e), then 128, then sublane (8)."""
    if total <= target:
        return total
    for mult in (256, 128, 8, 1):
        t = (min(total, target) // mult) * mult
        while t >= mult:
            if total % t == 0:
                return t
            t -= mult
    return total


def _pick_divisor(total, target):
    t = max(1, min(total, target))
    while total % t:
        t -= 1
    return t


def multihead_attention_f_branch_real(inputs, params, *,
                                      block_b=None, block_fq=None,
                                      block_fk=None,
                                      compute_dtype=jnp.bfloat16):
    """inputs: (N, C, F, T) float32 -> (N, C, F, T) float32."""
    N, C, F, T = inputs.shape
    H = params["wq"].shape[1]
    NT = N * T

    # (N, C, F, T) -> (N*T, F, C): frequency attention per (batch, frame).
    # TODO(synk): these host-side transposes could be folded into the kernel via
    # a 4-D BlockSpec + in-kernel XLU transpose; kept outside for lowering
    # robustness.
    x = jnp.transpose(inputs, (0, 3, 2, 1)).reshape(NT, F, C)

    # ---- tile selection: MXU-width aligned, VMEM-budget aware ----
    tfq = block_fq if block_fq is not None else _pick_aligned_tile(F, 256)
    tfk = block_fk if block_fk is not None else _pick_aligned_tile(F, 256)
    if block_b is not None:
        bb = block_b
    else:
        # Fold several (n, t) rows per grid step; stop growing bb near 8 and
        # prefer big attention tiles, keep >= 2 steps on the batch axis.
        bb_target = min(NT // 2 if NT > 1 else NT, max(8, 2048 // max(tfq, 1)))
        bb = _pick_divisor(NT, max(1, bb_target))

    cbytes = jnp.dtype(compute_dtype).itemsize
    try:
        vmem_cap = pltpu.get_tpu_info().vmem_capacity_bytes
    except Exception:  # conservative fallback (v7x-sized)
        vmem_cap = 64 * 1024 * 1024
    # ~40 MiB on v7x (64 MiB VMEM), ~100 MiB on v5e/v6e (128 MiB VMEM).
    vmem_limit = max(32 * 1024 * 1024,
                     min(vmem_cap - 24 * 1024 * 1024, 100 * 1024 * 1024))
    budget = int(vmem_limit * 0.7)

    def est(bb_, tq_, tk_):
        nfk_ = F // tk_
        blocks = 2 * 4 * bb_ * (2 * tq_ * C + tk_ * C)          # xq/out/xkv, x2 buf
        consts = 2 * (cbytes * (4 * C * H + H * C) + 4 * 5 * (C + H))
        scratch = (cbytes * (bb_ * tq_ * H + 2 * nfk_ * bb_ * tk_ * H)
                   + 4 * bb_ * tq_ * (H + 2))
        temps = 4 * bb_ * (3 * tq_ * tk_ + 2 * max(tq_, tk_) * max(C, 2 * H))
        return blocks + consts + scratch + temps

    if block_b is None:
        while bb > 1 and est(bb, tfq, tfk) > budget:
            bb = _pick_divisor(NT, bb // 2)
    if block_fk is None:
        while tfk > 128 and tfk % 2 == 0 and est(bb, tfq, tfk) > budget:
            tfk //= 2
    if block_fq is None:
        while tfq > 128 and tfq % 2 == 0 and est(bb, tfq, tfk) > budget:
            tfq //= 2

    assert NT % bb == 0 and F % tfq == 0 and F % tfk == 0, (NT, F, bb, tfq, tfk)
    nfk = F // tfk

    # Lane-dense output: when C < 128, store (bb, tfq*C) slabs (unmasked vst).
    flat_out = (C % 128 != 0) and ((tfq * C) % 128 == 0) \
        and (bb % 8 == 0 or bb == NT)

    # ---- params: cast / concat / pack ONCE in the wrapper ----
    wq_c = params["wq"].astype(compute_dtype)                       # (C, H)
    wkv_c = jnp.concatenate([params["wk"], params["wv"]],
                            axis=1).astype(compute_dtype)           # (C, 2H)
    wt_c = params["wt"].astype(compute_dtype)                       # (H, C)
    cpack = jnp.concatenate([params["g1"], params["be1"], params["g3"],
                             params["be3"], params["bt"]],
                            axis=0).astype(jnp.float32)             # (5, C)
    hpack = jnp.concatenate([params["bq"], params["bk"], params["bv"],
                             params["g2"], params["be2"]],
                            axis=0).astype(jnp.float32)             # (5, H)
    a_prelu = params["a_prelu"].reshape(1).astype(jnp.float32)      # SMEM scalar

    const = lambda arr: pl.BlockSpec(arr.shape, lambda b, iq, ik: (0,) * arr.ndim)

    if flat_out:
        out_shape = jax.ShapeDtypeStruct((NT, F * C), inputs.dtype)
        out_spec = pl.BlockSpec((bb, tfq * C), lambda b, iq, ik: (b, iq))
    else:
        out_shape = jax.ShapeDtypeStruct((NT, F, C), inputs.dtype)
        out_spec = pl.BlockSpec((bb, tfq, C), lambda b, iq, ik: (b, iq, 0))

    grid = (NT // bb, F // tfq, nfk)

    cost = pl.CostEstimate(
        flops=int(NT * (2 * F * C * 3 * H + 4 * F * F * H + 2 * F * H * C)),
        transcendentals=int(NT * (F * F + 3 * F)),
        bytes_accessed=int(4 * 3 * NT * F * C + 2 * 4 * C * H),
    )

    out_flat = pl.pallas_call(
        functools.partial(_mha_f_branch_kernel, hidden=H, flat_out=flat_out),
        out_shape=out_shape,
        grid_spec=pltpu.PrefetchScalarGridSpec(
            num_scalar_prefetch=0,
            grid=grid,
            in_specs=[
                # q rows of x
                pl.BlockSpec((bb, tfq, C), lambda b, iq, ik: (b, iq, 0)),
                # kv rows of x: only consumed while filling the K/V cache
                # (iq == 0); for iq > 0 pin block 0 so no redundant HBM DMA.
                pl.BlockSpec((bb, tfk, C),
                             lambda b, iq, ik: (b, jnp.where(iq == 0, ik, 0), 0)),
                const(wq_c), const(wkv_c), const(wt_c),
                const(cpack), const(hpack),
                pl.BlockSpec(memory_space=pltpu.MemorySpace.SMEM),   # PReLU slope
            ],
            out_specs=out_spec,
            scratch_shapes=[
                pltpu.VMEM((bb, tfq, H), compute_dtype),       # cached, scaled q
                pltpu.VMEM((bb, tfq, 1), jnp.float32),         # running max
                pltpu.VMEM((bb, tfq, 1), jnp.float32),         # running denom
                pltpu.VMEM((bb, tfq, H), jnp.float32),         # un-normalized out
                pltpu.VMEM((nfk, bb, tfk, H), compute_dtype),  # K cache (all F)
                pltpu.VMEM((nfk, bb, tfk, H), compute_dtype),  # V cache (all F)
            ],
        ),
        compiler_params=pltpu.CompilerParams(
            # iq/ik must stay "arbitrary": the K/V cache filled at iq == 0 is
            # reused by later q tiles on the same core; only batch is parallel.
            dimension_semantics=("parallel", "arbitrary", "arbitrary"),
            vmem_limit_bytes=int(vmem_limit),
        ),
        cost_estimate=cost,
    )(x, x, wq_c, wkv_c, wt_c, cpack, hpack, a_prelu)

    out = out_flat.reshape(NT, F, C) if flat_out else out_flat
    # (N*T, F, C) -> (N, C, F, T)
    return out.reshape(N, T, F, C).transpose(0, 3, 2, 1)


def _reference(inputs, p):
    """Pure-JAX reference mirroring the PyTorch forward (eval mode, n_heads=1)."""
    N, C, F, T = inputs.shape
    H = p["wq"].shape[1]

    def ln(z, g, b):
        mu = z.mean(-1, keepdims=True)
        var = ((z - mu) ** 2).mean(-1, keepdims=True)
        return (z - mu) / jnp.sqrt(var + EPS) * g + b

    x = jnp.transpose(inputs, (0, 3, 2, 1)).reshape(N * T, F, C)
    xn = ln(x, p["g1"][0], p["be1"][0])
    q = xn @ p["wq"] + p["bq"][0]
    k = xn @ p["wk"] + p["bk"][0]
    v = xn @ p["wv"] + p["bv"][0]
    energy = jnp.einsum("btf,byf->bty", q, k) / (H ** 0.5)
    att = jax.nn.softmax(energy, axis=-1)
    y = jnp.einsum("bty,byf->btf", att, v)
    y = ln(y, p["g2"][0], p["be2"][0])
    o = y @ p["wt"] + p["bt"][0]
    o = ln(o, p["g3"][0], p["be3"][0])
    a = p["a_prelu"][0, 0]
    o = jnp.where(o >= 0, o, a * o)       # PReLU
    o = o + x                             # dropout(eval) + residual
    return o.reshape(N, T, F, C).transpose(0, 3, 2, 1)


def init_params(key, in_channel, hidden_channel):
    ks = jax.random.split(key, 8)
    si = 1.0 / (in_channel ** 0.5)
    sh = 1.0 / (hidden_channel ** 0.5)
    u = jax.random.uniform
    return {
        # Real_Linear weights stored as (in, out); y = x @ W + b.
        "wq": u(ks[0], (in_channel, hidden_channel), jnp.float32, -si, si),
        "bq": u(ks[1], (1, hidden_channel), jnp.float32, -si, si),
        "wk": u(ks[2], (in_channel, hidden_channel), jnp.float32, -si, si),
        "bk": u(ks[3], (1, hidden_channel), jnp.float32, -si, si),
        "wv": u(ks[4], (in_channel, hidden_channel), jnp.float32, -si, si),
        "bv": u(ks[5], (1, hidden_channel), jnp.float32, -si, si),
        "wt": u(ks[6], (hidden_channel, in_channel), jnp.float32, -sh, sh),
        "bt": u(ks[7], (1, in_channel), jnp.float32, -sh, sh),
        # LayerNorm affine params (PyTorch default init: ones / zeros).
        "g1": jnp.ones((1, in_channel), jnp.float32),
        "be1": jnp.zeros((1, in_channel), jnp.float32),
        "g2": jnp.ones((1, hidden_channel), jnp.float32),
        "be2": jnp.zeros((1, hidden_channel), jnp.float32),
        "g3": jnp.ones((1, in_channel), jnp.float32),
        "be3": jnp.zeros((1, in_channel), jnp.float32),
        # PReLU (single parameter, PyTorch default init 0.25).
        "a_prelu": jnp.full((1, 1), 0.25, jnp.float32),
    }


if __name__ == "__main__":
    # inputs: (N, C, F, T) = (batch, in_channel, freq, time)
    N, C, F, T, H = 2, 16, 16, 8, 32

    key = jax.random.PRNGKey(0)
    kx, kp = jax.random.split(key)
    inputs = jax.random.normal(kx, (N, C, F, T), jnp.float32)
    params = init_params(kp, C, H)

    ref = _reference(inputs, params)

    # block_fq / block_fk < F so the online-softmax (multi KV-tile) path, the
    # cross-q-tile K/V cache reuse, the multi-batch-block grid and the
    # lane-dense (tfq*C == 128) output store are all exercised.

    # 1) strict numerical check with f32 MXU operands
    out_f32 = multihead_attention_f_branch_real(
        inputs, params, block_fq=8, block_fk=8, compute_dtype=jnp.float32)
    out_f32 = jax.block_until_ready(out_f32)
    assert out_f32.shape == (N, C, F, T)
    assert jnp.allclose(out_f32, ref, atol=2e-4, rtol=2e-4), (
        float(jnp.max(jnp.abs(out_f32 - ref))))

    # 2) default performance path: bf16 MXU operands, f32 accumulation/softmax
    out_bf16 = multihead_attention_f_branch_real(
        inputs, params, block_fq=8, block_fk=8)
    out_bf16 = jax.block_until_ready(out_bf16)
    assert out_bf16.shape == (N, C, F, T)
    assert jnp.allclose(out_bf16, ref, atol=1e-1, rtol=0.0), (
        float(jnp.max(jnp.abs(out_bf16 - ref))))

    print("KERNEL_OK")
</pallas_src>

<mosaic_0001>
module attributes {stable_mosaic.version = 11 : i64} {
  func.func @_mha_f_branch_kernel(%arg0: i32, %arg1: i32, %arg2: i32, %arg3: memref<8x8x16xf32, #tpu.memory_space<vmem>>, %arg4: memref<8x8x16xf32, #tpu.memory_space<vmem>>, %arg5: memref<16x32xf32, #tpu.memory_space<vmem>>, %arg6: memref<16x64xf32, #tpu.memory_space<vmem>>, %arg7: memref<32x16xf32, #tpu.memory_space<vmem>>, %arg8: memref<5x16xf32, #tpu.memory_space<vmem>>, %arg9: memref<5x32xf32, #tpu.memory_space<vmem>>, %arg10: memref<1xf32, #tpu.memory_space<smem>>, %arg11: memref<8x128xf32, #tpu.memory_space<vmem>>, %arg12: memref<8x8x32xf32, #tpu.memory_space<vmem>>, %arg13: memref<8x8x1xf32, #tpu.memory_space<vmem>>, %arg14: memref<8x8x1xf32, #tpu.memory_space<vmem>>, %arg15: memref<8x8x32xf32, #tpu.memory_space<vmem>>, %arg16: memref<2x8x8x32xf32, #tpu.memory_space<vmem>>, %arg17: memref<2x8x8x32xf32, #tpu.memory_space<vmem>>) attributes {dimension_semantics = [#tpu.dimension_semantics<parallel>, #tpu.dimension_semantics<arbitrary>, #tpu.dimension_semantics<arbitrary>], iteration_bounds = array<i64: 2, 2, 2>, scalar_prefetch = 0 : i64, scratch_operands = 6 : i64, tpu.core_type = #tpu.core_type<tc>, window_params = [{transform_indices = @transform_0, window_bounds = array<i64: 8, 8, 16>}, {transform_indices = @transform_1, window_bounds = array<i64: 8, 8, 16>}, {pipeline_mode = #tpu.pipeline_mode<synchronous>, transform_indices = @transform_2, window_bounds = array<i64: 16, 32>}, {pipeline_mode = #tpu.pipeline_mode<synchronous>, transform_indices = @transform_3, window_bounds = array<i64: 16, 64>}, {pipeline_mode = #tpu.pipeline_mode<synchronous>, transform_indices = @transform_4, window_bounds = array<i64: 32, 16>}, {pipeline_mode = #tpu.pipeline_mode<synchronous>, transform_indices = @transform_5, window_bounds = array<i64: 5, 16>}, {pipeline_mode = #tpu.pipeline_mode<synchronous>, transform_indices = @transform_6, window_bounds = array<i64: 5, 32>}, {transform_indices = @transform_7, window_bounds = array<i64: 1>}, {transform_indices = @transform_8, window_bounds = array<i64: 8, 128>}]} {
    %c0 = arith.constant 0 : index
    %c0_0 = arith.constant 0 : index
    %0 = vector.load %arg8[%c0, %c0_0] : memref<5x16xf32, #tpu.memory_space<vmem>>, vector<1x16xf32>
    %c1 = arith.constant 1 : index
    %c0_1 = arith.constant 0 : index
    %1 = vector.load %arg8[%c1, %c0_1] : memref<5x16xf32, #tpu.memory_space<vmem>>, vector<1x16xf32>
    %c0_i32 = arith.constant 0 : i32
    %2 = arith.cmpi eq, %arg1, %c0_i32 : i32
    %3 = arith.extui %2 : i1 to i32
    %c0_i32_2 = arith.constant 0 : i32
    %4 = arith.cmpi ne, %3, %c0_i32_2 : i32
    scf.if %4 {
      %c0_36 = arith.constant 0 : index
      %c0_37 = arith.constant 0 : index
      %c0_38 = arith.constant 0 : index
      %41 = vector.load %arg4[%c0_36, %c0_37, %c0_38] : memref<8x8x16xf32, #tpu.memory_space<vmem>>, vector<8x8x16xf32>
      %42 = vector.shape_cast %41 : vector<8x8x16xf32> to vector<64x16xf32>
      %cst_39 = arith.constant dense<0.000000e+00> : vector<64xf32>
      %43 = vector.multi_reduction <add>, %42, %cst_39 [1] : vector<64x16xf32> to vector<64xf32>
      %44 = vector.shape_cast %43 : vector<64xf32> to vector<64x1xf32>
      %cst_40 = arith.constant 1.600000e+01 : f32
      %45 = vector.broadcast %cst_40 : f32 to vector<64x1xf32>
      %46 = arith.divf %44, %45 : vector<64x1xf32>
      %47 = vector.broadcast %46 : vector<64x1xf32> to vector<64x16xf32>
      %48 = arith.subf %42, %47 : vector<64x16xf32>
      %49 = arith.mulf %48, %48 : vector<64x16xf32>
      %cst_41 = arith.constant dense<0.000000e+00> : vector<64xf32>
      %50 = vector.multi_reduction <add>, %49, %cst_41 [1] : vector<64x16xf32> to vector<64xf32>
      %51 = vector.shape_cast %50 : vector<64xf32> to vector<64x1xf32>
      %cst_42 = arith.constant 1.600000e+01 : f32
      %52 = vector.broadcast %cst_42 : f32 to vector<64x1xf32>
      %53 = arith.divf %51, %52 : vector<64x1xf32>
      %54 = vector.broadcast %46 : vector<64x1xf32> to vector<64x16xf32>
      %55 = arith.subf %42, %54 : vector<64x16xf32>
      %cst_43 = arith.constant 9.99999974E-6 : f32
      %56 = vector.broadcast %cst_43 : f32 to vector<64x1xf32>
      %57 = arith.addf %53, %56 : vector<64x1xf32>
      %58 = math.rsqrt %57 : vector<64x1xf32>
      %59 = vector.broadcast %58 : vector<64x1xf32> to vector<64x16xf32>
      %60 = arith.mulf %55, %59 : vector<64x16xf32>
      %61 = vector.broadcast %0 : vector<1x16xf32> to vector<64x16xf32>
      %62 = arith.mulf %60, %61 : vector<64x16xf32>
      %63 = vector.broadcast %1 : vector<1x16xf32> to vector<64x16xf32>
      %64 = arith.addf %62, %63 : vector<64x16xf32>
      %c0_44 = arith.constant 0 : index
      %c0_45 = arith.constant 0 : index
      %65 = vector.load %arg6[%c0_44, %c0_45] : memref<16x64xf32, #tpu.memory_space<vmem>>, vector<16x64xf32>
      %cst_46 = arith.constant dense<0.000000e+00> : vector<64x64xf32>
      %66 = tpu.matmul %64, %65, %cst_46 {dimension_numbers = #tpu.dot_dimension_numbers<[1], [0], [0], [1], [0, 0, 1, 1], [], []>} : vector<64x16xf32>, vector<16x64xf32>, vector<64x64xf32> -> vector<64x64xf32>
      %67 = vector.extract_strided_slice %66 {offsets = [0, 0], sizes = [64, 32], strides = [1, 1]} : vector<64x64xf32> to vector<64x32xf32>
      %c1_47 = arith.constant 1 : index
      %c0_48 = arith.constant 0 : index
      %68 = vector.load %arg9[%c1_47, %c0_48] : memref<5x32xf32, #tpu.memory_space<vmem>>, vector<1x32xf32>
      %69 = vector.broadcast %68 : vector<1x32xf32> to vector<64x32xf32>
      %70 = arith.addf %67, %69 : vector<64x32xf32>
      %71 = vector.extract_strided_slice %66 {offsets = [0, 32], sizes = [64, 32], strides = [1, 1]} : vector<64x64xf32> to vector<64x32xf32>
      %c2 = arith.constant 2 : index
      %c0_49 = arith.constant 0 : index
      %72 = vector.load %arg9[%c2, %c0_49] : memref<5x32xf32, #tpu.memory_space<vmem>>, vector<1x32xf32>
      %73 = vector.broadcast %72 : vector<1x32xf32> to vector<64x32xf32>
      %74 = arith.addf %71, %73 : vector<64x32xf32>
      %75 = vector.shape_cast %70 : vector<64x32xf32> to vector<8x8x32xf32>
      %76 = arith.index_cast %arg2 : i32 to index
      %c0_50 = arith.constant 0 : index
      %c0_51 = arith.constant 0 : index
      %c0_52 = arith.constant 0 : index
      %77 = vector.load %arg16[%76, %c0_50, %c0_51, %c0_52] : memref<2x8x8x32xf32, #tpu.memory_space<vmem>>, vector<1x8x8x32xf32>
      %78 = vector.shape_cast %77 : vector<1x8x8x32xf32> to vector<8x8x32xf32>
      %79 = vector.shape_cast %75 : vector<8x8x32xf32> to vector<1x8x8x32xf32>
      tpu.vector_store %arg16[%76, %c0_50, %c0_51, %c0_52], %79 {strides = array<i32>} : memref<2x8x8x32xf32, #tpu.memory_space<vmem>>, vector<1x8x8x32xf32>,
      %80 = vector.shape_cast %74 : vector<64x32xf32> to vector<8x8x32xf32>
      %81 = arith.index_cast %arg2 : i32 to index
      %c0_53 = arith.constant 0 : index
      %c0_54 = arith.constant 0 : index
      %c0_55 = arith.constant 0 : index
      %82 = vector.load %arg17[%81, %c0_53, %c0_54, %c0_55] : memref<2x8x8x32xf32, #tpu.memory_space<vmem>>, vector<1x8x8x32xf32>
      %83 = vector.shape_cast %82 : vector<1x8x8x32xf32> to vector<8x8x32xf32>
      %84 = vector.shape_cast %80 : vector<8x8x32xf32> to vector<1x8x8x32xf32>
      tpu.vector_store %arg17[%81, %c0_53, %c0_54, %c0_55], %84 {strides = array<i32>} : memref<2x8x8x32xf32, #tpu.memory_space<vmem>>, vector<1x8x8x32xf32>,
    } else {
    }
    %c0_i32_3 = arith.constant 0 : i32
    %5 = arith.cmpi eq, %arg2, %c0_i32_3 : i32
    %6 = arith.extui %5 : i1 to i32
    %c0_i32_4 = arith.constant 0 : i32
    %7 = arith.cmpi ne, %6, %c0_i32_4 : i32
    scf.if %7 {
      %c0_36 = arith.constant 0 : index
      %c0_37 = arith.constant 0 : index
      %c0_38 = arith.constant 0 : index
      %41 = vector.load %arg3[%c0_36, %c0_37, %c0_38] : memref<8x8x16xf32, #tpu.memory_space<vmem>>, vector<8x8x16xf32>
      %42 = vector.shape_cast %41 : vector<8x8x16xf32> to vector<64x16xf32>
      %cst_39 = arith.constant dense<0.000000e+00> : vector<64xf32>
      %43 = vector.multi_reduction <add>, %42, %cst_39 [1] : vector<64x16xf32> to vector<64xf32>
      %44 = vector.shape_cast %43 : vector<64xf32> to vector<64x1xf32>
      %cst_40 = arith.constant 1.600000e+01 : f32
      %45 = vector.broadcast %cst_40 : f32 to vector<64x1xf32>
      %46 = arith.divf %44, %45 : vector<64x1xf32>
      %47 = vector.broadcast %46 : vector<64x1xf32> to vector<64x16xf32>
      %48 = arith.subf %42, %47 : vector<64x16xf32>
      %49 = arith.mulf %48, %48 : vector<64x16xf32>
      %cst_41 = arith.constant dense<0.000000e+00> : vector<64xf32>
      %50 = vector.multi_reduction <add>, %49, %cst_41 [1] : vector<64x16xf32> to vector<64xf32>
      %51 = vector.shape_cast %50 : vector<64xf32> to vector<64x1xf32>
      %cst_42 = arith.constant 1.600000e+01 : f32
      %52 = vector.broadcast %cst_42 : f32 to vector<64x1xf32>
      %53 = arith.divf %51, %52 : vector<64x1xf32>
      %54 = vector.broadcast %46 : vector<64x1xf32> to vector<64x16xf32>
      %55 = arith.subf %42, %54 : vector<64x16xf32>
      %cst_43 = arith.constant 9.99999974E-6 : f32
      %56 = vector.broadcast %cst_43 : f32 to vector<64x1xf32>
      %57 = arith.addf %53, %56 : vector<64x1xf32>
      %58 = math.rsqrt %57 : vector<64x1xf32>
      %59 = vector.broadcast %58 : vector<64x1xf32> to vector<64x16xf32>
      %60 = arith.mulf %55, %59 : vector<64x16xf32>
      %61 = vector.broadcast %0 : vector<1x16xf32> to vector<64x16xf32>
      %62 = arith.mulf %60, %61 : vector<64x16xf32>
      %63 = vector.broadcast %1 : vector<1x16xf32> to vector<64x16xf32>
      %64 = arith.addf %62, %63 : vector<64x16xf32>
      %c0_44 = arith.constant 0 : index
      %c0_45 = arith.constant 0 : index
      %65 = vector.load %arg5[%c0_44, %c0_45] : memref<16x32xf32, #tpu.memory_space<vmem>>, vector<16x32xf32>
      %cst_46 = arith.constant dense<0.000000e+00> : vector<64x32xf32>
      %66 = tpu.matmul %64, %65, %cst_46 {dimension_numbers = #tpu.dot_dimension_numbers<[1], [0], [0], [1], [0, 0, 1, 1], [], []>} : vector<64x16xf32>, vector<16x32xf32>, vector<64x32xf32> -> vector<64x32xf32>
      %c0_47 = arith.constant 0 : index
      %c0_48 = arith.constant 0 : index
      %67 = vector.load %arg9[%c0_47, %c0_48] : memref<5x32xf32, #tpu.memory_space<vmem>>, vector<1x32xf32>
      %68 = vector.broadcast %67 : vector<1x32xf32> to vector<64x32xf32>
      %69 = arith.addf %66, %68 : vector<64x32xf32>
      %cst_49 = arith.constant 0.176776692 : f32
      %70 = vector.broadcast %cst_49 : f32 to vector<64x32xf32>
      %71 = arith.mulf %69, %70 : vector<64x32xf32>
      %72 = vector.shape_cast %71 : vector<64x32xf32> to vector<8x8x32xf32>
      %c0_50 = arith.constant 0 : index
      %c0_51 = arith.constant 0 : index
      %c0_52 = arith.constant 0 : index
      %73 = vector.load %arg12[%c0_50, %c0_51, %c0_52] : memref<8x8x32xf32, #tpu.memory_space<vmem>>, vector<8x8x32xf32>
      tpu.vector_store %arg12[%c0_50, %c0_51, %c0_52], %72 {strides = array<i32>} : memref<8x8x32xf32, #tpu.memory_space<vmem>>, vector<8x8x32xf32>,
      %cst_53 = arith.constant 0xFF800000 : f32
      %74 = vector.broadcast %cst_53 : f32 to vector<8x8x1xf32>
      %c0_54 = arith.constant 0 : index
      %c0_55 = arith.constant 0 : index
      %c0_56 = arith.constant 0 : index
      %75 = vector.load %arg13[%c0_54, %c0_55, %c0_56] : memref<8x8x1xf32, #tpu.memory_space<vmem>>, vector<8x8x1xf32>
      tpu.vector_store %arg13[%c0_54, %c0_55, %c0_56], %74 {strides = array<i32>} : memref<8x8x1xf32, #tpu.memory_space<vmem>>, vector<8x8x1xf32>,
      %cst_57 = arith.constant 0.000000e+00 : f32
      %76 = vector.broadcast %cst_57 : f32 to vector<8x8x1xf32>
      %c0_58 = arith.constant 0 : index
      %c0_59 = arith.constant 0 : index
      %c0_60 = arith.constant 0 : index
      %77 = vector.load %arg14[%c0_58, %c0_59, %c0_60] : memref<8x8x1xf32, #tpu.memory_space<vmem>>, vector<8x8x1xf32>
      tpu.vector_store %arg14[%c0_58, %c0_59, %c0_60], %76 {strides = array<i32>} : memref<8x8x1xf32, #tpu.memory_space<vmem>>, vector<8x8x1xf32>,
      %cst_61 = arith.constant 0.000000e+00 : f32
      %78 = vector.broadcast %cst_61 : f32 to vector<8x8x32xf32>
      %c0_62 = arith.constant 0 : index
      %c0_63 = arith.constant 0 : index
      %c0_64 = arith.constant 0 : index
      %79 = vector.load %arg15[%c0_62, %c0_63, %c0_64] : memref<8x8x32xf32, #tpu.memory_space<vmem>>, vector<8x8x32xf32>
      tpu.vector_store %arg15[%c0_62, %c0_63, %c0_64], %78 {strides = array<i32>} : memref<8x8x32xf32, #tpu.memory_space<vmem>>, vector<8x8x32xf32>,
    } else {
    }
    %8 = arith.index_cast %arg2 : i32 to index
    %c0_5 = arith.constant 0 : index
    %c0_6 = arith.constant 0 : index
    %c0_7 = arith.constant 0 : index
    %9 = vector.load %arg16[%8, %c0_5, %c0_6, %c0_7] : memref<2x8x8x32xf32, #tpu.memory_space<vmem>>, vector<1x8x8x32xf32>
    %10 = vector.shape_cast %9 : vector<1x8x8x32xf32> to vector<8x8x32xf32>
    %11 = arith.index_cast %arg2 : i32 to index
    %c0_8 = arith.constant 0 : index
    %c0_9 = arith.constant 0 : index
    %c0_10 = arith.constant 0 : index
    %12 = vector.load %arg17[%11, %c0_8, %c0_9, %c0_10] : memref<2x8x8x32xf32, #tpu.memory_space<vmem>>, vector<1x8x8x32xf32>
    %13 = vector.shape_cast %12 : vector<1x8x8x32xf32> to vector<8x8x32xf32>
    %c0_11 = arith.constant 0 : index
    %c0_12 = arith.constant 0 : index
    %c0_13 = arith.constant 0 : index
    %14 = vector.load %arg12[%c0_11, %c0_12, %c0_13] : memref<8x8x32xf32, #tpu.memory_space<vmem>>, vector<8x8x32xf32>
    %cst = arith.constant dense<0.000000e+00> : vector<8x8x8xf32>
    %15 = tpu.matmul %14, %10, %cst {dimension_numbers = #tpu.dot_dimension_numbers<[2], [2], [1], [1], [0, 0, 0, 1, 1, 1], [0], [0]>} : vector<8x8x32xf32>, vector<8x8x32xf32>, vector<8x8x8xf32> -> vector<8x8x8xf32>
    %c0_14 = arith.constant 0 : index
    %c0_15 = arith.constant 0 : index
    %c0_16 = arith.constant 0 : index
    %16 = vector.load %arg13[%c0_14, %c0_15, %c0_16] : memref<8x8x1xf32, #tpu.memory_space<vmem>>, vector<8x8x1xf32>
    %cst_17 = arith.constant dense<0xFF800000> : vector<8x8xf32>
    %17 = vector.multi_reduction <maximumf>, %15, %cst_17 [2] : vector<8x8x8xf32> to vector<8x8xf32>
    %18 = vector.shape_cast %17 : vector<8x8xf32> to vector<8x8x1xf32>
    %19 = arith.maximumf %16, %18 : vector<8x8x1xf32>
    %20 = arith.subf %16, %19 : vector<8x8x1xf32>
    %21 = math.exp %20 : vector<8x8x1xf32>
    %22 = vector.broadcast %19 : vector<8x8x1xf32> to vector<8x8x8xf32>
    %23 = arith.subf %15, %22 : vector<8x8x8xf32>
    %24 = math.exp %23 : vector<8x8x8xf32>
    %c0_18 = arith.constant 0 : index
    %c0_19 = arith.constant 0 : index
    %c0_20 = arith.constant 0 : index
    %25 = vector.load %arg14[%c0_18, %c0_19, %c0_20] : memref<8x8x1xf32, #tpu.memory_space<vmem>>, vector<8x8x1xf32>
    %26 = arith.mulf %21, %25 : vector<8x8x1xf32>
    %cst_21 = arith.constant dense<0.000000e+00> : vector<8x8xf32>
    %27 = vector.multi_reduction <add>, %24, %cst_21 [2] : vector<8x8x8xf32> to vector<8x8xf32>
    %28 = vector.shape_cast %27 : vector<8x8xf32> to vector<8x8x1xf32>
    %29 = arith.addf %26, %28 : vector<8x8x1xf32>
    %c0_22 = arith.constant 0 : index
    %c0_23 = arith.constant 0 : index
    %c0_24 = arith.constant 0 : index
    %30 = vector.load %arg14[%c0_22, %c0_23, %c0_24] : memref<8x8x1xf32, #tpu.memory_space<vmem>>, vector<8x8x1xf32>
    tpu.vector_store %arg14[%c0_22, %c0_23, %c0_24], %29 {strides = array<i32>} : memref<8x8x1xf32, #tpu.memory_space<vmem>>, vector<8x8x1xf32>,
    %c0_25 = arith.constant 0 : index
    %c0_26 = arith.constant 0 : index
    %c0_27 = arith.constant 0 : index
    %31 = vector.load %arg15[%c0_25, %c0_26, %c0_27] : memref<8x8x32xf32, #tpu.memory_space<vmem>>, vector<8x8x32xf32>
    %32 = vector.broadcast %21 : vector<8x8x1xf32> to vector<8x8x32xf32>
    %33 = arith.mulf %32, %31 : vector<8x8x32xf32>
    %cst_28 = arith.constant dense<0.000000e+00> : vector<8x8x32xf32>
    %34 = tpu.matmul %24, %13, %cst_28 {dimension_numbers = #tpu.dot_dimension_numbers<[2], [1], [1], [2], [0, 0, 0, 1, 1, 2], [0], [0]>} : vector<8x8x8xf32>, vector<8x8x32xf32>, vector<8x8x32xf32> -> vector<8x8x32xf32>
    %35 = arith.addf %33, %34 : vector<8x8x32xf32>
    %c0_29 = arith.constant 0 : index
    %c0_30 = arith.constant 0 : index
    %c0_31 = arith.constant 0 : index
    %36 = vector.load %arg15[%c0_29, %c0_30, %c0_31] : memref<8x8x32xf32, #tpu.memory_space<vmem>>, vector<8x8x32xf32>
    tpu.vector_store %arg15[%c0_29, %c0_30, %c0_31], %35 {strides = array<i32>} : memref<8x8x32xf32, #tpu.memory_space<vmem>>, vector<8x8x32xf32>,
    %c0_32 = arith.constant 0 : index
    %c0_33 = arith.constant 0 : index
    %c0_34 = arith.constant 0 : index
    %37 = vector.load %arg13[%c0_32, %c0_33, %c0_34] : memref<8x8x1xf32, #tpu.memory_space<vmem>>, vector<8x8x1xf32>
    tpu.vector_store %arg13[%c0_32, %c0_33, %c0_34], %19 {strides = array<i32>} : memref<8x8x1xf32, #tpu.memory_space<vmem>>, vector<8x8x1xf32>,
    %c1_i32 = arith.constant 1 : i32
    %38 = arith.cmpi eq, %arg2, %c1_i32 : i32
    %39 = arith.extui %38 : i1 to i32
    %c0_i32_35 = arith.constant 0 : i32
    %40 = arith.cmpi ne, %39, %c0_i32_35 : i32
    scf.if %40 {
      %c0_36 = arith.constant 0 : index
      %c0_37 = arith.constant 0 : index
      %c0_38 = arith.constant 0 : index
      %41 = vector.load %arg15[%c0_36, %c0_37, %c0_38] : memref<8x8x32xf32, #tpu.memory_space<vmem>>, vector<8x8x32xf32>
      %c0_39 = arith.constant 0 : index
      %c0_40 = arith.constant 0 : index
      %c0_41 = arith.constant 0 : index
      %42 = vector.load %arg14[%c0_39, %c0_40, %c0_41] : memref<8x8x1xf32, #tpu.memory_space<vmem>>, vector<8x8x1xf32>
      %43 = tpu.reciprocal %42 {approx = true} : vector<8x8x1xf32> -> vector<8x8x1xf32>
      %44 = vector.broadcast %43 : vector<8x8x1xf32> to vector<8x8x32xf32>
      %45 = arith.mulf %41, %44 : vector<8x8x32xf32>
      %46 = vector.shape_cast %45 : vector<8x8x32xf32> to vector<64x32xf32>
      %c3 = arith.constant 3 : index
      %c0_42 = arith.constant 0 : index
      %47 = vector.load %arg9[%c3, %c0_42] : memref<5x32xf32, #tpu.memory_space<vmem>>, vector<1x32xf32>
      %c4 = arith.constant 4 : index
      %c0_43 = arith.constant 0 : index
      %48 = vector.load %arg9[%c4, %c0_43] : memref<5x32xf32, #tpu.memory_space<vmem>>, vector<1x32xf32>
      %cst_44 = arith.constant dense<0.000000e+00> : vector<64xf32>
      %49 = vector.multi_reduction <add>, %46, %cst_44 [1] : vector<64x32xf32> to vector<64xf32>
      %50 = vector.shape_cast %49 : vector<64xf32> to vector<64x1xf32>
      %cst_45 = arith.constant 3.200000e+01 : f32
      %51 = vector.broadcast %cst_45 : f32 to vector<64x1xf32>
      %52 = arith.divf %50, %51 : vector<64x1xf32>
      %53 = vector.broadcast %52 : vector<64x1xf32> to vector<64x32xf32>
      %54 = arith.subf %46, %53 : vector<64x32xf32>
      %55 = arith.mulf %54, %54 : vector<64x32xf32>
      %cst_46 = arith.constant dense<0.000000e+00> : vector<64xf32>
      %56 = vector.multi_reduction <add>, %55, %cst_46 [1] : vector<64x32xf32> to vector<64xf32>
      %57 = vector.shape_cast %56 : vector<64xf32> to vector<64x1xf32>
      %cst_47 = arith.constant 3.200000e+01 : f32
      %58 = vector.broadcast %cst_47 : f32 to vector<64x1xf32>
      %59 = arith.divf %57, %58 : vector<64x1xf32>
      %60 = vector.broadcast %52 : vector<64x1xf32> to vector<64x32xf32>
      %61 = arith.subf %46, %60 : vector<64x32xf32>
      %cst_48 = arith.constant 9.99999974E-6 : f32
      %62 = vector.broadcast %cst_48 : f32 to vector<64x1xf32>
      %63 = arith.addf %59, %62 : vector<64x1xf32>
      %64 = math.rsqrt %63 : vector<64x1xf32>
      %65 = vector.broadcast %64 : vector<64x1xf32> to vector<64x32xf32>
      %66 = arith.mulf %61, %65 : vector<64x32xf32>
      %67 = vector.broadcast %47 : vector<1x32xf32> to vector<64x32xf32>
      %68 = arith.mulf %66, %67 : vector<64x32xf32>
      %69 = vector.broadcast %48 : vector<1x32xf32> to vector<64x32xf32>
      %70 = arith.addf %68, %69 : vector<64x32xf32>
      %c0_49 = arith.constant 0 : index
      %c0_50 = arith.constant 0 : index
      %71 = vector.load %arg7[%c0_49, %c0_50] : memref<32x16xf32, #tpu.memory_space<vmem>>, vector<32x16xf32>
      %cst_51 = arith.constant dense<0.000000e+00> : vector<64x16xf32>
      %72 = tpu.matmul %70, %71, %cst_51 {dimension_numbers = #tpu.dot_dimension_numbers<[1], [0], [0], [1], [0, 0, 1, 1], [], []>} : vector<64x32xf32>, vector<32x16xf32>, vector<64x16xf32> -> vector<64x16xf32>
      %c4_52 = arith.constant 4 : index
      %c0_53 = arith.constant 0 : index
      %73 = vector.load %arg8[%c4_52, %c0_53] : memref<5x16xf32, #tpu.memory_space<vmem>>, vector<1x16xf32>
      %74 = vector.broadcast %73 : vector<1x16xf32> to vector<64x16xf32>
      %75 = arith.addf %72, %74 : vector<64x16xf32>
      %c2 = arith.constant 2 : index
      %c0_54 = arith.constant 0 : index
      %76 = vector.load %arg8[%c2, %c0_54] : memref<5x16xf32, #tpu.memory_space<vmem>>, vector<1x16xf32>
      %c3_55 = arith.constant 3 : index
      %c0_56 = arith.constant 0 : index
      %77 = vector.load %arg8[%c3_55, %c0_56] : memref<5x16xf32, #tpu.memory_space<vmem>>, vector<1x16xf32>
      %cst_57 = arith.constant dense<0.000000e+00> : vector<64xf32>
      %78 = vector.multi_reduction <add>, %75, %cst_57 [1] : vector<64x16xf32> to vector<64xf32>
      %79 = vector.shape_cast %78 : vector<64xf32> to vector<64x1xf32>
      %cst_58 = arith.constant 1.600000e+01 : f32
      %80 = vector.broadcast %cst_58 : f32 to vector<64x1xf32>
      %81 = arith.divf %79, %80 : vector<64x1xf32>
      %82 = vector.broadcast %81 : vector<64x1xf32> to vector<64x16xf32>
      %83 = arith.subf %75, %82 : vector<64x16xf32>
      %84 = arith.mulf %83, %83 : vector<64x16xf32>
      %cst_59 = arith.constant dense<0.000000e+00> : vector<64xf32>
      %85 = vector.multi_reduction <add>, %84, %cst_59 [1] : vector<64x16xf32> to vector<64xf32>
      %86 = vector.shape_cast %85 : vector<64xf32> to vector<64x1xf32>
      %cst_60 = arith.constant 1.600000e+01 : f32
      %87 = vector.broadcast %cst_60 : f32 to vector<64x1xf32>
      %88 = arith.divf %86, %87 : vector<64x1xf32>
      %89 = vector.broadcast %81 : vector<64x1xf32> to vector<64x16xf32>
      %90 = arith.subf %75, %89 : vector<64x16xf32>
      %cst_61 = arith.constant 9.99999974E-6 : f32
      %91 = vector.broadcast %cst_61 : f32 to vector<64x1xf32>
      %92 = arith.addf %88, %91 : vector<64x1xf32>
      %93 = math.rsqrt %92 : vector<64x1xf32>
      %94 = vector.broadcast %93 : vector<64x1xf32> to vector<64x16xf32>
      %95 = arith.mulf %90, %94 : vector<64x16xf32>
      %96 = vector.broadcast %76 : vector<1x16xf32> to vector<64x16xf32>
      %97 = arith.mulf %95, %96 : vector<64x16xf32>
      %98 = vector.broadcast %77 : vector<1x16xf32> to vector<64x16xf32>
      %99 = arith.addf %97, %98 : vector<64x16xf32>
      %c0_62 = arith.constant 0 : index
      %100 = memref.load %arg10[%c0_62] : memref<1xf32, #tpu.memory_space<smem>>
      %cst_63 = arith.constant 0.000000e+00 : f32
      %101 = vector.broadcast %cst_63 : f32 to vector<64x16xf32>
      %102 = arith.cmpf oge, %99, %101 : vector<64x16xf32>
      %103 = vector.broadcast %100 : f32 to vector<64x16xf32>
      %104 = arith.mulf %103, %99 : vector<64x16xf32>
      %105 = arith.select %102, %99, %104 : vector<64x16xi1>, vector<64x16xf32>
      %106 = vector.shape_cast %105 : vector<64x16xf32> to vector<8x8x16xf32>
      %c0_64 = arith.constant 0 : index
      %c0_65 = arith.constant 0 : index
      %c0_66 = arith.constant 0 : index
      %107 = vector.load %arg3[%c0_64, %c0_65, %c0_66] : memref<8x8x16xf32, #tpu.memory_space<vmem>>, vector<8x8x16xf32>
      %108 = arith.addf %106, %107 : vector<8x8x16xf32>
      %109 = vector.shape_cast %108 : vector<8x8x16xf32> to vector<8x128xf32>
      %c0_67 = arith.constant 0 : index
      %c0_68 = arith.constant 0 : index
      %110 = vector.load %arg11[%c0_67, %c0_68] : memref<8x128xf32, #tpu.memory_space<vmem>>, vector<8x128xf32>
      tpu.vector_store %arg11[%c0_67, %c0_68], %109 {strides = array<i32>} : memref<8x128xf32, #tpu.memory_space<vmem>>, vector<8x128xf32>,
    } else {
    }
    return
  }
  func.func @transform_0(%arg0: i32, %arg1: i32, %arg2: i32) -> (i32, i32, i32) {
    %c0_i32 = arith.constant 0 : i32
    %c0_i32_0 = arith.constant 0 : i32
    return %arg0, %arg1, %c0_i32 : i32, i32, i32
  }
  func.func @transform_1(%arg0: i32, %arg1: i32, %arg2: i32) -> (i32, i32, i32) {
    %c0_i32 = arith.constant 0 : i32
    %0 = arith.cmpi eq, %arg1, %c0_i32 : i32
    %c0_i32_0 = arith.constant 0 : i32
    %1 = arith.select %0, %arg2, %c0_i32_0 : i32
    %c0_i32_1 = arith.constant 0 : i32
    %c0_i32_2 = arith.constant 0 : i32
    return %arg0, %1, %c0_i32_1 : i32, i32, i32
  }
  func.func @transform_2(%arg0: i32, %arg1: i32, %arg2: i32) -> (i32, i32) {
    %c0_i32 = arith.constant 0 : i32
    %c0_i32_0 = arith.constant 0 : i32
    %c0_i32_1 = arith.constant 0 : i32
    return %c0_i32, %c0_i32_0 : i32, i32
  }
  func.func @transform_3(%arg0: i32, %arg1: i32, %arg2: i32) -> (i32, i32) {
    %c0_i32 = arith.constant 0 : i32
    %c0_i32_0 = arith.constant 0 : i32
    %c0_i32_1 = arith.constant 0 : i32
    return %c0_i32, %c0_i32_0 : i32, i32
  }
  func.func @transform_4(%arg0: i32, %arg1: i32, %arg2: i32) -> (i32, i32) {
    %c0_i32 = arith.constant 0 : i32
    %c0_i32_0 = arith.constant 0 : i32
    %c0_i32_1 = arith.constant 0 : i32
    return %c0_i32, %c0_i32_0 : i32, i32
  }
  func.func @transform_5(%arg0: i32, %arg1: i32, %arg2: i32) -> (i32, i32) {
    %c0_i32 = arith.constant 0 : i32
    %c0_i32_0 = arith.constant 0 : i32
    %c0_i32_1 = arith.constant 0 : i32
    return %c0_i32, %c0_i32_0 : i32, i32
  }
  func.func @transform_6(%arg0: i32, %arg1: i32, %arg2: i32) -> (i32, i32) {
    %c0_i32 = arith.constant 0 : i32
    %c0_i32_0 = arith.constant 0 : i32
    %c0_i32_1 = arith.constant 0 : i32
    return %c0_i32, %c0_i32_0 : i32, i32
  }
  func.func @transform_7(%arg0: i32, %arg1: i32, %arg2: i32) -> i32 {
    %c0_i32 = arith.constant 0 : i32
    %c0_i32_0 = arith.constant 0 : i32
    return %c0_i32 : i32
  }
  func.func @transform_8(%arg0: i32, %arg1: i32, %arg2: i32) -> (i32, i32) {
    %c0_i32 = arith.constant 0 : i32
    return %arg0, %arg1 : i32, i32
  }
}

</mosaic_0001>

<llo_original>
// kernel: tpu_custom_call.1
$region0: #{tpu_custom_call.1}
  #allocation0 [shape = 'u32[]', space=smem, size = 0x4, offset = 0x4, fixed_abs, tag = 'smem constant byte address 0x4 - core index']
  #allocation1 [shape = 'u32[144,128]{1,0:T(1,128)}', space=vmem, size = 0x12000, scoped, tag = 'internal scratch']
  #allocation2 [shape = 'f32[8,8,32]{2,1,0:T(8,128)}', space=vmem, size = 0x8000, scoped, tag = 'scratch operand']
  #allocation3 [shape = 'f32[8,8,1]{2,1,0:T(8,128)}', space=vmem, size = 0x8000, scoped, tag = 'scratch operand']
  #allocation4 [shape = 'f32[8,8,1]{2,1,0:T(8,128)}', space=vmem, size = 0x8000, scoped, tag = 'scratch operand']
  #allocation5 [shape = 'f32[8,8,32]{2,1,0:T(8,128)}', space=vmem, size = 0x8000, scoped, tag = 'scratch operand']
  #allocation6 [shape = 'f32[2,8,8,32]{3,2,1,0:T(8,128)}', space=vmem, size = 0x10000, scoped, tag = 'scratch operand']
  #allocation7 [shape = 'f32[2,8,8,32]{3,2,1,0:T(8,128)}', space=vmem, size = 0x10000, scoped, tag = 'scratch operand']
  #allocation8 [shape = 'f32[1]{0:T(128)S(6)}', space=smem, size = 0x200, scoped, tag = 'scoped memory for tpu_custom_call.1']
  %s0 = inlined_call_operand.hbm [shape: f32[16,16,16], index: 0, kind: input, shape index: {}]
  %s1 = inlined_call_operand.hbm [shape: f32[16,16,16], index: 1, kind: input, shape index: {}]
  %s2 = inlined_call_operand.vmem [shape: f32[16,32], index: 2, kind: input, shape index: {}]
  %s3 = inlined_call_operand.vmem [shape: f32[16,64], index: 3, kind: input, shape index: {}]
  %s4 = inlined_call_operand.vmem [shape: f32[32,16], index: 4, kind: input, shape index: {}]
  %s5 = inlined_call_operand.vmem [shape: f32[5,16], index: 5, kind: input, shape index: {}]
  %s6 = inlined_call_operand.vmem [shape: f32[5,32], index: 6, kind: input, shape index: {}]
  %s7 = inlined_call_operand.<no memory space> [shape: f32[1], index: 7, kind: input, shape index: {}]
  %s8 = inlined_call_operand.hbm [shape: f32[16,256], index: 8, kind: output, shape index: {}]
  %s9 = sld [smem:[#allocation0]]
  $region85: #{tpu_custom_call.1} parent=0
    _
  %s11 = ssub.s32 1, %s9
  %s12 = scalar_select 0, %s11, %s9
  %13 = sst [smem:[#allocation8]] %s7
  $region1: #{tpu_custom_call.1} parent=0
    #allocation9 [shape = 'u8[65536]{0}', space=vmem, size = 0x10000, scoped, tag = 'input window, operand 0']
    #allocation10 [shape = 's32[2]{0}', space=sflag, size = 0x8, scoped, tag = 'scoped memory for tpu_custom_call.1']
    #allocation11 [shape = 's32[2]{0}', space=sflag, size = 0x8, scoped, tag = 'scoped memory for tpu_custom_call.1']
    #allocation12 [shape = 'u8[65536]{0}', space=vmem, size = 0x10000, scoped, tag = 'input window, operand 1']
    #allocation13 [shape = 's32[2]{0}', space=sflag, size = 0x8, scoped, tag = 'scoped memory for tpu_custom_call.1']
    #allocation14 [shape = 'u8[8192]{0}', space=vmem, size = 0x2000, scoped, tag = 'output window, operand 0']
    %14 = vsyncpa [#allocation10], 0
    %s15 = scalar_lea.sflag [#allocation10], 1
    %16 = vsyncpa %s15, 0
    %17 = vsyncpa [#allocation13], 0
    %s18 = scalar_lea.sflag [#allocation13], 1
    %19 = vsyncpa %s18, 0
    %20 = vsyncpa [#allocation11], 0
    %s21 = scalar_lea.sflag [#allocation11], 1
    %22 = vsyncpa %s21, 0
    loop: start=0, step=1, limit=10
    $region2: #{tpu_custom_call.1} parent=1 // loop_pre_header
      _
    $region3: #{tpu_custom_call.1} parent=1 // loop_header
      %s24 = sphi 0, %s28
      %p25 = scmp.ge.s32.totalorder %s24, 10
      %s31 = sphi 0, %s50
      %s32 = sphi 0, %s46
      %s33 = sphi 0, %s42
      %s34 = sphi 0, %s31
      %s35 = sphi 0, %s32
      %s36 = sphi 0, %s33
      %s37 = sphi 0, %s34
      %s38 = sphi 0, %s35
      %s39 = sphi 0, %s36
      %s55 = sphi 0, %s57
      %s58 = sphi 0, %s55
      %s59 = sphi 0, %s58
      %s75 = sphi 0, %s59
      %s87 = sphi 0, %s89
      %s90 = sphi 0, %s87
      %s91 = sphi 0, %s90
      %s107 = sphi 0, %s91
      %s111 = sphi 0, %s111
      %s113 = sphi 0, %s111
      %s114 = sphi 0, %s113
      %s128 = sphi 0, %s114
      %s132 = sphi 0, %s132
      %s134 = sphi 0, %s132
      %s135 = sphi 0, %s134
      %s149 = sphi 0, %s135
      %s153 = sphi 0, %s153
      %s155 = sphi 0, %s153
      %s156 = sphi 0, %s155
      %s170 = sphi 0, %s156
      %s174 = sphi 0, %s174
      %s176 = sphi 0, %s174
      %s177 = sphi 0, %s176
      %s191 = sphi 0, %s177
      %s195 = sphi 0, %s195
      %s197 = sphi 0, %s195
      %s198 = sphi 0, %s197
      %s212 = sphi 0, %s198
      %s216 = sphi 0, %s216
      %s218 = sphi 0, %s216
      %s219 = sphi 0, %s218
      %s233 = sphi 0, %s219
      %s241 = sphi 0, %s243
      %s244 = sphi 0, %s241
      %s245 = sphi 0, %s244
      %s261 = sphi 0, %s245
    $region4: #{tpu_custom_call.1} parent=1 // loop_header_branch
      %27 = sbr.rel (%p25) target = $region8
    $region5: #{tpu_custom_call.1} parent=1 // loop_body
      %s29 = ssub.s32 %s24, 1
      %s30 = ssub.s32 %s24, 2
      %s40 = sadd.s32 1, %s33
      %p41 = scmp.ge.s32.totalorder %s40, 2
      %s42 = scalar_select %p41, 0, %s40
      %s43 = sadd.s32 1, %s32
      %s44 = scalar_select %p41, %s43, %s32
      %p45 = scmp.ge.s32.totalorder %s44, 2
      %s46 = scalar_select %p45, 0, %s44
      %s47 = sadd.s32 1, %s31
      %s48 = scalar_select %p45, %s47, %s31
      %p49 = scmp.ge.s32.totalorder %s48, 2
      %s50 = scalar_select %p49, 0, %s48
      %s51 = ssub.s32 %s31, %s50
      %s52 = ssub.s32 %s32, %s46
      %s53 = sor.u32 %s51, %s52
      %p54 = scmp.eq.s32.totalorder %s53, 0
      %s56 = sadd.s32 %s55, 1
      %s57 = scalar_select %p54, %s55, %s56
      %p60 = pneg %p54
      %p61 = scmp.eq.s32.totalorder %s24, 7
      %p62 = por %p60, %p61
      %p63 = scmp.ne.s32.totalorder %s55, %s58
      %p64 = scmp.eq.s32.totalorder %s24, 0
      %p65 = por %p63, %p64
      %p66 = scmp.ne.s32.totalorder %s55, %s58
      %p67 = scmp.eq.s32.totalorder %s29, 7
      %p68 = por %p66, %p67
      %p69 = scmp.ne.s32.totalorder %s58, %s59
      %p70 = scmp.eq.s32.totalorder %s29, 0
      %p71 = por %p69, %p70
      %p72 = scmp.ne.s32.totalorder %s58, %s59
      %p73 = scmp.eq.s32.totalorder %s30, 7
      %p74 = por %p72, %p73
      %p76 = scmp.ne.s32.totalorder %s59, %s75
      %p77 = scmp.eq.s32.totalorder %s30, 0
      %p78 = por %p76, %p77
      %p79 = scmp.eq.s32.totalorder %s32, 0
      %s80 = scalar_select %p79, %s33, 0
      %p81 = scmp.eq.s32.totalorder %s46, 0
      %s82 = scalar_select %p81, %s42, 0
      %s83 = ssub.s32 %s31, %s50
      %s84 = ssub.s32 %s80, %s82
      %s85 = sor.u32 %s83, %s84
      %p86 = scmp.eq.s32.totalorder %s85, 0
      %s88 = sadd.s32 %s87, 1
      %s89 = scalar_select %p86, %s87, %s88
      %p92 = pneg %p86
      %p93 = scmp.eq.s32.totalorder %s24, 7
      %p94 = por %p92, %p93
      %p95 = scmp.ne.s32.totalorder %s87, %s90
      %p96 = scmp.eq.s32.totalorder %s24, 0
      %p97 = por %p95, %p96
      %p98 = scmp.ne.s32.totalorder %s87, %s90
      %p99 = scmp.eq.s32.totalorder %s29, 7
      %p100 = por %p98, %p99
      %p101 = scmp.ne.s32.totalorder %s90, %s91
      %p102 = scmp.eq.s32.totalorder %s29, 0
      %p103 = por %p101, %p102
      %p104 = scmp.ne.s32.totalorder %s90, %s91
      %p105 = scmp.eq.s32.totalorder %s30, 7
      %p106 = por %p104, %p105
      %p108 = scmp.ne.s32.totalorder %s91, %s107
      %p109 = scmp.eq.s32.totalorder %s30, 0
      %p110 = por %p108, %p109
      %s112 = sadd.s32 %s111, 1
      %p115 = scmp.eq.s32.totalorder %s24, 7
      %p116 = scmp.ne.s32.totalorder %s111, %s113
      %p117 = scmp.eq.s32.totalorder %s24, 0
      %p118 = por %p116, %p117
      %p119 = scmp.ne.s32.totalorder %s111, %s113
      %p120 = scmp.eq.s32.totalorder %s29, 7
      %p121 = por %p119, %p120
      %p122 = scmp.ne.s32.totalorder %s113, %s114
      %p123 = scmp.eq.s32.totalorder %s29, 0
      %p124 = por %p122, %p123
      %p125 = scmp.ne.s32.totalorder %s113, %s114
      %p126 = scmp.eq.s32.totalorder %s30, 7
      %p127 = por %p125, %p126
      %p129 = scmp.ne.s32.totalorder %s114, %s128
      %p130 = scmp.eq.s32.totalorder %s30, 0
      %p131 = por %p129, %p130
      %s133 = sadd.s32 %s132, 1
      %p136 = scmp.eq.s32.totalorder %s24, 7
      %p137 = scmp.ne.s32.totalorder %s132, %s134
      %p138 = scmp.eq.s32.totalorder %s24, 0
      %p139 = por %p137, %p138
      %p140 = scmp.ne.s32.totalorder %s132, %s134
      %p141 = scmp.eq.s32.totalorder %s29, 7
      %p142 = por %p140, %p141
      %p143 = scmp.ne.s32.totalorder %s134, %s135
      %p144 = scmp.eq.s32.totalorder %s29, 0
      %p145 = por %p143, %p144
      %p146 = scmp.ne.s32.totalorder %s134, %s135
      %p147 = scmp.eq.s32.totalorder %s30, 7
      %p148 = por %p146, %p147
      %p150 = scmp.ne.s32.totalorder %s135, %s149
      %p151 = scmp.eq.s32.totalorder %s30, 0
      %p152 = por %p150, %p151
      %s154 = sadd.s32 %s153, 1
      %p157 = scmp.eq.s32.totalorder %s24, 7
      %p158 = scmp.ne.s32.totalorder %s153, %s155
      %p159 = scmp.eq.s32.totalorder %s24, 0
      %p160 = por %p158, %p159
      %p161 = scmp.ne.s32.totalorder %s153, %s155
      %p162 = scmp.eq.s32.totalorder %s29, 7
      %p163 = por %p161, %p162
      %p164 = scmp.ne.s32.totalorder %s155, %s156
      %p165 = scmp.eq.s32.totalorder %s29, 0
      %p166 = por %p164, %p165
      %p167 = scmp.ne.s32.totalorder %s155, %s156
      %p168 = scmp.eq.s32.totalorder %s30, 7
      %p169 = por %p167, %p168
      %p171 = scmp.ne.s32.totalorder %s156, %s170
      %p172 = scmp.eq.s32.totalorder %s30, 0
      %p173 = por %p171, %p172
      %s175 = sadd.s32 %s174, 1
      %p178 = scmp.eq.s32.totalorder %s24, 7
      %p179 = scmp.ne.s32.totalorder %s174, %s176
      %p180 = scmp.eq.s32.totalorder %s24, 0
      %p181 = por %p179, %p180
      %p182 = scmp.ne.s32.totalorder %s174, %s176
      %p183 = scmp.eq.s32.totalorder %s29, 7
      %p184 = por %p182, %p183
      %p185 = scmp.ne.s32.totalorder %s176, %s177
      %p186 = scmp.eq.s32.totalorder %s29, 0
      %p187 = por %p185, %p186
      %p188 = scmp.ne.s32.totalorder %s176, %s177
      %p189 = scmp.eq.s32.totalorder %s30, 7
      %p190 = por %p188, %p189
      %p192 = scmp.ne.s32.totalorder %s177, %s191
      %p193 = scmp.eq.s32.totalorder %s30, 0
      %p194 = por %p192, %p193
      %s196 = sadd.s32 %s195, 1
      %p199 = scmp.eq.s32.totalorder %s24, 7
      %p200 = scmp.ne.s32.totalorder %s195, %s197
      %p201 = scmp.eq.s32.totalorder %s24, 0
      %p202 = por %p200, %p201
      %p203 = scmp.ne.s32.totalorder %s195, %s197
      %p204 = scmp.eq.s32.totalorder %s29, 7
      %p205 = por %p203, %p204
      %p206 = scmp.ne.s32.totalorder %s197, %s198
      %p207 = scmp.eq.s32.totalorder %s29, 0
      %p208 = por %p206, %p207
      %p209 = scmp.ne.s32.totalorder %s197, %s198
      %p210 = scmp.eq.s32.totalorder %s30, 7
      %p211 = por %p209, %p210
      %p213 = scmp.ne.s32.totalorder %s198, %s212
      %p214 = scmp.eq.s32.totalorder %s30, 0
      %p215 = por %p213, %p214
      %s217 = sadd.s32 %s216, 1
      %p220 = scmp.eq.s32.totalorder %s24, 7
      %p221 = scmp.ne.s32.totalorder %s216, %s218
      %p222 = scmp.eq.s32.totalorder %s24, 0
      %p223 = por %p221, %p222
      %p224 = scmp.ne.s32.totalorder %s216, %s218
      %p225 = scmp.eq.s32.totalorder %s29, 7
      %p226 = por %p224, %p225
      %p227 = scmp.ne.s32.totalorder %s218, %s219
      %p228 = scmp.eq.s32.totalorder %s29, 0
      %p229 = por %p227, %p228
      %p230 = scmp.ne.s32.totalorder %s218, %s219
      %p231 = scmp.eq.s32.totalorder %s30, 7
      %p232 = por %p230, %p231
      %p234 = scmp.ne.s32.totalorder %s219, %s233
      %p235 = scmp.eq.s32.totalorder %s30, 0
      %p236 = por %p234, %p235
      %s237 = ssub.s32 %s31, %s50
      %s238 = ssub.s32 %s32, %s46
      %s239 = sor.u32 %s237, %s238
      %p240 = scmp.eq.s32.totalorder %s239, 0
      %s242 = sadd.s32 %s241, 1
      %s243 = scalar_select %p240, %s241, %s242
      %p246 = pneg %p240
      %p247 = scmp.eq.s32.totalorder %s24, 7
      %p248 = por %p246, %p247
      %p249 = scmp.ne.s32.totalorder %s241, %s244
      %p250 = scmp.eq.s32.totalorder %s24, 0
      %p251 = por %p249, %p250
      %p252 = scmp.ne.s32.totalorder %s241, %s244
      %p253 = scmp.eq.s32.totalorder %s29, 7
      %p254 = por %p252, %p253
      %p255 = scmp.ne.s32.totalorder %s244, %s245
      %p256 = scmp.eq.s32.totalorder %s29, 0
      %p257 = por %p255, %p256
      %p258 = scmp.ne.s32.totalorder %s244, %s245
      %p259 = scmp.eq.s32.totalorder %s30, 7
      %p260 = por %p258, %p259
      %p262 = scmp.ne.s32.totalorder %s245, %s261
      %p263 = scmp.eq.s32.totalorder %s30, 0
      %p264 = por %p262, %p263
      %p265 = scmp.le.s32.totalorder 1, %s24
      %p266 = scmp.lt.s32.totalorder %s24, 9
      %p267 = pnand %p265, %p266
      %p268 = pneg %p267
      // Predicated region
      $region9: #{tpu_custom_call.1} parent=5 // pred_check
        _
      $region10: #{tpu_custom_call.1} parent=5 // pred_check_branch
        %270 = sbr.rel (%p267) target = $region12
      $region11: #{tpu_custom_call.1} parent=5 // pred_region
        %s271 = ssub.s32 %s24, 1
        // Predicated region
        $region13: #{tpu_custom_call.1} parent=11 // pred_check
          %p272 = pneg %p124
        $region14: #{tpu_custom_call.1} parent=11 // pred_check_branch
          %274 = sbr.rel (%p272) target = $region16
        $region15: #{tpu_custom_call.1} parent=11 // pred_region
          _
        $region16: #{tpu_custom_call.1} parent=11 // pred_fallthru
          _
        // Predicated region
        $region17: #{tpu_custom_call.1} parent=11 // pred_check
          %p275 = pneg %p145
        $region18: #{tpu_custom_call.1} parent=11 // pred_check_branch
          %277 = sbr.rel (%p275) target = $region20
        $region19: #{tpu_custom_call.1} parent=11 // pred_region
          _
        $region20: #{tpu_custom_call.1} parent=11 // pred_fallthru
          _
        // Predicated region
        $region21: #{tpu_custom_call.1} parent=11 // pred_check
          %p278 = pneg %p166
        $region22: #{tpu_custom_call.1} parent=11 // pred_check_branch
          %280 = sbr.rel (%p278) target = $region24
        $region23: #{tpu_custom_call.1} parent=11 // pred_region
          _
        $region24: #{tpu_custom_call.1} parent=11 // pred_fallthru
          _
        // Predicated region
        $region25: #{tpu_custom_call.1} parent=11 // pred_check
          %p281 = pneg %p187
        $region26: #{tpu_custom_call.1} parent=11 // pred_check_branch
          %283 = sbr.rel (%p281) target = $region28
        $region27: #{tpu_custom_call.1} parent=11 // pred_region
          _
        $region28: #{tpu_custom_call.1} parent=11 // pred_fallthru
          _
        // Predicated region
        $region29: #{tpu_custom_call.1} parent=11 // pred_check
          %p284 = pneg %p208
        $region30: #{tpu_custom_call.1} parent=11 // pred_check_branch
          %286 = sbr.rel (%p284) target = $region32
        $region31: #{tpu_custom_call.1} parent=11 // pred_region
          _
        $region32: #{tpu_custom_call.1} parent=11 // pred_fallthru
          _
        // Predicated region
        $region33: #{tpu_custom_call.1} parent=11 // pred_check
          %p287 = pneg %p229
        $region34: #{tpu_custom_call.1} parent=11 // pred_check_branch
          %289 = sbr.rel (%p287) target = $region36
        $region35: #{tpu_custom_call.1} parent=11 // pred_region
          _
        $region36: #{tpu_custom_call.1} parent=11 // pred_fallthru
          _
      $region12: #{tpu_custom_call.1} parent=5 // pred_fallthru
        _
      %p290 = scmp.lt.s32.totalorder %s24, 8
      // Predicated region
      $region37: #{tpu_custom_call.1} parent=5 // pred_check
        %p291 = pneg %p290
      $region38: #{tpu_custom_call.1} parent=5 // pred_check_branch
        %293 = sbr.rel (%p291) target = $region40
      $region39: #{tpu_custom_call.1} parent=5 // pred_region
        // Predicated region
        $region41: #{tpu_custom_call.1} parent=39 // pred_check
          %p294 = pneg %p65
        $region42: #{tpu_custom_call.1} parent=39 // pred_check_branch
          %296 = sbr.rel (%p294) target = $region44
        $region43: #{tpu_custom_call.1} parent=39 // pred_region
          %s297 = sand.u32 %s55, 1
          %s298 = scalar_lea.sflag [#allocation10], %s297
          %s299 = sand.u32 %s55, 1
          %s300 = smul.addr %s299, 64
          %s301 = scalar_lea.vmem [#allocation9], %s300
          %s302 = smul.u32 8, %s31
          %s304 = ssub.s32 1024, 1024
          %305 = vsyncadd %s298, %s304
          %s306 = smul.addr %s302, 2
          %s307 = sadd.s32 %s32, %s306
          %s308 = smul.addr %s307, 128
          %s309 = scalar_lea.hbm %s0, %s308
          %s310 = sshll.u32 %s301, 4
          %s311 = int_to_ptr.vmem [resolvable:$true] %s310
          %316 = dma.hbm_to_vmem [thread:$0]  %s309, 1024, %s311, %s298, 256, 128, 8
        $region44: #{tpu_custom_call.1} parent=39 // pred_fallthru
          _
        // Predicated region
        $region45: #{tpu_custom_call.1} parent=39 // pred_check
          %p317 = pneg %p97
        $region46: #{tpu_custom_call.1} parent=39 // pred_check_branch
          %319 = sbr.rel (%p317) target = $region48
        $region47: #{tpu_custom_call.1} parent=39 // pred_region
          %s320 = sand.u32 %s87, 1
          %s321 = scalar_lea.sflag [#allocation13], %s320
          %s322 = sand.u32 %s87, 1
          %s323 = smul.addr %s322, 64
          %s324 = scalar_lea.vmem [#allocation12], %s323
          %p325 = scmp.eq.s32.totalorder %s32, 0
          %s326 = scalar_select %p325, %s33, 0
          %s327 = smul.u32 8, %s31
          %s329 = ssub.s32 1024, 1024
          %330 = vsyncadd %s321, %s329
          %s331 = smul.addr %s327, 2
          %s332 = sadd.s32 %s326, %s331
          %s333 = smul.addr %s332, 128
          %s334 = scalar_lea.hbm %s1, %s333
          %s335 = sshll.u32 %s324, 4
          %s336 = int_to_ptr.vmem [resolvable:$true] %s335
          %341 = dma.hbm_to_vmem [thread:$0]  %s334, 1024, %s336, %s321, 256, 128, 8
        $region48: #{tpu_custom_call.1} parent=39 // pred_fallthru
          _
      $region40: #{tpu_custom_call.1} parent=5 // pred_fallthru
        _
      %p342 = scmp.le.s32.totalorder 1, %s24
      %p343 = scmp.lt.s32.totalorder %s24, 9
      %p344 = pnand %p342, %p343
      %p345 = pneg %p344
      // Predicated region
      $region49: #{tpu_custom_call.1} parent=5 // pred_check
        _
      $region50: #{tpu_custom_call.1} parent=5 // pred_check_branch
        %347 = sbr.rel (%p344) target = $region52
      $region51: #{tpu_custom_call.1} parent=5 // pred_region
        %s348 = ssub.s32 %s24, 1
        %s349 = sand.u32 %s58, 1
        %s350 = scalar_lea.sflag [#allocation10], %s349
        %s351 = sand.u32 %s58, 1
        %s352 = smul.addr %s351, 64
        %s353 = scalar_lea.vmem [#allocation9], %s352
        // Predicated region
        $region53: #{tpu_custom_call.1} parent=51 // pred_check
          %p354 = pneg %p71
        $region54: #{tpu_custom_call.1} parent=51 // pred_check_branch
          %356 = sbr.rel (%p354) target = $region56
        $region55: #{tpu_custom_call.1} parent=51 // pred_region
          %357 = dma.done %s350, 1024
        $region56: #{tpu_custom_call.1} parent=51 // pred_fallthru
          _
        %s358 = sand.u32 %s90, 1
        %s359 = scalar_lea.sflag [#allocation13], %s358
        %s360 = sand.u32 %s90, 1
        %s361 = smul.addr %s360, 64
        %s362 = scalar_lea.vmem [#allocation12], %s361
        // Predicated region
        $region57: #{tpu_custom_call.1} parent=51 // pred_check
          %p363 = pneg %p103
        $region58: #{tpu_custom_call.1} parent=51 // pred_check_branch
          %365 = sbr.rel (%p363) target = $region60
        $region59: #{tpu_custom_call.1} parent=51 // pred_region
          %366 = dma.done %s359, 1024
        $region60: #{tpu_custom_call.1} parent=51 // pred_fallthru
          _
        %s367 = sand.u32 %s58, 1
        %s368 = scalar_lea.sflag [#allocation10], %s367
        %s369 = sand.u32 %s58, 1
        %s370 = smul.addr %s369, 64
        %s371 = scalar_lea.vmem [#allocation9], %s370
        %p372 = pneg %p71
        %p373 = pneg %p68
        %s374 = sand.u32 %s90, 1
        %s375 = scalar_lea.sflag [#allocation13], %s374
        %s376 = sand.u32 %s90, 1
        %s377 = smul.addr %s376, 64
        %s378 = scalar_lea.vmem [#allocation12], %s377
        %p379 = pneg %p103
        %p380 = pneg %p100
        %p381 = pneg %p124
        %p382 = pneg %p121
        %p383 = pneg %p145
        %p384 = pneg %p142
        %p385 = pneg %p166
        %p386 = pneg %p163
        %p387 = pneg %p187
        %p388 = pneg %p184
        %p389 = pneg %p208
        %p390 = pneg %p205
        %p391 = pneg %p229
        %p392 = pneg %p226
        %p393 = pneg %p257
        %p394 = pneg %p254
        %s395 = sand.u32 %s244, 1
        %s396 = scalar_lea.sflag [#allocation11], %s395
        %s397 = sand.u32 %s244, 1
        %s398 = smul.addr %s397, 8
        %s399 = scalar_lea.vmem [#allocation14], %s398
        %s400 = smul.u32 8, %s34
        %p401 = scmp.eq.s32.totalorder %s35, 0
        %s402 = scalar_select %p401, %s36, 0
        %s403 = smul.u32 8, %s34
        %v404 = vld [vmem:[%s5] sm:$0x1]
        %v405 = vld [vmem:[%s5 + $0x1] sm:$0x1]
        %p406 = scmp.eq.s32.totalorder %s35, 0
        // Predicated region
        $region61: #{tpu_custom_call.1} parent=51 // pred_check
          %p407 = pneg %p406
        $region62: #{tpu_custom_call.1} parent=51 // pred_check_branch
          %409 = sbr.rel (%p407) target = $region64
        $region63: #{tpu_custom_call.1} parent=51 // pred_region
          %v410 = vld [vmem:[%s362] sm:$0xff]
          %v411 = vld [vmem:[%s362 + $0x8] sm:$0xff]
          %v412 = vld [vmem:[%s362 + $0x10] sm:$0xff]
          %v413 = vld [vmem:[%s362 + $0x18] sm:$0xff]
          %v414 = vld [vmem:[%s362 + $0x20] sm:$0xff]
          %v415 = vld [vmem:[%s362 + $0x28] sm:$0xff]
          %v416 = vld [vmem:[%s362 + $0x30] sm:$0xff]
          %v417 = vld [vmem:[%s362 + $0x38] sm:$0xff]
          %vm418 = vcmask 130048
          %v419 = vsel %vm418, %v410, 0.0
          %420 = vadd.xlane.f32.xlu0 %v419
          %v421 = vpop.xlane.xlu0 %420
          %v422 = vsel %vm418, %v411, 0.0
          %423 = vadd.xlane.f32.xlu0 %v422
          %v424 = vpop.xlane.xlu0 %423
          %v425 = vsel %vm418, %v412, 0.0
          %426 = vadd.xlane.f32.xlu0 %v425
          %v427 = vpop.xlane.xlu0 %426
          %v428 = vsel %vm418, %v413, 0.0
          %429 = vadd.xlane.f32.xlu0 %v428
          %v430 = vpop.xlane.xlu0 %429
          %v431 = vsel %vm418, %v414, 0.0
          %432 = vadd.xlane.f32.xlu0 %v431
          %v433 = vpop.xlane.xlu0 %432
          %v434 = vsel %vm418, %v415, 0.0
          %435 = vadd.xlane.f32.xlu0 %v434
          %v436 = vpop.xlane.xlu0 %435
          %v437 = vsel %vm418, %v416, 0.0
          %438 = vadd.xlane.f32.xlu0 %v437
          %v439 = vpop.xlane.xlu0 %438
          %v440 = vsel %vm418, %v417, 0.0
          %441 = vadd.xlane.f32.xlu0 %v440
          %v442 = vpop.xlane.xlu0 %441
          %v443 = vrcp.pop 16.0
          %v444 = vmul.f32 %v421, %v443
          %v445 = vmul.f32 %v424, %v443
          %v446 = vmul.f32 %v427, %v443
          %v447 = vmul.f32 %v430, %v443
          %v448 = vmul.f32 %v433, %v443
          %v449 = vmul.f32 %v436, %v443
          %v450 = vmul.f32 %v439, %v443
          %v451 = vmul.f32 %v442, %v443
          %v452 = vsub.f32 %v410, %v444
          %v453 = vsub.f32 %v411, %v445
          %v454 = vsub.f32 %v412, %v446
          %v455 = vsub.f32 %v413, %v447
          %v456 = vsub.f32 %v414, %v448
          %v457 = vsub.f32 %v415, %v449
          %v458 = vsub.f32 %v416, %v450
          %v459 = vsub.f32 %v417, %v451
          %v460 = vmul.f32 %v452, %v452
          %v461 = vmul.f32 %v453, %v453
          %v462 = vmul.f32 %v454, %v454
          %v463 = vmul.f32 %v455, %v455
          %v464 = vmul.f32 %v456, %v456
          %v465 = vmul.f32 %v457, %v457
          %v466 = vmul.f32 %v458, %v458
          %v467 = vmul.f32 %v459, %v459
          %v468 = vsel %vm418, %v460, 0.0
          %469 = vadd.xlane.f32.xlu0 %v468
          %v470 = vpop.xlane.xlu0 %469
          %v471 = vsel %vm418, %v461, 0.0
          %472 = vadd.xlane.f32.xlu0 %v471
          %v473 = vpop.xlane.xlu0 %472
          %v474 = vsel %vm418, %v462, 0.0
          %475 = vadd.xlane.f32.xlu0 %v474
          %v476 = vpop.xlane.xlu0 %475
          %v477 = vsel %vm418, %v463, 0.0
          %478 = vadd.xlane.f32.xlu0 %v477
          %v479 = vpop.xlane.xlu0 %478
          %v480 = vsel %vm418, %v464, 0.0
          %481 = vadd.xlane.f32.xlu0 %v480
          %v482 = vpop.xlane.xlu0 %481
          %v483 = vsel %vm418, %v465, 0.0
          %484 = vadd.xlane.f32.xlu0 %v483
          %v485 = vpop.xlane.xlu0 %484
          %v486 = vsel %vm418, %v466, 0.0
          %487 = vadd.xlane.f32.xlu0 %v486
          %v488 = vpop.xlane.xlu0 %487
          %v489 = vsel %vm418, %v467, 0.0
          %490 = vadd.xlane.f32.xlu0 %v489
          %v491 = vpop.xlane.xlu0 %490
          %v492 = vmul.f32 %v470, %v443
          %v493 = vmul.f32 %v473, %v443
          %v494 = vmul.f32 %v476, %v443
          %v495 = vmul.f32 %v479, %v443
          %v496 = vmul.f32 %v482, %v443
          %v497 = vmul.f32 %v485, %v443
          %v498 = vmul.f32 %v488, %v443
          %v499 = vmul.f32 %v491, %v443
          %v500 = vadd.f32 %v492, 1e-05
          %v501 = vadd.f32 %v493, 1e-05
          %v502 = vadd.f32 %v494, 1e-05
          %v503 = vadd.f32 %v495, 1e-05
          %v504 = vadd.f32 %v496, 1e-05
          %v505 = vadd.f32 %v497, 1e-05
          %v506 = vadd.f32 %v498, 1e-05
          %v507 = vadd.f32 %v499, 1e-05
          %v508 = vrsqrt.pop %v500
          %v509 = vrsqrt.pop %v501
          %v510 = vrsqrt.pop %v502
          %v511 = vrsqrt.pop %v503
          %v512 = vrsqrt.pop %v504
          %v513 = vrsqrt.pop %v505
          %v514 = vrsqrt.pop %v506
          %v515 = vrsqrt.pop %v507
          %v516 = vmul.f32 %v452, %v508
          %v517 = vmul.f32 %v453, %v509
          %v518 = vmul.f32 %v454, %v510
          %v519 = vmul.f32 %v455, %v511
          %v520 = vmul.f32 %v456, %v512
          %v521 = vmul.f32 %v457, %v513
          %v522 = vmul.f32 %v458, %v514
          %v523 = vmul.f32 %v459, %v515
          %v524 = vlaneseq
          %v525 = vshrl.u32 %v524, 7
          %v526 = vsub.s32 0, %v525
          %v527 = vrot.slane %v404, %v526
          %v528 = vmul.f32 %v516, %v527
          %v529 = vmul.f32 %v517, %v527
          %v530 = vmul.f32 %v518, %v527
          %v531 = vmul.f32 %v519, %v527
          %v532 = vmul.f32 %v520, %v527
          %v533 = vmul.f32 %v521, %v527
          %v534 = vmul.f32 %v522, %v527
          %v535 = vmul.f32 %v523, %v527
          %v536 = vlaneseq
          %v537 = vshrl.u32 %v536, 7
          %v538 = vsub.s32 0, %v537
          %v539 = vrot.slane %v405, %v538
          %v540 = vadd.f32 %v528, %v539
          %v541 = vadd.f32 %v529, %v539
          %v542 = vadd.f32 %v530, %v539
          %v543 = vadd.f32 %v531, %v539
          %v544 = vadd.f32 %v532, %v539
          %v545 = vadd.f32 %v533, %v539
          %v546 = vadd.f32 %v534, %v539
          %v547 = vadd.f32 %v535, %v539
          %v548 = vld [vmem:[%s3] sm:$0xff]
          %v549 = vld [vmem:[%s3 + $0x8] sm:$0xff]
          %v551 = vsel %vm418, %v540, 0
          %v554 = vsel %vm418, %v541, 0
          %v557 = vsel %vm418, %v542, 0
          %v560 = vsel %vm418, %v543, 0
          %v563 = vsel %vm418, %v544, 0
          %v566 = vsel %vm418, %v545, 0
          %v569 = vsel %vm418, %v546, 0
          %v572 = vsel %vm418, %v547, 0
          %574 = vmatprep.subr.mxu0 0.0
          %575 = vmatpush1.msra.mxu0 %v548
          %576 = vmatprep.subr.mxu0 0.0
          %577 = vmatpush1.msra.mxu0 %v549
          %578 = vmatprep.subr.mxu0 0.0
          %579 = vmatpush1.msra.mxu0 0.0
          %580 = vmatprep.subr.mxu0 0.0
          %581 = vmatpush1.msra.mxu0 0.0
          %582 = vmatprep.subr.mxu0 0.0
          %583 = vmatpush1.msra.mxu0 0.0
          %584 = vmatprep.subr.mxu0 0.0
          %585 = vmatpush1.msra.mxu0 0.0
          %586 = vmatprep.subr.mxu0 0.0
          %587 = vmatpush1.msra.mxu0 0.0
          %588 = vmatprep.subr.mxu0 0.0
          %589 = vmatpush1.msra.mxu0 0.0
          %590 = vmatprep.subr.mxu0 0.0
          %591 = vmatpush1.msra.mxu0 0.0
          %592 = vmatprep.subr.mxu0 0.0
          %593 = vmatpush1.msra.mxu0 0.0
          %594 = vmatprep.subr.mxu0 0.0
          %595 = vmatpush1.msra.mxu0 0.0
          %596 = vmatprep.subr.mxu0 0.0
          %597 = vmatpush1.msra.mxu0 0.0
          %598 = vmatprep.subr.mxu0 0.0
          %599 = vmatpush1.msra.mxu0 0.0
          %600 = vmatprep.subr.mxu0 0.0
          %601 = vmatpush1.msra.mxu0 0.0
          %602 = vmatprep.subr.mxu0 0.0
          %603 = vmatpush1.msra.mxu0 0.0
          %604 = vmatprep.subr.mxu0 0.0
          %605 = vmatpush1.msra.mxu0 0.0
          %606 = vmatprep.subr.mxu0 0.0
          %607 = vmatpush1.msra.mxu0 0.0
          %608 = vmatprep.subr.mxu0 0.0
          %609 = vmatpush1.msra.mxu0 0.0
          %610 = vmatprep.subr.mxu0 0.0
          %611 = vmatpush1.msra.mxu0 0.0
          %612 = vmatprep.subr.mxu0 0.0
          %613 = vmatpush1.msra.mxu0 0.0
          %614 = vmatprep.subr.mxu0 0.0
          %615 = vmatpush1.msra.mxu0 0.0
          %616 = vmatprep.subr.mxu0 0.0
          %617 = vmatpush1.msra.mxu0 0.0
          %618 = vmatprep.subr.mxu0 0.0
          %619 = vmatpush1.msra.mxu0 0.0
          %620 = vmatprep.subr.mxu0 0.0
          %621 = vmatpush1.msra.mxu0 0.0
          %622 = vmatprep.subr.mxu0 0.0
          %623 = vmatpush1.msra.mxu0 0.0
          %624 = vmatprep.subr.mxu0 0.0
          %625 = vmatpush1.msra.mxu0 0.0
          %626 = vmatprep.subr.mxu0 0.0
          %627 = vmatpush1.msra.mxu0 0.0
          %628 = vmatprep.subr.mxu0 0.0
          %629 = vmatpush1.msra.mxu0 0.0
          %630 = vmatprep.subr.mxu0 0.0
          %631 = vmatpush1.msra.mxu0 0.0
          %632 = vmatprep.subr.mxu0 0.0
          %633 = vmatpush1.msra.mxu0 0.0
          %634 = vmatprep.subr.mxu0 0.0
          %635 = vmatpush1.msra.mxu0 0.0
          %636 = vmatprep.subr.mxu0 0.0
          %637 = vmatpush1.msra.mxu0 0.0
          %638 = vmatprep.mubr.f32.mxu0 0.0
          %639 = vmatmul.mubr.f32.gmra.mrb[0].mxu0 %v551
          %v640 = vpop.f32.mrb[0].mxu0
          %v641 = vadd.f32 0.0, %v640
          %v642 = vpop.f32.mrb[0].mxu0
          %643 = vmatprep.mubr.f32.mxu0 0.0
          %644 = vmatmul.mubr.f32.gmra.mrb[0].mxu0 %v554
          %v645 = vpop.f32.mrb[0].mxu0
          %v646 = vadd.f32 0.0, %v645
          %v647 = vpop.f32.mrb[0].mxu0
          %648 = vmatprep.mubr.f32.mxu0 0.0
          %649 = vmatmul.mubr.f32.gmra.mrb[0].mxu0 %v557
          %v650 = vpop.f32.mrb[0].mxu0
          %v651 = vadd.f32 0.0, %v650
          %v652 = vpop.f32.mrb[0].mxu0
          %653 = vmatprep.mubr.f32.mxu0 0.0
          %654 = vmatmul.mubr.f32.gmra.mrb[0].mxu0 %v560
          %v655 = vpop.f32.mrb[0].mxu0
          %v656 = vadd.f32 0.0, %v655
          %v657 = vpop.f32.mrb[0].mxu0
          %658 = vmatprep.mubr.f32.mxu0 0.0
          %659 = vmatmul.mubr.f32.gmra.mrb[0].mxu0 %v563
          %v660 = vpop.f32.mrb[0].mxu0
          %v661 = vadd.f32 0.0, %v660
          %v662 = vpop.f32.mrb[0].mxu0
          %663 = vmatprep.mubr.f32.mxu0 0.0
          %664 = vmatmul.mubr.f32.gmra.mrb[0].mxu0 %v566
          %v665 = vpop.f32.mrb[0].mxu0
          %v666 = vadd.f32 0.0, %v665
          %v667 = vpop.f32.mrb[0].mxu0
          %668 = vmatprep.mubr.f32.mxu0 0.0
          %669 = vmatmul.mubr.f32.gmra.mrb[0].mxu0 %v569
          %v670 = vpop.f32.mrb[0].mxu0
          %v671 = vadd.f32 0.0, %v670
          %v672 = vpop.f32.mrb[0].mxu0
          %673 = vmatprep.mubr.f32.mxu0 0.0
          %674 = vmatmul.mubr.f32.gmra.mrb[0].mxu0 %v572
          %v675 = vpop.f32.mrb[0].mxu0
          %v676 = vadd.f32 0.0, %v675
          %v677 = vpop.f32.mrb[0].mxu0
          %678 = vdwg.mxu0
          %v679 = vld [vmem:[%s6 + $0x1] sm:$0x1]
          %v680 = vlaneseq
          %v681 = vshrl.u32 %v680, 7
          %v682 = vsub.s32 0, %v681
          %v683 = vrot.slane %v679, %v682
          %v684 = vadd.f32 %v641, %v683
          %v685 = vadd.f32 %v646, %v683
          %v686 = vadd.f32 %v651, %v683
          %v687 = vadd.f32 %v656, %v683
          %v688 = vadd.f32 %v661, %v683
          %v689 = vadd.f32 %v666, %v683
          %v690 = vadd.f32 %v671, %v683
          %v691 = vadd.f32 %v676, %v683
          %v692 = vld [vmem:[%s6 + $0x2] sm:$0x1]
          %v693 = vlaneseq
          %v694 = vshrl.u32 %v693, 7
          %v695 = vsub.s32 0, %v694
          %v696 = vrot.slane %v692, %v695
          %698 = vrot.lane.b32.xlu0 %v696, 32
          %v699 = vpop.permute.xlu0 %698
          %v701 = vadd.f32 %v641, %v699
          %v702 = vadd.f32 %v646, %v699
          %v703 = vadd.f32 %v651, %v699
          %v704 = vadd.f32 %v656, %v699
          %v705 = vadd.f32 %v661, %v699
          %v706 = vadd.f32 %v666, %v699
          %v707 = vadd.f32 %v671, %v699
          %v708 = vadd.f32 %v676, %v699
          %s709 = smul.u32 %s36, 64
          %s710 = scalar_lea.vmem [#allocation6], %s709
          %vm711 = vcmask 261120
          %712 = vst.msk [vmem:[%s710] sm:$0xff] %vm711, %v684
          %713 = vst.msk [vmem:[%s710 + $0x8] sm:$0xff] %vm711, %v685
          %714 = vst.msk [vmem:[%s710 + $0x10] sm:$0xff] %vm711, %v686
          %715 = vst.msk [vmem:[%s710 + $0x18] sm:$0xff] %vm711, %v687
          %716 = vst.msk [vmem:[%s710 + $0x20] sm:$0xff] %vm711, %v688
          %717 = vst.msk [vmem:[%s710 + $0x28] sm:$0xff] %vm711, %v689
          %718 = vst.msk [vmem:[%s710 + $0x30] sm:$0xff] %vm711, %v690
          %719 = vst.msk [vmem:[%s710 + $0x38] sm:$0xff] %vm711, %v691
          %728 = vrot.lane.b32.xlu0 %v701, 96
          %v729 = vpop.permute.xlu0 %728
          %730 = vrot.lane.b32.xlu0 %v702, 96
          %v731 = vpop.permute.xlu0 %730
          %732 = vrot.lane.b32.xlu0 %v703, 96
          %v733 = vpop.permute.xlu0 %732
          %734 = vrot.lane.b32.xlu0 %v704, 96
          %v735 = vpop.permute.xlu0 %734
          %736 = vrot.lane.b32.xlu0 %v705, 96
          %v737 = vpop.permute.xlu0 %736
          %738 = vrot.lane.b32.xlu0 %v706, 96
          %v739 = vpop.permute.xlu0 %738
          %740 = vrot.lane.b32.xlu0 %v707, 96
          %v741 = vpop.permute.xlu0 %740
          %742 = vrot.lane.b32.xlu0 %v708, 96
          %v743 = vpop.permute.xlu0 %742
          %s752 = scalar_lea.vmem [#allocation7], %s709
          %753 = vst.msk [vmem:[%s752] sm:$0xff] %vm711, %v729
          %754 = vst.msk [vmem:[%s752 + $0x8] sm:$0xff] %vm711, %v731
          %755 = vst.msk [vmem:[%s752 + $0x10] sm:$0xff] %vm711, %v733
          %756 = vst.msk [vmem:[%s752 + $0x18] sm:$0xff] %vm711, %v735
          %757 = vst.msk [vmem:[%s752 + $0x20] sm:$0xff] %vm711, %v737
          %758 = vst.msk [vmem:[%s752 + $0x28] sm:$0xff] %vm711, %v739
          %759 = vst.msk [vmem:[%s752 + $0x30] sm:$0xff] %vm711, %v741
          %760 = vst.msk [vmem:[%s752 + $0x38] sm:$0xff] %vm711, %v743
        $region64: #{tpu_custom_call.1} parent=51 // pred_fallthru
          _
        %p761 = scmp.eq.s32.totalorder %s36, 0
        // Predicated region
        $region65: #{tpu_custom_call.1} parent=51 // pred_check
          %p762 = pneg %p761
        $region66: #{tpu_custom_call.1} parent=51 // pred_check_branch
          %764 = sbr.rel (%p762) target = $region68
        $region67: #{tpu_custom_call.1} parent=51 // pred_region
          %v765 = vld [vmem:[%s353] sm:$0xff]
          %v766 = vld [vmem:[%s353 + $0x8] sm:$0xff]
          %v767 = vld [vmem:[%s353 + $0x10] sm:$0xff]
          %v768 = vld [vmem:[%s353 + $0x18] sm:$0xff]
          %v769 = vld [vmem:[%s353 + $0x20] sm:$0xff]
          %v770 = vld [vmem:[%s353 + $0x28] sm:$0xff]
          %v771 = vld [vmem:[%s353 + $0x30] sm:$0xff]
          %v772 = vld [vmem:[%s353 + $0x38] sm:$0xff]
          %vm773 = vcmask 130048
          %v774 = vsel %vm773, %v765, 0.0
          %775 = vadd.xlane.f32.xlu0 %v774
          %v776 = vpop.xlane.xlu0 %775
          %v777 = vsel %vm773, %v766, 0.0
          %778 = vadd.xlane.f32.xlu0 %v777
          %v779 = vpop.xlane.xlu0 %778
          %v780 = vsel %vm773, %v767, 0.0
          %781 = vadd.xlane.f32.xlu0 %v780
          %v782 = vpop.xlane.xlu0 %781
          %v783 = vsel %vm773, %v768, 0.0
          %784 = vadd.xlane.f32.xlu0 %v783
          %v785 = vpop.xlane.xlu0 %784
          %v786 = vsel %vm773, %v769, 0.0
          %787 = vadd.xlane.f32.xlu0 %v786
          %v788 = vpop.xlane.xlu0 %787
          %v789 = vsel %vm773, %v770, 0.0
          %790 = vadd.xlane.f32.xlu0 %v789
          %v791 = vpop.xlane.xlu0 %790
          %v792 = vsel %vm773, %v771, 0.0
          %793 = vadd.xlane.f32.xlu0 %v792
          %v794 = vpop.xlane.xlu0 %793
          %v795 = vsel %vm773, %v772, 0.0
          %796 = vadd.xlane.f32.xlu0 %v795
          %v797 = vpop.xlane.xlu0 %796
          %v798 = vrcp.pop 16.0
          %v799 = vmul.f32 %v776, %v798
          %v800 = vmul.f32 %v779, %v798
          %v801 = vmul.f32 %v782, %v798
          %v802 = vmul.f32 %v785, %v798
          %v803 = vmul.f32 %v788, %v798
          %v804 = vmul.f32 %v791, %v798
          %v805 = vmul.f32 %v794, %v798
          %v806 = vmul.f32 %v797, %v798
          %v807 = vsub.f32 %v765, %v799
          %v808 = vsub.f32 %v766, %v800
          %v809 = vsub.f32 %v767, %v801
          %v810 = vsub.f32 %v768, %v802
          %v811 = vsub.f32 %v769, %v803
          %v812 = vsub.f32 %v770, %v804
          %v813 = vsub.f32 %v771, %v805
          %v814 = vsub.f32 %v772, %v806
          %v815 = vmul.f32 %v807, %v807
          %v816 = vmul.f32 %v808, %v808
          %v817 = vmul.f32 %v809, %v809
          %v818 = vmul.f32 %v810, %v810
          %v819 = vmul.f32 %v811, %v811
          %v820 = vmul.f32 %v812, %v812
          %v821 = vmul.f32 %v813, %v813
          %v822 = vmul.f32 %v814, %v814
          %v823 = vsel %vm773, %v815, 0.0
          %824 = vadd.xlane.f32.xlu0 %v823
          %v825 = vpop.xlane.xlu0 %824
          %v826 = vsel %vm773, %v816, 0.0
          %827 = vadd.xlane.f32.xlu0 %v826
          %v828 = vpop.xlane.xlu0 %827
          %v829 = vsel %vm773, %v817, 0.0
          %830 = vadd.xlane.f32.xlu0 %v829
          %v831 = vpop.xlane.xlu0 %830
          %v832 = vsel %vm773, %v818, 0.0
          %833 = vadd.xlane.f32.xlu0 %v832
          %v834 = vpop.xlane.xlu0 %833
          %v835 = vsel %vm773, %v819, 0.0
          %836 = vadd.xlane.f32.xlu0 %v835
          %v837 = vpop.xlane.xlu0 %836
          %v838 = vsel %vm773, %v820, 0.0
          %839 = vadd.xlane.f32.xlu0 %v838
          %v840 = vpop.xlane.xlu0 %839
          %v841 = vsel %vm773, %v821, 0.0
          %842 = vadd.xlane.f32.xlu0 %v841
          %v843 = vpop.xlane.xlu0 %842
          %v844 = vsel %vm773, %v822, 0.0
          %845 = vadd.xlane.f32.xlu0 %v844
          %v846 = vpop.xlane.xlu0 %845
          %v847 = vmul.f32 %v825, %v798
          %v848 = vmul.f32 %v828, %v798
          %v849 = vmul.f32 %v831, %v798
          %v850 = vmul.f32 %v834, %v798
          %v851 = vmul.f32 %v837, %v798
          %v852 = vmul.f32 %v840, %v798
          %v853 = vmul.f32 %v843, %v798
          %v854 = vmul.f32 %v846, %v798
          %v855 = vadd.f32 %v847, 1e-05
          %v856 = vadd.f32 %v848, 1e-05
          %v857 = vadd.f32 %v849, 1e-05
          %v858 = vadd.f32 %v850, 1e-05
          %v859 = vadd.f32 %v851, 1e-05
          %v860 = vadd.f32 %v852, 1e-05
          %v861 = vadd.f32 %v853, 1e-05
          %v862 = vadd.f32 %v854, 1e-05
          %v863 = vrsqrt.pop %v855
          %v864 = vrsqrt.pop %v856
          %v865 = vrsqrt.pop %v857
          %v866 = vrsqrt.pop %v858
          %v867 = vrsqrt.pop %v859
          %v868 = vrsqrt.pop %v860
          %v869 = vrsqrt.pop %v861
          %v870 = vrsqrt.pop %v862
          %v871 = vmul.f32 %v807, %v863
          %v872 = vmul.f32 %v808, %v864
          %v873 = vmul.f32 %v809, %v865
          %v874 = vmul.f32 %v810, %v866
          %v875 = vmul.f32 %v811, %v867
          %v876 = vmul.f32 %v812, %v868
          %v877 = vmul.f32 %v813, %v869
          %v878 = vmul.f32 %v814, %v870
          %v879 = vlaneseq
          %v880 = vshrl.u32 %v879, 7
          %v881 = vsub.s32 0, %v880
          %v882 = vrot.slane %v404, %v881
          %v883 = vmul.f32 %v871, %v882
          %v884 = vmul.f32 %v872, %v882
          %v885 = vmul.f32 %v873, %v882
          %v886 = vmul.f32 %v874, %v882
          %v887 = vmul.f32 %v875, %v882
          %v888 = vmul.f32 %v876, %v882
          %v889 = vmul.f32 %v877, %v882
          %v890 = vmul.f32 %v878, %v882
          %v891 = vlaneseq
          %v892 = vshrl.u32 %v891, 7
          %v893 = vsub.s32 0, %v892
          %v894 = vrot.slane %v405, %v893
          %v895 = vadd.f32 %v883, %v894
          %v896 = vadd.f32 %v884, %v894
          %v897 = vadd.f32 %v885, %v894
          %v898 = vadd.f32 %v886, %v894
          %v899 = vadd.f32 %v887, %v894
          %v900 = vadd.f32 %v888, %v894
          %v901 = vadd.f32 %v889, %v894
          %v902 = vadd.f32 %v890, %v894
          %v903 = vld [vmem:[%s2] sm:$0xff]
          %v904 = vld [vmem:[%s2 + $0x8] sm:$0xff]
          %v905 = vld [vmem:[%s6] sm:$0x1]
          %v906 = vlaneseq
          %v907 = vshrl.u32 %v906, 7
          %v908 = vsub.s32 0, %v907
          %v909 = vrot.slane %v905, %v908
          %v911 = vsel %vm773, %v895, 0
          %v914 = vsel %vm773, %v896, 0
          %v917 = vsel %vm773, %v897, 0
          %v920 = vsel %vm773, %v898, 0
          %v923 = vsel %vm773, %v899, 0
          %v926 = vsel %vm773, %v900, 0
          %v929 = vsel %vm773, %v901, 0
          %v932 = vsel %vm773, %v902, 0
          %934 = vmatprep.subr.mxu0 0.0
          %935 = vmatpush1.msra.mxu0 %v903
          %936 = vmatprep.subr.mxu0 0.0
          %937 = vmatpush1.msra.mxu0 %v904
          %938 = vmatprep.subr.mxu0 0.0
          %939 = vmatpush1.msra.mxu0 0.0
          %940 = vmatprep.subr.mxu0 0.0
          %941 = vmatpush1.msra.mxu0 0.0
          %942 = vmatprep.subr.mxu0 0.0
          %943 = vmatpush1.msra.mxu0 0.0
          %944 = vmatprep.subr.mxu0 0.0
          %945 = vmatpush1.msra.mxu0 0.0
          %946 = vmatprep.subr.mxu0 0.0
          %947 = vmatpush1.msra.mxu0 0.0
          %948 = vmatprep.subr.mxu0 0.0
          %949 = vmatpush1.msra.mxu0 0.0
          %950 = vmatprep.subr.mxu0 0.0
          %951 = vmatpush1.msra.mxu0 0.0
          %952 = vmatprep.subr.mxu0 0.0
          %953 = vmatpush1.msra.mxu0 0.0
          %954 = vmatprep.subr.mxu0 0.0
          %955 = vmatpush1.msra.mxu0 0.0
          %956 = vmatprep.subr.mxu0 0.0
          %957 = vmatpush1.msra.mxu0 0.0
          %958 = vmatprep.subr.mxu0 0.0
          %959 = vmatpush1.msra.mxu0 0.0
          %960 = vmatprep.subr.mxu0 0.0
          %961 = vmatpush1.msra.mxu0 0.0
          %962 = vmatprep.subr.mxu0 0.0
          %963 = vmatpush1.msra.mxu0 0.0
          %964 = vmatprep.subr.mxu0 0.0
          %965 = vmatpush1.msra.mxu0 0.0
          %966 = vmatprep.subr.mxu0 0.0
          %967 = vmatpush1.msra.mxu0 0.0
          %968 = vmatprep.subr.mxu0 0.0
          %969 = vmatpush1.msra.mxu0 0.0
          %970 = vmatprep.subr.mxu0 0.0
          %971 = vmatpush1.msra.mxu0 0.0
          %972 = vmatprep.subr.mxu0 0.0
          %973 = vmatpush1.msra.mxu0 0.0
          %974 = vmatprep.subr.mxu0 0.0
          %975 = vmatpush1.msra.mxu0 0.0
          %976 = vmatprep.subr.mxu0 0.0
          %977 = vmatpush1.msra.mxu0 0.0
          %978 = vmatprep.subr.mxu0 0.0
          %979 = vmatpush1.msra.mxu0 0.0
          %980 = vmatprep.subr.mxu0 0.0
          %981 = vmatpush1.msra.mxu0 0.0
          %982 = vmatprep.subr.mxu0 0.0
          %983 = vmatpush1.msra.mxu0 0.0
          %984 = vmatprep.subr.mxu0 0.0
          %985 = vmatpush1.msra.mxu0 0.0
          %986 = vmatprep.subr.mxu0 0.0
          %987 = vmatpush1.msra.mxu0 0.0
          %988 = vmatprep.subr.mxu0 0.0
          %989 = vmatpush1.msra.mxu0 0.0
          %990 = vmatprep.subr.mxu0 0.0
          %991 = vmatpush1.msra.mxu0 0.0
          %992 = vmatprep.subr.mxu0 0.0
          %993 = vmatpush1.msra.mxu0 0.0
          %994 = vmatprep.subr.mxu0 0.0
          %995 = vmatpush1.msra.mxu0 0.0
          %996 = vmatprep.subr.mxu0 0.0
          %997 = vmatpush1.msra.mxu0 0.0
          %998 = vmatprep.mubr.f32.mxu0 0.0
          %999 = vmatmul.mubr.f32.gmra.mrb[0].mxu0 %v911
          %v1000 = vpop.f32.mrb[0].mxu0
          %v1001 = vadd.f32 %v909, %v1000
          %v1002 = vpop.f32.mrb[0].mxu0
          %1003 = vmatprep.mubr.f32.mxu0 0.0
          %1004 = vmatmul.mubr.f32.gmra.mrb[0].mxu0 %v914
          %v1005 = vpop.f32.mrb[0].mxu0
          %v1006 = vadd.f32 %v909, %v1005
          %v1007 = vpop.f32.mrb[0].mxu0
          %1008 = vmatprep.mubr.f32.mxu0 0.0
          %1009 = vmatmul.mubr.f32.gmra.mrb[0].mxu0 %v917
          %v1010 = vpop.f32.mrb[0].mxu0
          %v1011 = vadd.f32 %v909, %v1010
          %v1012 = vpop.f32.mrb[0].mxu0
          %1013 = vmatprep.mubr.f32.mxu0 0.0
          %1014 = vmatmul.mubr.f32.gmra.mrb[0].mxu0 %v920
          %v1015 = vpop.f32.mrb[0].mxu0
          %v1016 = vadd.f32 %v909, %v1015
          %v1017 = vpop.f32.mrb[0].mxu0
          %1018 = vmatprep.mubr.f32.mxu0 0.0
          %1019 = vmatmul.mubr.f32.gmra.mrb[0].mxu0 %v923
          %v1020 = vpop.f32.mrb[0].mxu0
          %v1021 = vadd.f32 %v909, %v1020
          %v1022 = vpop.f32.mrb[0].mxu0
          %1023 = vmatprep.mubr.f32.mxu0 0.0
          %1024 = vmatmul.mubr.f32.gmra.mrb[0].mxu0 %v926
          %v1025 = vpop.f32.mrb[0].mxu0
          %v1026 = vadd.f32 %v909, %v1025
          %v1027 = vpop.f32.mrb[0].mxu0
          %1028 = vmatprep.mubr.f32.mxu0 0.0
          %1029 = vmatmul.mubr.f32.gmra.mrb[0].mxu0 %v929
          %v1030 = vpop.f32.mrb[0].mxu0
          %v1031 = vadd.f32 %v909, %v1030
          %v1032 = vpop.f32.mrb[0].mxu0
          %1033 = vmatprep.mubr.f32.mxu0 0.0
          %1034 = vmatmul.mubr.f32.gmra.mrb[0].mxu0 %v932
          %v1035 = vpop.f32.mrb[0].mxu0
          %v1036 = vadd.f32 %v909, %v1035
          %v1037 = vpop.f32.mrb[0].mxu0
          %1038 = vdwg.mxu0
          %v1039 = vmul.f32 %v1001, 0.17677669
          %v1040 = vmul.f32 %v1006, 0.17677669
          %v1041 = vmul.f32 %v1011, 0.17677669
          %v1042 = vmul.f32 %v1016, 0.17677669
          %v1043 = vmul.f32 %v1021, 0.17677669
          %v1044 = vmul.f32 %v1026, 0.17677669
          %v1045 = vmul.f32 %v1031, 0.17677669
          %v1046 = vmul.f32 %v1036, 0.17677669
          %vm1047 = vcmask 261120
          %1048 = vst.msk [vmem:[#allocation2] sm:$0xff] %vm1047, %v1039
          %1049 = vst.msk [vmem:[#allocation2 + $0x8] sm:$0xff] %vm1047, %v1040
          %1050 = vst.msk [vmem:[#allocation2 + $0x10] sm:$0xff] %vm1047, %v1041
          %1051 = vst.msk [vmem:[#allocation2 + $0x18] sm:$0xff] %vm1047, %v1042
          %1052 = vst.msk [vmem:[#allocation2 + $0x20] sm:$0xff] %vm1047, %v1043
          %1053 = vst.msk [vmem:[#allocation2 + $0x28] sm:$0xff] %vm1047, %v1044
          %1054 = vst.msk [vmem:[#allocation2 + $0x30] sm:$0xff] %vm1047, %v1045
          %1055 = vst.msk [vmem:[#allocation2 + $0x38] sm:$0xff] %vm1047, %v1046
          %vm1056 = vcmask 7168
          %1057 = vst.msk [vmem:[#allocation3] sm:$0xff] %vm1056, -inf
          %1058 = vst.msk [vmem:[#allocation3 + $0x8] sm:$0xff] %vm1056, -inf
          %1059 = vst.msk [vmem:[#allocation3 + $0x10] sm:$0xff] %vm1056, -inf
          %1060 = vst.msk [vmem:[#allocation3 + $0x18] sm:$0xff] %vm1056, -inf
          %1061 = vst.msk [vmem:[#allocation3 + $0x20] sm:$0xff] %vm1056, -inf
          %1062 = vst.msk [vmem:[#allocation3 + $0x28] sm:$0xff] %vm1056, -inf
          %1063 = vst.msk [vmem:[#allocation3 + $0x30] sm:$0xff] %vm1056, -inf
          %1064 = vst.msk [vmem:[#allocation3 + $0x38] sm:$0xff] %vm1056, -inf
          %1065 = vst.msk [vmem:[#allocation4] sm:$0xff] %vm1056, 0.0
          %1066 = vst.msk [vmem:[#allocation4 + $0x8] sm:$0xff] %vm1056, 0.0
          %1067 = vst.msk [vmem:[#allocation4 + $0x10] sm:$0xff] %vm1056, 0.0
          %1068 = vst.msk [vmem:[#allocation4 + $0x18] sm:$0xff] %vm1056, 0.0
          %1069 = vst.msk [vmem:[#allocation4 + $0x20] sm:$0xff] %vm1056, 0.0
          %1070 = vst.msk [vmem:[#allocation4 + $0x28] sm:$0xff] %vm1056, 0.0
          %1071 = vst.msk [vmem:[#allocation4 + $0x30] sm:$0xff] %vm1056, 0.0
          %1072 = vst.msk [vmem:[#allocation4 + $0x38] sm:$0xff] %vm1056, 0.0
          %1073 = vst.msk [vmem:[#allocation5] sm:$0xff] %vm1047, 0.0
          %1074 = vst.msk [vmem:[#allocation5 + $0x8] sm:$0xff] %vm1047, 0.0
          %1075 = vst.msk [vmem:[#allocation5 + $0x10] sm:$0xff] %vm1047, 0.0
          %1076 = vst.msk [vmem:[#allocation5 + $0x18] sm:$0xff] %vm1047, 0.0
          %1077 = vst.msk [vmem:[#allocation5 + $0x20] sm:$0xff] %vm1047, 0.0
          %1078 = vst.msk [vmem:[#allocation5 + $0x28] sm:$0xff] %vm1047, 0.0
          %1079 = vst.msk [vmem:[#allocation5 + $0x30] sm:$0xff] %vm1047, 0.0
          %1080 = vst.msk [vmem:[#allocation5 + $0x38] sm:$0xff] %vm1047, 0.0
        $region68: #{tpu_custom_call.1} parent=51 // pred_fallthru
          _
        %s1081 = smul.u32 %s36, 64
        %s1082 = scalar_lea.vmem [#allocation6], %s1081
        %v1083 = vld [vmem:[%s1082] sm:$0xff]
        %v1084 = vld [vmem:[%s1082 + $0x8] sm:$0xff]
        %v1085 = vld [vmem:[%s1082 + $0x10] sm:$0xff]
        %v1086 = vld [vmem:[%s1082 + $0x18] sm:$0xff]
        %v1087 = vld [vmem:[%s1082 + $0x20] sm:$0xff]
        %v1088 = vld [vmem:[%s1082 + $0x28] sm:$0xff]
        %v1089 = vld [vmem:[%s1082 + $0x30] sm:$0xff]
        %v1090 = vld [vmem:[%s1082 + $0x38] sm:$0xff]
        %s1091 = scalar_lea.vmem [#allocation7], %s1081
        %v1092 = vld [vmem:[%s1091] sm:$0xff]
        %v1093 = vld [vmem:[%s1091 + $0x8] sm:$0xff]
        %v1094 = vld [vmem:[%s1091 + $0x10] sm:$0xff]
        %v1095 = vld [vmem:[%s1091 + $0x18] sm:$0xff]
        %v1096 = vld [vmem:[%s1091 + $0x20] sm:$0xff]
        %v1097 = vld [vmem:[%s1091 + $0x28] sm:$0xff]
        %v1098 = vld [vmem:[%s1091 + $0x30] sm:$0xff]
        %v1099 = vld [vmem:[%s1091 + $0x38] sm:$0xff]
        %v1100 = vld [vmem:[#allocation2] sm:$0xff]
        %v1101 = vld [vmem:[#allocation2 + $0x8] sm:$0xff]
        %v1102 = vld [vmem:[#allocation2 + $0x10] sm:$0xff]
        %v1103 = vld [vmem:[#allocation2 + $0x18] sm:$0xff]
        %v1104 = vld [vmem:[#allocation2 + $0x20] sm:$0xff]
        %v1105 = vld [vmem:[#allocation2 + $0x28] sm:$0xff]
        %v1106 = vld [vmem:[#allocation2 + $0x30] sm:$0xff]
        %v1107 = vld [vmem:[#allocation2 + $0x38] sm:$0xff]
        %vm1108 = vcmask 261120
        %v1110 = vsel %vm1108, %v1100, 0
        %v1113 = vsel %vm1108, %v1083, 0
        %1115 = vmatprep.subr.mxu0 0.0
        %1116 = vmatpush1.xpose.msra.mxu0 %v1113
        %1117 = vmatprep.subr.mxu0 0.0
        %1118 = vmatpush1.xpose.msra.mxu0 0.0
        %1119 = vmatprep.subr.mxu0 0.0
        %1120 = vmatpush1.xpose.msra.mxu0 0.0
        %1121 = vmatprep.subr.mxu0 0.0
        %1122 = vmatpush1.xpose.msra.mxu0 0.0
        %1123 = vmatprep.subr.mxu0 0.0
        %1124 = vmatpush1.xpose.msra.mxu0 0.0
        %1125 = vmatprep.subr.mxu0 0.0
        %1126 = vmatpush1.xpose.msra.mxu0 0.0
        %1127 = vmatprep.subr.mxu0 0.0
        %1128 = vmatpush1.xpose.msra.mxu0 0.0
        %1129 = vmatprep.subr.mxu0 0.0
        %1130 = vmatpush1.xpose.msra.mxu0 0.0
        %1131 = vmatprep.subr.mxu0 0.0
        %1132 = vmatpush1.xpose.msra.mxu0 0.0
        %1133 = vmatprep.subr.mxu0 0.0
        %1134 = vmatpush1.xpose.msra.mxu0 0.0
        %1135 = vmatprep.subr.mxu0 0.0
        %1136 = vmatpush1.xpose.msra.mxu0 0.0
        %1137 = vmatprep.subr.mxu0 0.0
        %1138 = vmatpush1.xpose.msra.mxu0 0.0
        %1139 = vmatprep.subr.mxu0 0.0
        %1140 = vmatpush1.xpose.msra.mxu0 0.0
        %1141 = vmatprep.subr.mxu0 0.0
        %1142 = vmatpush1.xpose.msra.mxu0 0.0
        %1143 = vmatprep.subr.mxu0 0.0
        %1144 = vmatpush1.xpose.msra.mxu0 0.0
        %1145 = vmatprep.subr.mxu0 0.0
        %1146 = vmatpush1.xpose.msra.mxu0 0.0
        %1147 = vmatprep.subr.mxu0 0.0
        %1148 = vmatpush1.xpose.msra.mxu0 0.0
        %1149 = vmatprep.subr.mxu0 0.0
        %1150 = vmatpush1.xpose.msra.mxu0 0.0
        %1151 = vmatprep.subr.mxu0 0.0
        %1152 = vmatpush1.xpose.msra.mxu0 0.0
        %1153 = vmatprep.subr.mxu0 0.0
        %1154 = vmatpush1.xpose.msra.mxu0 0.0
        %1155 = vmatprep.subr.mxu0 0.0
        %1156 = vmatpush1.xpose.msra.mxu0 0.0
        %1157 = vmatprep.subr.mxu0 0.0
        %1158 = vmatpush1.xpose.msra.mxu0 0.0
        %1159 = vmatprep.subr.mxu0 0.0
        %1160 = vmatpush1.xpose.msra.mxu0 0.0
        %1161 = vmatprep.subr.mxu0 0.0
        %1162 = vmatpush1.xpose.msra.mxu0 0.0
        %1163 = vmatprep.subr.mxu0 0.0
        %1164 = vmatpush1.xpose.msra.mxu0 0.0
        %1165 = vmatprep.subr.mxu0 0.0
        %1166 = vmatpush1.xpose.msra.mxu0 0.0
        %1167 = vmatprep.subr.mxu0 0.0
        %1168 = vmatpush1.xpose.msra.mxu0 0.0
        %1169 = vmatprep.subr.mxu0 0.0
        %1170 = vmatpush1.xpose.msra.mxu0 0.0
        %1171 = vmatprep.subr.mxu0 0.0
        %1172 = vmatpush1.xpose.msra.mxu0 0.0
        %1173 = vmatprep.subr.mxu0 0.0
        %1174 = vmatpush1.xpose.msra.mxu0 0.0
        %1175 = vmatprep.subr.mxu0 0.0
        %1176 = vmatpush1.xpose.msra.mxu0 0.0
        %1177 = vmatprep.subr.mxu0 0.0
        %1178 = vmatpush1.xpose.msra.mxu0 0.0
        %1179 = vmatprep.mubr.f32.mxu0 0.0
        %1180 = vmatmul.mubr.f32.gmra.mrb[0].mxu0 %v1110
        %v1181 = vpop.f32.mrb[0].mxu0
        %v1182 = vadd.f32 0.0, %v1181
        %v1183 = vpop.f32.mrb[0].mxu0
        %1184 = vdwg.mxu0
        %v1186 = vsel %vm1108, %v1101, 0
        %v1189 = vsel %vm1108, %v1084, 0
        %1191 = vmatprep.subr.mxu0 0.0
        %1192 = vmatpush1.xpose.msra.mxu0 %v1189
        %1193 = vmatprep.subr.mxu0 0.0
        %1194 = vmatpush1.xpose.msra.mxu0 0.0
        %1195 = vmatprep.subr.mxu0 0.0
        %1196 = vmatpush1.xpose.msra.mxu0 0.0
        %1197 = vmatprep.subr.mxu0 0.0
        %1198 = vmatpush1.xpose.msra.mxu0 0.0
        %1199 = vmatprep.subr.mxu0 0.0
        %1200 = vmatpush1.xpose.msra.mxu0 0.0
        %1201 = vmatprep.subr.mxu0 0.0
        %1202 = vmatpush1.xpose.msra.mxu0 0.0
        %1203 = vmatprep.subr.mxu0 0.0
        %1204 = vmatpush1.xpose.msra.mxu0 0.0
        %1205 = vmatprep.subr.mxu0 0.0
        %1206 = vmatpush1.xpose.msra.mxu0 0.0
        %1207 = vmatprep.subr.mxu0 0.0
        %1208 = vmatpush1.xpose.msra.mxu0 0.0
        %1209 = vmatprep.subr.mxu0 0.0
        %1210 = vmatpush1.xpose.msra.mxu0 0.0
        %1211 = vmatprep.subr.mxu0 0.0
        %1212 = vmatpush1.xpose.msra.mxu0 0.0
        %1213 = vmatprep.subr.mxu0 0.0
        %1214 = vmatpush1.xpose.msra.mxu0 0.0
        %1215 = vmatprep.subr.mxu0 0.0
        %1216 = vmatpush1.xpose.msra.mxu0 0.0
        %1217 = vmatprep.subr.mxu0 0.0
        %1218 = vmatpush1.xpose.msra.mxu0 0.0
        %1219 = vmatprep.subr.mxu0 0.0
        %1220 = vmatpush1.xpose.msra.mxu0 0.0
        %1221 = vmatprep.subr.mxu0 0.0
        %1222 = vmatpush1.xpose.msra.mxu0 0.0
        %1223 = vmatprep.subr.mxu0 0.0
        %1224 = vmatpush1.xpose.msra.mxu0 0.0
        %1225 = vmatprep.subr.mxu0 0.0
        %1226 = vmatpush1.xpose.msra.mxu0 0.0
        %1227 = vmatprep.subr.mxu0 0.0
        %1228 = vmatpush1.xpose.msra.mxu0 0.0
        %1229 = vmatprep.subr.mxu0 0.0
        %1230 = vmatpush1.xpose.msra.mxu0 0.0
        %1231 = vmatprep.subr.mxu0 0.0
        %1232 = vmatpush1.xpose.msra.mxu0 0.0
        %1233 = vmatprep.subr.mxu0 0.0
        %1234 = vmatpush1.xpose.msra.mxu0 0.0
        %1235 = vmatprep.subr.mxu0 0.0
        %1236 = vmatpush1.xpose.msra.mxu0 0.0
        %1237 = vmatprep.subr.mxu0 0.0
        %1238 = vmatpush1.xpose.msra.mxu0 0.0
        %1239 = vmatprep.subr.mxu0 0.0
        %1240 = vmatpush1.xpose.msra.mxu0 0.0
        %1241 = vmatprep.subr.mxu0 0.0
        %1242 = vmatpush1.xpose.msra.mxu0 0.0
        %1243 = vmatprep.subr.mxu0 0.0
        %1244 = vmatpush1.xpose.msra.mxu0 0.0
        %1245 = vmatprep.subr.mxu0 0.0
        %1246 = vmatpush1.xpose.msra.mxu0 0.0
        %1247 = vmatprep.subr.mxu0 0.0
        %1248 = vmatpush1.xpose.msra.mxu0 0.0
        %1249 = vmatprep.subr.mxu0 0.0
        %1250 = vmatpush1.xpose.msra.mxu0 0.0
        %1251 = vmatprep.subr.mxu0 0.0
        %1252 = vmatpush1.xpose.msra.mxu0 0.0
        %1253 = vmatprep.subr.mxu0 0.0
        %1254 = vmatpush1.xpose.msra.mxu0 0.0
        %1255 = vmatprep.mubr.f32.mxu0 0.0
        %1256 = vmatmul.mubr.f32.gmra.mrb[0].mxu0 %v1186
        %v1257 = vpop.f32.mrb[0].mxu0
        %v1258 = vadd.f32 0.0, %v1257
        %v1259 = vpop.f32.mrb[0].mxu0
        %1260 = vdwg.mxu0
        %v1262 = vsel %vm1108, %v1102, 0
        %v1265 = vsel %vm1108, %v1085, 0
        %1267 = vmatprep.subr.mxu0 0.0
        %1268 = vmatpush1.xpose.msra.mxu0 %v1265
        %1269 = vmatprep.subr.mxu0 0.0
        %1270 = vmatpush1.xpose.msra.mxu0 0.0
        %1271 = vmatprep.subr.mxu0 0.0
        %1272 = vmatpush1.xpose.msra.mxu0 0.0
        %1273 = vmatprep.subr.mxu0 0.0
        %1274 = vmatpush1.xpose.msra.mxu0 0.0
        %1275 = vmatprep.subr.mxu0 0.0
        %1276 = vmatpush1.xpose.msra.mxu0 0.0
        %1277 = vmatprep.subr.mxu0 0.0
        %1278 = vmatpush1.xpose.msra.mxu0 0.0
        %1279 = vmatprep.subr.mxu0 0.0
        %1280 = vmatpush1.xpose.msra.mxu0 0.0
        %1281 = vmatprep.subr.mxu0 0.0
        %1282 = vmatpush1.xpose.msra.mxu0 0.0
        %1283 = vmatprep.subr.mxu0 0.0
        %1284 = vmatpush1.xpose.msra.mxu0 0.0
        %1285 = vmatprep.subr.mxu0 0.0
        %1286 = vmatpush1.xpose.msra.mxu0 0.0
        %1287 = vmatprep.subr.mxu0 0.0
        %1288 = vmatpush1.xpose.msra.mxu0 0.0
        %1289 = vmatprep.subr.mxu0 0.0
        %1290 = vmatpush1.xpose.msra.mxu0 0.0
        %1291 = vmatprep.subr.mxu0 0.0
        %1292 = vmatpush1.xpose.msra.mxu0 0.0
        %1293 = vmatprep.subr.mxu0 0.0
        %1294 = vmatpush1.xpose.msra.mxu0 0.0
        %1295 = vmatprep.subr.mxu0 0.0
        %1296 = vmatpush1.xpose.msra.mxu0 0.0
        %1297 = vmatprep.subr.mxu0 0.0
        %1298 = vmatpush1.xpose.msra.mxu0 0.0
        %1299 = vmatprep.subr.mxu0 0.0
        %1300 = vmatpush1.xpose.msra.mxu0 0.0
        %1301 = vmatprep.subr.mxu0 0.0
        %1302 = vmatpush1.xpose.msra.mxu0 0.0
        %1303 = vmatprep.subr.mxu0 0.0
        %1304 = vmatpush1.xpose.msra.mxu0 0.0
        %1305 = vmatprep.subr.mxu0 0.0
        %1306 = vmatpush1.xpose.msra.mxu0 0.0
        %1307 = vmatprep.subr.mxu0 0.0
        %1308 = vmatpush1.xpose.msra.mxu0 0.0
        %1309 = vmatprep.subr.mxu0 0.0
        %1310 = vmatpush1.xpose.msra.mxu0 0.0
        %1311 = vmatprep.subr.mxu0 0.0
        %1312 = vmatpush1.xpose.msra.mxu0 0.0
        %1313 = vmatprep.subr.mxu0 0.0
        %1314 = vmatpush1.xpose.msra.mxu0 0.0
        %1315 = vmatprep.subr.mxu0 0.0
        %1316 = vmatpush1.xpose.msra.mxu0 0.0
        %1317 = vmatprep.subr.mxu0 0.0
        %1318 = vmatpush1.xpose.msra.mxu0 0.0
        %1319 = vmatprep.subr.mxu0 0.0
        %1320 = vmatpush1.xpose.msra.mxu0 0.0
        %1321 = vmatprep.subr.mxu0 0.0
        %1322 = vmatpush1.xpose.msra.mxu0 0.0
        %1323 = vmatprep.subr.mxu0 0.0
        %1324 = vmatpush1.xpose.msra.mxu0 0.0
        %1325 = vmatprep.subr.mxu0 0.0
        %1326 = vmatpush1.xpose.msra.mxu0 0.0
        %1327 = vmatprep.subr.mxu0 0.0
        %1328 = vmatpush1.xpose.msra.mxu0 0.0
        %1329 = vmatprep.subr.mxu0 0.0
        %1330 = vmatpush1.xpose.msra.mxu0 0.0
        %1331 = vmatprep.mubr.f32.mxu0 0.0
        %1332 = vmatmul.mubr.f32.gmra.mrb[0].mxu0 %v1262
        %v1333 = vpop.f32.mrb[0].mxu0
        %v1334 = vadd.f32 0.0, %v1333
        %v1335 = vpop.f32.mrb[0].mxu0
        %1336 = vdwg.mxu0
        %v1338 = vsel %vm1108, %v1103, 0
        %v1341 = vsel %vm1108, %v1086, 0
        %1343 = vmatprep.subr.mxu0 0.0
        %1344 = vmatpush1.xpose.msra.mxu0 %v1341
        %1345 = vmatprep.subr.mxu0 0.0
        %1346 = vmatpush1.xpose.msra.mxu0 0.0
        %1347 = vmatprep.subr.mxu0 0.0
        %1348 = vmatpush1.xpose.msra.mxu0 0.0
        %1349 = vmatprep.subr.mxu0 0.0
        %1350 = vmatpush1.xpose.msra.mxu0 0.0
        %1351 = vmatprep.subr.mxu0 0.0
        %1352 = vmatpush1.xpose.msra.mxu0 0.0
        %1353 = vmatprep.subr.mxu0 0.0
        %1354 = vmatpush1.xpose.msra.mxu0 0.0
        %1355 = vmatprep.subr.mxu0 0.0
        %1356 = vmatpush1.xpose.msra.mxu0 0.0
        %1357 = vmatprep.subr.mxu0 0.0
        %1358 = vmatpush1.xpose.msra.mxu0 0.0
        %1359 = vmatprep.subr.mxu0 0.0
        %1360 = vmatpush1.xpose.msra.mxu0 0.0
        %1361 = vmatprep.subr.mxu0 0.0
        %1362 = vmatpush1.xpose.msra.mxu0 0.0
        %1363 = vmatprep.subr.mxu0 0.0
        %1364 = vmatpush1.xpose.msra.mxu0 0.0
        %1365 = vmatprep.subr.mxu0 0.0
        %1366 = vmatpush1.xpose.msra.mxu0 0.0
        %1367 = vmatprep.subr.mxu0 0.0
        %1368 = vmatpush1.xpose.msra.mxu0 0.0
        %1369 = vmatprep.subr.mxu0 0.0
        %1370 = vmatpush1.xpose.msra.mxu0 0.0
        %1371 = vmatprep.subr.mxu0 0.0
        %1372 = vmatpush1.xpose.msra.mxu0 0.0
        %1373 = vmatprep.subr.mxu0 0.0
        %1374 = vmatpush1.xpose.msra.mxu0 0.0
        %1375 = vmatprep.subr.mxu0 0.0
        %1376 = vmatpush1.xpose.msra.mxu0 0.0
        %1377 = vmatprep.subr.mxu0 0.0
        %1378 = vmatpush1.xpose.msra.mxu0 0.0
        %1379 = vmatprep.subr.mxu0 0.0
        %1380 = vmatpush1.xpose.msra.mxu0 0.0
        %1381 = vmatprep.subr.mxu0 0.0
        %1382 = vmatpush1.xpose.msra.mxu0 0.0
        %1383 = vmatprep.subr.mxu0 0.0
        %1384 = vmatpush1.xpose.msra.mxu0 0.0
        %1385 = vmatprep.subr.mxu0 0.0
        %1386 = vmatpush1.xpose.msra.mxu0 0.0
        %1387 = vmatprep.subr.mxu0 0.0
        %1388 = vmatpush1.xpose.msra.mxu0 0.0
        %1389 = vmatprep.subr.mxu0 0.0
        %1390 = vmatpush1.xpose.msra.mxu0 0.0
        %1391 = vmatprep.subr.mxu0 0.0
        %1392 = vmatpush1.xpose.msra.mxu0 0.0
        %1393 = vmatprep.subr.mxu0 0.0
        %1394 = vmatpush1.xpose.msra.mxu0 0.0
        %1395 = vmatprep.subr.mxu0 0.0
        %1396 = vmatpush1.xpose.msra.mxu0 0.0
        %1397 = vmatprep.subr.mxu0 0.0
        %1398 = vmatpush1.xpose.msra.mxu0 0.0
        %1399 = vmatprep.subr.mxu0 0.0
        %1400 = vmatpush1.xpose.msra.mxu0 0.0
        %1401 = vmatprep.subr.mxu0 0.0
        %1402 = vmatpush1.xpose.msra.mxu0 0.0
        %1403 = vmatprep.subr.mxu0 0.0
        %1404 = vmatpush1.xpose.msra.mxu0 0.0
        %1405 = vmatprep.subr.mxu0 0.0
        %1406 = vmatpush1.xpose.msra.mxu0 0.0
        %1407 = vmatprep.mubr.f32.mxu0 0.0
        %1408 = vmatmul.mubr.f32.gmra.mrb[0].mxu0 %v1338
        %v1409 = vpop.f32.mrb[0].mxu0
        %v1410 = vadd.f32 0.0, %v1409
        %v1411 = vpop.f32.mrb[0].mxu0
        %1412 = vdwg.mxu0
        %v1414 = vsel %vm1108, %v1104, 0
        %v1417 = vsel %vm1108, %v1087, 0
        %1419 = vmatprep.subr.mxu0 0.0
        %1420 = vmatpush1.xpose.msra.mxu0 %v1417
        %1421 = vmatprep.subr.mxu0 0.0
        %1422 = vmatpush1.xpose.msra.mxu0 0.0
        %1423 = vmatprep.subr.mxu0 0.0
        %1424 = vmatpush1.xpose.msra.mxu0 0.0
        %1425 = vmatprep.subr.mxu0 0.0
        %1426 = vmatpush1.xpose.msra.mxu0 0.0
        %1427 = vmatprep.subr.mxu0 0.0
        %1428 = vmatpush1.xpose.msra.mxu0 0.0
        %1429 = vmatprep.subr.mxu0 0.0
        %1430 = vmatpush1.xpose.msra.mxu0 0.0
        %1431 = vmatprep.subr.mxu0 0.0
        %1432 = vmatpush1.xpose.msra.mxu0 0.0
        %1433 = vmatprep.subr.mxu0 0.0
        %1434 = vmatpush1.xpose.msra.mxu0 0.0
        %1435 = vmatprep.subr.mxu0 0.0
        %1436 = vmatpush1.xpose.msra.mxu0 0.0
        %1437 = vmatprep.subr.mxu0 0.0
        %1438 = vmatpush1.xpose.msra.mxu0 0.0
        %1439 = vmatprep.subr.mxu0 0.0
        %1440 = vmatpush1.xpose.msra.mxu0 0.0
        %1441 = vmatprep.subr.mxu0 0.0
        %1442 = vmatpush1.xpose.msra.mxu0 0.0
        %1443 = vmatprep.subr.mxu0 0.0
        %1444 = vmatpush1.xpose.msra.mxu0 0.0
        %1445 = vmatprep.subr.mxu0 0.0
        %1446 = vmatpush1.xpose.msra.mxu0 0.0
        %1447 = vmatprep.subr.mxu0 0.0
        %1448 = vmatpush1.xpose.msra.mxu0 0.0
        %1449 = vmatprep.subr.mxu0 0.0
        %1450 = vmatpush1.xpose.msra.mxu0 0.0
        %1451 = vmatprep.subr.mxu0 0.0
        %1452 = vmatpush1.xpose.msra.mxu0 0.0
        %1453 = vmatprep.subr.mxu0 0.0
        %1454 = vmatpush1.xpose.msra.mxu0 0.0
        %1455 = vmatprep.subr.mxu0 0.0
        %1456 = vmatpush1.xpose.msra.mxu0 0.0
        %1457 = vmatprep.subr.mxu0 0.0
        %1458 = vmatpush1.xpose.msra.mxu0 0.0
        %1459 = vmatprep.subr.mxu0 0.0
        %1460 = vmatpush1.xpose.msra.mxu0 0.0
        %1461 = vmatprep.subr.mxu0 0.0
        %1462 = vmatpush1.xpose.msra.mxu0 0.0
        %1463 = vmatprep.subr.mxu0 0.0
        %1464 = vmatpush1.xpose.msra.mxu0 0.0
        %1465 = vmatprep.subr.mxu0 0.0
        %1466 = vmatpush1.xpose.msra.mxu0 0.0
        %1467 = vmatprep.subr.mxu0 0.0
        %1468 = vmatpush1.xpose.msra.mxu0 0.0
        %1469 = vmatprep.subr.mxu0 0.0
        %1470 = vmatpush1.xpose.msra.mxu0 0.0
        %1471 = vmatprep.subr.mxu0 0.0
        %1472 = vmatpush1.xpose.msra.mxu0 0.0
        %1473 = vmatprep.subr.mxu0 0.0
        %1474 = vmatpush1.xpose.msra.mxu0 0.0
        %1475 = vmatprep.subr.mxu0 0.0
        %1476 = vmatpush1.xpose.msra.mxu0 0.0
        %1477 = vmatprep.subr.mxu0 0.0
        %1478 = vmatpush1.xpose.msra.mxu0 0.0
        %1479 = vmatprep.subr.mxu0 0.0
        %1480 = vmatpush1.xpose.msra.mxu0 0.0
        %1481 = vmatprep.subr.mxu0 0.0
        %1482 = vmatpush1.xpose.msra.mxu0 0.0
        %1483 = vmatprep.mubr.f32.mxu0 0.0
        %1484 = vmatmul.mubr.f32.gmra.mrb[0].mxu0 %v1414
        %v1485 = vpop.f32.mrb[0].mxu0
        %v1486 = vadd.f32 0.0, %v1485
        %v1487 = vpop.f32.mrb[0].mxu0
        %1488 = vdwg.mxu0
        %v1490 = vsel %vm1108, %v1105, 0
        %v1493 = vsel %vm1108, %v1088, 0
        %1495 = vmatprep.subr.mxu0 0.0
        %1496 = vmatpush1.xpose.msra.mxu0 %v1493
        %1497 = vmatprep.subr.mxu0 0.0
        %1498 = vmatpush1.xpose.msra.mxu0 0.0
        %1499 = vmatprep.subr.mxu0 0.0
        %1500 = vmatpush1.xpose.msra.mxu0 0.0
        %1501 = vmatprep.subr.mxu0 0.0
        %1502 = vmatpush1.xpose.msra.mxu0 0.0
        %1503 = vmatprep.subr.mxu0 0.0
        %1504 = vmatpush1.xpose.msra.mxu0 0.0
        %1505 = vmatprep.subr.mxu0 0.0
        %1506 = vmatpush1.xpose.msra.mxu0 0.0
        %1507 = vmatprep.subr.mxu0 0.0
        %1508 = vmatpush1.xpose.msra.mxu0 0.0
        %1509 = vmatprep.subr.mxu0 0.0
        %1510 = vmatpush1.xpose.msra.mxu0 0.0
        %1511 = vmatprep.subr.mxu0 0.0
        %1512 = vmatpush1.xpose.msra.mxu0 0.0
        %1513 = vmatprep.subr.mxu0 0.0
        %1514 = vmatpush1.xpose.msra.mxu0 0.0
        %1515 = vmatprep.subr.mxu0 0.0
        %1516 = vmatpush1.xpose.msra.mxu0 0.0
        %1517 = vmatprep.subr.mxu0 0.0
        %1518 = vmatpush1.xpose.msra.mxu0 0.0
        %1519 = vmatprep.subr.mxu0 0.0
        %1520 = vmatpush1.xpose.msra.mxu0 0.0
        %1521 = vmatprep.subr.mxu0 0.0
        %1522 = vmatpush1.xpose.msra.mxu0 0.0
        %1523 = vmatprep.subr.mxu0 0.0
        %1524 = vmatpush1.xpose.msra.mxu0 0.0
        %1525 = vmatprep.subr.mxu0 0.0
        %1526 = vmatpush1.xpose.msra.mxu0 0.0
        %1527 = vmatprep.subr.mxu0 0.0
        %1528 = vmatpush1.xpose.msra.mxu0 0.0
        %1529 = vmatprep.subr.mxu0 0.0
        %1530 = vmatpush1.xpose.msra.mxu0 0.0
        %1531 = vmatprep.subr.mxu0 0.0
        %1532 = vmatpush1.xpose.msra.mxu0 0.0
        %1533 = vmatprep.subr.mxu0 0.0
        %1534 = vmatpush1.xpose.msra.mxu0 0.0
        %1535 = vmatprep.subr.mxu0 0.0
        %1536 = vmatpush1.xpose.msra.mxu0 0.0
        %1537 = vmatprep.subr.mxu0 0.0
        %1538 = vmatpush1.xpose.msra.mxu0 0.0
        %1539 = vmatprep.subr.mxu0 0.0
        %1540 = vmatpush1.xpose.msra.mxu0 0.0
        %1541 = vmatprep.subr.mxu0 0.0
        %1542 = vmatpush1.xpose.msra.mxu0 0.0
        %1543 = vmatprep.subr.mxu0 0.0
        %1544 = vmatpush1.xpose.msra.mxu0 0.0
        %1545 = vmatprep.subr.mxu0 0.0
        %1546 = vmatpush1.xpose.msra.mxu0 0.0
        %1547 = vmatprep.subr.mxu0 0.0
        %1548 = vmatpush1.xpose.msra.mxu0 0.0
        %1549 = vmatprep.subr.mxu0 0.0
        %1550 = vmatpush1.xpose.msra.mxu0 0.0
        %1551 = vmatprep.subr.mxu0 0.0
        %1552 = vmatpush1.xpose.msra.mxu0 0.0
        %1553 = vmatprep.subr.mxu0 0.0
        %1554 = vmatpush1.xpose.msra.mxu0 0.0
        %1555 = vmatprep.subr.mxu0 0.0
        %1556 = vmatpush1.xpose.msra.mxu0 0.0
        %1557 = vmatprep.subr.mxu0 0.0
        %1558 = vmatpush1.xpose.msra.mxu0 0.0
        %1559 = vmatprep.mubr.f32.mxu0 0.0
        %1560 = vmatmul.mubr.f32.gmra.mrb[0].mxu0 %v1490
        %v1561 = vpop.f32.mrb[0].mxu0
        %v1562 = vadd.f32 0.0, %v1561
        %v1563 = vpop.f32.mrb[0].mxu0
        %1564 = vdwg.mxu0
        %v1566 = vsel %vm1108, %v1106, 0
        %v1569 = vsel %vm1108, %v1089, 0
        %1571 = vmatprep.subr.mxu0 0.0
        %1572 = vmatpush1.xpose.msra.mxu0 %v1569
        %1573 = vmatprep.subr.mxu0 0.0
        %1574 = vmatpush1.xpose.msra.mxu0 0.0
        %1575 = vmatprep.subr.mxu0 0.0
        %1576 = vmatpush1.xpose.msra.mxu0 0.0
        %1577 = vmatprep.subr.mxu0 0.0
        %1578 = vmatpush1.xpose.msra.mxu0 0.0
        %1579 = vmatprep.subr.mxu0 0.0
        %1580 = vmatpush1.xpose.msra.mxu0 0.0
        %1581 = vmatprep.subr.mxu0 0.0
        %1582 = vmatpush1.xpose.msra.mxu0 0.0
        %1583 = vmatprep.subr.mxu0 0.0
        %1584 = vmatpush1.xpose.msra.mxu0 0.0
        %1585 = vmatprep.subr.mxu0 0.0
        %1586 = vmatpush1.xpose.msra.mxu0 0.0
        %1587 = vmatprep.subr.mxu0 0.0
        %1588 = vmatpush1.xpose.msra.mxu0 0.0
        %1589 = vmatprep.subr.mxu0 0.0
        %1590 = vmatpush1.xpose.msra.mxu0 0.0
        %1591 = vmatprep.subr.mxu0 0.0
        %1592 = vmatpush1.xpose.msra.mxu0 0.0
        %1593 = vmatprep.subr.mxu0 0.0
        %1594 = vmatpush1.xpose.msra.mxu0 0.0
        %1595 = vmatprep.subr.mxu0 0.0
        %1596 = vmatpush1.xpose.msra.mxu0 0.0
        %1597 = vmatprep.subr.mxu0 0.0
        %1598 = vmatpush1.xpose.msra.mxu0 0.0
        %1599 = vmatprep.subr.mxu0 0.0
        %1600 = vmatpush1.xpose.msra.mxu0 0.0
        %1601 = vmatprep.subr.mxu0 0.0
        %1602 = vmatpush1.xpose.msra.mxu0 0.0
        %1603 = vmatprep.subr.mxu0 0.0
        %1604 = vmatpush1.xpose.msra.mxu0 0.0
        %1605 = vmatprep.subr.mxu0 0.0
        %1606 = vmatpush1.xpose.msra.mxu0 0.0
        %1607 = vmatprep.subr.mxu0 0.0
        %1608 = vmatpush1.xpose.msra.mxu0 0.0
        %1609 = vmatprep.subr.mxu0 0.0
        %1610 = vmatpush1.xpose.msra.mxu0 0.0
        %1611 = vmatprep.subr.mxu0 0.0
        %1612 = vmatpush1.xpose.msra.mxu0 0.0
        %1613 = vmatprep.subr.mxu0 0.0
        %1614 = vmatpush1.xpose.msra.mxu0 0.0
        %1615 = vmatprep.subr.mxu0 0.0
        %1616 = vmatpush1.xpose.msra.mxu0 0.0
        %1617 = vmatprep.subr.mxu0 0.0
        %1618 = vmatpush1.xpose.msra.mxu0 0.0
        %1619 = vmatprep.subr.mxu0 0.0
        %1620 = vmatpush1.xpose.msra.mxu0 0.0
        %1621 = vmatprep.subr.mxu0 0.0
        %1622 = vmatpush1.xpose.msra.mxu0 0.0
        %1623 = vmatprep.subr.mxu0 0.0
        %1624 = vmatpush1.xpose.msra.mxu0 0.0
        %1625 = vmatprep.subr.mxu0 0.0
        %1626 = vmatpush1.xpose.msra.mxu0 0.0
        %1627 = vmatprep.subr.mxu0 0.0
        %1628 = vmatpush1.xpose.msra.mxu0 0.0
        %1629 = vmatprep.subr.mxu0 0.0
        %1630 = vmatpush1.xpose.msra.mxu0 0.0
        %1631 = vmatprep.subr.mxu0 0.0
        %1632 = vmatpush1.xpose.msra.mxu0 0.0
        %1633 = vmatprep.subr.mxu0 0.0
        %1634 = vmatpush1.xpose.msra.mxu0 0.0
        %1635 = vmatprep.mubr.f32.mxu0 0.0
        %1636 = vmatmul.mubr.f32.gmra.mrb[0].mxu0 %v1566
        %v1637 = vpop.f32.mrb[0].mxu0
        %v1638 = vadd.f32 0.0, %v1637
        %v1639 = vpop.f32.mrb[0].mxu0
        %1640 = vdwg.mxu0
        %v1642 = vsel %vm1108, %v1107, 0
        %v1645 = vsel %vm1108, %v1090, 0
        %1647 = vmatprep.subr.mxu0 0.0
        %1648 = vmatpush1.xpose.msra.mxu0 %v1645
        %1649 = vmatprep.subr.mxu0 0.0
        %1650 = vmatpush1.xpose.msra.mxu0 0.0
        %1651 = vmatprep.subr.mxu0 0.0
        %1652 = vmatpush1.xpose.msra.mxu0 0.0
        %1653 = vmatprep.subr.mxu0 0.0
        %1654 = vmatpush1.xpose.msra.mxu0 0.0
        %1655 = vmatprep.subr.mxu0 0.0
        %1656 = vmatpush1.xpose.msra.mxu0 0.0
        %1657 = vmatprep.subr.mxu0 0.0
        %1658 = vmatpush1.xpose.msra.mxu0 0.0
        %1659 = vmatprep.subr.mxu0 0.0
        %1660 = vmatpush1.xpose.msra.mxu0 0.0
        %1661 = vmatprep.subr.mxu0 0.0
        %1662 = vmatpush1.xpose.msra.mxu0 0.0
        %1663 = vmatprep.subr.mxu0 0.0
        %1664 = vmatpush1.xpose.msra.mxu0 0.0
        %1665 = vmatprep.subr.mxu0 0.0
        %1666 = vmatpush1.xpose.msra.mxu0 0.0
        %1667 = vmatprep.subr.mxu0 0.0
        %1668 = vmatpush1.xpose.msra.mxu0 0.0
        %1669 = vmatprep.subr.mxu0 0.0
        %1670 = vmatpush1.xpose.msra.mxu0 0.0
        %1671 = vmatprep.subr.mxu0 0.0
        %1672 = vmatpush1.xpose.msra.mxu0 0.0
        %1673 = vmatprep.subr.mxu0 0.0
        %1674 = vmatpush1.xpose.msra.mxu0 0.0
        %1675 = vmatprep.subr.mxu0 0.0
        %1676 = vmatpush1.xpose.msra.mxu0 0.0
        %1677 = vmatprep.subr.mxu0 0.0
        %1678 = vmatpush1.xpose.msra.mxu0 0.0
        %1679 = vmatprep.subr.mxu0 0.0
        %1680 = vmatpush1.xpose.msra.mxu0 0.0
        %1681 = vmatprep.subr.mxu0 0.0
        %1682 = vmatpush1.xpose.msra.mxu0 0.0
        %1683 = vmatprep.subr.mxu0 0.0
        %1684 = vmatpush1.xpose.msra.mxu0 0.0
        %1685 = vmatprep.subr.mxu0 0.0
        %1686 = vmatpush1.xpose.msra.mxu0 0.0
        %1687 = vmatprep.subr.mxu0 0.0
        %1688 = vmatpush1.xpose.msra.mxu0 0.0
        %1689 = vmatprep.subr.mxu0 0.0
        %1690 = vmatpush1.xpose.msra.mxu0 0.0
        %1691 = vmatprep.subr.mxu0 0.0
        %1692 = vmatpush1.xpose.msra.mxu0 0.0
        %1693 = vmatprep.subr.mxu0 0.0
        %1694 = vmatpush1.xpose.msra.mxu0 0.0
        %1695 = vmatprep.subr.mxu0 0.0
        %1696 = vmatpush1.xpose.msra.mxu0 0.0
        %1697 = vmatprep.subr.mxu0 0.0
        %1698 = vmatpush1.xpose.msra.mxu0 0.0
        %1699 = vmatprep.subr.mxu0 0.0
        %1700 = vmatpush1.xpose.msra.mxu0 0.0
        %1701 = vmatprep.subr.mxu0 0.0
        %1702 = vmatpush1.xpose.msra.mxu0 0.0
        %1703 = vmatprep.subr.mxu0 0.0
        %1704 = vmatpush1.xpose.msra.mxu0 0.0
        %1705 = vmatprep.subr.mxu0 0.0
        %1706 = vmatpush1.xpose.msra.mxu0 0.0
        %1707 = vmatprep.subr.mxu0 0.0
        %1708 = vmatpush1.xpose.msra.mxu0 0.0
        %1709 = vmatprep.subr.mxu0 0.0
        %1710 = vmatpush1.xpose.msra.mxu0 0.0
        %1711 = vmatprep.mubr.f32.mxu0 0.0
        %1712 = vmatmul.mubr.f32.gmra.mrb[0].mxu0 %v1642
        %v1713 = vpop.f32.mrb[0].mxu0
        %v1714 = vadd.f32 0.0, %v1713
        %v1715 = vpop.f32.mrb[0].mxu0
        %1716 = vdwg.mxu0
        %v1717 = vld [vmem:[#allocation3] sm:$0xff]
        %v1718 = vld [vmem:[#allocation3 + $0x8] sm:$0xff]
        %v1719 = vld [vmem:[#allocation3 + $0x10] sm:$0xff]
        %v1720 = vld [vmem:[#allocation3 + $0x18] sm:$0xff]
        %v1721 = vld [vmem:[#allocation3 + $0x20] sm:$0xff]
        %v1722 = vld [vmem:[#allocation3 + $0x28] sm:$0xff]
        %v1723 = vld [vmem:[#allocation3 + $0x30] sm:$0xff]
        %v1724 = vld [vmem:[#allocation3 + $0x38] sm:$0xff]
        %vm1725 = vcmask 64512
        %v1726 = vsel %vm1725, %v1182, -inf
        %1727 = vmax.xlane.f32.xlu0 %v1726
        %v1728 = vpop.xlane.xlu0 %1727
        %v1729 = vsel %vm1725, %v1258, -inf
        %1730 = vmax.xlane.f32.xlu0 %v1729
        %v1731 = vpop.xlane.xlu0 %1730
        %v1732 = vsel %vm1725, %v1334, -inf
        %1733 = vmax.xlane.f32.xlu0 %v1732
        %v1734 = vpop.xlane.xlu0 %1733
        %v1735 = vsel %vm1725, %v1410, -inf
        %1736 = vmax.xlane.f32.xlu0 %v1735
        %v1737 = vpop.xlane.xlu0 %1736
        %v1738 = vsel %vm1725, %v1486, -inf
        %1739 = vmax.xlane.f32.xlu0 %v1738
        %v1740 = vpop.xlane.xlu0 %1739
        %v1741 = vsel %vm1725, %v1562, -inf
        %1742 = vmax.xlane.f32.xlu0 %v1741
        %v1743 = vpop.xlane.xlu0 %1742
        %v1744 = vsel %vm1725, %v1638, -inf
        %1745 = vmax.xlane.f32.xlu0 %v1744
        %v1746 = vpop.xlane.xlu0 %1745
        %v1747 = vsel %vm1725, %v1714, -inf
        %1748 = vmax.xlane.f32.xlu0 %v1747
        %v1749 = vpop.xlane.xlu0 %1748
        %v1750 = vmax.f32 %v1717, %v1728
        %v1751 = vmax.f32 %v1718, %v1731
        %v1752 = vmax.f32 %v1719, %v1734
        %v1753 = vmax.f32 %v1720, %v1737
        %v1754 = vmax.f32 %v1721, %v1740
        %v1755 = vmax.f32 %v1722, %v1743
        %v1756 = vmax.f32 %v1723, %v1746
        %v1757 = vmax.f32 %v1724, %v1749
        %v1758 = vsub.f32 %v1717, %v1750
        %v1759 = vsub.f32 %v1718, %v1751
        %v1760 = vsub.f32 %v1719, %v1752
        %v1761 = vsub.f32 %v1720, %v1753
        %v1762 = vsub.f32 %v1721, %v1754
        %v1763 = vsub.f32 %v1722, %v1755
        %v1764 = vsub.f32 %v1723, %v1756
        %v1765 = vsub.f32 %v1724, %v1757
        %v1766 = vmul.f32 %v1758, 1.442695
        %v1767 = vpow.pop %v1766
        %v1768 = vmul.f32 %v1759, 1.442695
        %v1769 = vpow.pop %v1768
        %v1770 = vmul.f32 %v1760, 1.442695
        %v1771 = vpow.pop %v1770
        %v1772 = vmul.f32 %v1761, 1.442695
        %v1773 = vpow.pop %v1772
        %v1774 = vmul.f32 %v1762, 1.442695
        %v1775 = vpow.pop %v1774
        %v1776 = vmul.f32 %v1763, 1.442695
        %v1777 = vpow.pop %v1776
        %v1778 = vmul.f32 %v1764, 1.442695
        %v1779 = vpow.pop %v1778
        %v1780 = vmul.f32 %v1765, 1.442695
        %v1781 = vpow.pop %v1780
        %1783 = vset.pattern.permute.xlu0 0
        %1784 = vperm.xlu0 %1783, %v1750
        %v1785 = vpop.permute.xlu0 %1784
        %1788 = vset.pattern.permute.xlu0 0
        %1789 = vperm.xlu0 %1788, %v1751
        %v1790 = vpop.permute.xlu0 %1789
        %1793 = vset.pattern.permute.xlu0 0
        %1794 = vperm.xlu0 %1793, %v1752
        %v1795 = vpop.permute.xlu0 %1794
        %1798 = vset.pattern.permute.xlu0 0
        %1799 = vperm.xlu0 %1798, %v1753
        %v1800 = vpop.permute.xlu0 %1799
        %1803 = vset.pattern.permute.xlu0 0
        %1804 = vperm.xlu0 %1803, %v1754
        %v1805 = vpop.permute.xlu0 %1804
        %1808 = vset.pattern.permute.xlu0 0
        %1809 = vperm.xlu0 %1808, %v1755
        %v1810 = vpop.permute.xlu0 %1809
        %1813 = vset.pattern.permute.xlu0 0
        %1814 = vperm.xlu0 %1813, %v1756
        %v1815 = vpop.permute.xlu0 %1814
        %1818 = vset.pattern.permute.xlu0 0
        %1819 = vperm.xlu0 %1818, %v1757
        %v1820 = vpop.permute.xlu0 %1819
        %v1822 = vsub.f32 %v1182, %v1785
        %v1823 = vsub.f32 %v1258, %v1790
        %v1824 = vsub.f32 %v1334, %v1795
        %v1825 = vsub.f32 %v1410, %v1800
        %v1826 = vsub.f32 %v1486, %v1805
        %v1827 = vsub.f32 %v1562, %v1810
        %v1828 = vsub.f32 %v1638, %v1815
        %v1829 = vsub.f32 %v1714, %v1820
        %v1830 = vmul.f32 %v1822, 1.442695
        %v1831 = vpow.pop %v1830
        %v1832 = vmul.f32 %v1823, 1.442695
        %v1833 = vpow.pop %v1832
        %v1834 = vmul.f32 %v1824, 1.442695
        %v1835 = vpow.pop %v1834
        %v1836 = vmul.f32 %v1825, 1.442695
        %v1837 = vpow.pop %v1836
        %v1838 = vmul.f32 %v1826, 1.442695
        %v1839 = vpow.pop %v1838
        %v1840 = vmul.f32 %v1827, 1.442695
        %v1841 = vpow.pop %v1840
        %v1842 = vmul.f32 %v1828, 1.442695
        %v1843 = vpow.pop %v1842
        %v1844 = vmul.f32 %v1829, 1.442695
        %v1845 = vpow.pop %v1844
        %v1846 = vld [vmem:[#allocation4] sm:$0xff]
        %v1847 = vld [vmem:[#allocation4 + $0x8] sm:$0xff]
        %v1848 = vld [vmem:[#allocation4 + $0x10] sm:$0xff]
        %v1849 = vld [vmem:[#allocation4 + $0x18] sm:$0xff]
        %v1850 = vld [vmem:[#allocation4 + $0x20] sm:$0xff]
        %v1851 = vld [vmem:[#allocation4 + $0x28] sm:$0xff]
        %v1852 = vld [vmem:[#allocation4 + $0x30] sm:$0xff]
        %v1853 = vld [vmem:[#allocation4 + $0x38] sm:$0xff]
        %v1854 = vmul.f32 %v1767, %v1846
        %v1855 = vmul.f32 %v1769, %v1847
        %v1856 = vmul.f32 %v1771, %v1848
        %v1857 = vmul.f32 %v1773, %v1849
        %v1858 = vmul.f32 %v1775, %v1850
        %v1859 = vmul.f32 %v1777, %v1851
        %v1860 = vmul.f32 %v1779, %v1852
        %v1861 = vmul.f32 %v1781, %v1853
        %v1862 = vsel %vm1725, %v1831, 0.0
        %1863 = vadd.xlane.f32.xlu0 %v1862
        %v1864 = vpop.xlane.xlu0 %1863
        %v1865 = vsel %vm1725, %v1833, 0.0
        %1866 = vadd.xlane.f32.xlu0 %v1865
        %v1867 = vpop.xlane.xlu0 %1866
        %v1868 = vsel %vm1725, %v1835, 0.0
        %1869 = vadd.xlane.f32.xlu0 %v1868
        %v1870 = vpop.xlane.xlu0 %1869
        %v1871 = vsel %vm1725, %v1837, 0.0
        %1872 = vadd.xlane.f32.xlu0 %v1871
        %v1873 = vpop.xlane.xlu0 %1872
        %v1874 = vsel %vm1725, %v1839, 0.0
        %1875 = vadd.xlane.f32.xlu0 %v1874
        %v1876 = vpop.xlane.xlu0 %1875
        %v1877 = vsel %vm1725, %v1841, 0.0
        %1878 = vadd.xlane.f32.xlu0 %v1877
        %v1879 = vpop.xlane.xlu0 %1878
        %v1880 = vsel %vm1725, %v1843, 0.0
        %1881 = vadd.xlane.f32.xlu0 %v1880
        %v1882 = vpop.xlane.xlu0 %1881
        %v1883 = vsel %vm1725, %v1845, 0.0
        %1884 = vadd.xlane.f32.xlu0 %v1883
        %v1885 = vpop.xlane.xlu0 %1884
        %v1886 = vadd.f32 %v1854, %v1864
        %v1887 = vadd.f32 %v1855, %v1867
        %v1888 = vadd.f32 %v1856, %v1870
        %v1889 = vadd.f32 %v1857, %v1873
        %v1890 = vadd.f32 %v1858, %v1876
        %v1891 = vadd.f32 %v1859, %v1879
        %v1892 = vadd.f32 %v1860, %v1882
        %v1893 = vadd.f32 %v1861, %v1885
        %vm1894 = vcmask 7168
        %1895 = vst.msk [vmem:[#allocation4] sm:$0xff] %vm1894, %v1886
        %1896 = vst.msk [vmem:[#allocation4 + $0x8] sm:$0xff] %vm1894, %v1887
        %1897 = vst.msk [vmem:[#allocation4 + $0x10] sm:$0xff] %vm1894, %v1888
        %1898 = vst.msk [vmem:[#allocation4 + $0x18] sm:$0xff] %vm1894, %v1889
        %1899 = vst.msk [vmem:[#allocation4 + $0x20] sm:$0xff] %vm1894, %v1890
        %1900 = vst.msk [vmem:[#allocation4 + $0x28] sm:$0xff] %vm1894, %v1891
        %1901 = vst.msk [vmem:[#allocation4 + $0x30] sm:$0xff] %vm1894, %v1892
        %1902 = vst.msk [vmem:[#allocation4 + $0x38] sm:$0xff] %vm1894, %v1893
        %v1903 = vld [vmem:[#allocation5] sm:$0xff]
        %v1904 = vld [vmem:[#allocation5 + $0x8] sm:$0xff]
        %v1905 = vld [vmem:[#allocation5 + $0x10] sm:$0xff]
        %v1906 = vld [vmem:[#allocation5 + $0x18] sm:$0xff]
        %v1907 = vld [vmem:[#allocation5 + $0x20] sm:$0xff]
        %v1908 = vld [vmem:[#allocation5 + $0x28] sm:$0xff]
        %v1909 = vld [vmem:[#allocation5 + $0x30] sm:$0xff]
        %v1910 = vld [vmem:[#allocation5 + $0x38] sm:$0xff]
        %1912 = vset.pattern.permute.xlu0 0
        %1913 = vperm.xlu0 %1912, %v1767
        %v1914 = vpop.permute.xlu0 %1913
        %1917 = vset.pattern.permute.xlu0 0
        %1918 = vperm.xlu0 %1917, %v1769
        %v1919 = vpop.permute.xlu0 %1918
        %1922 = vset.pattern.permute.xlu0 0
        %1923 = vperm.xlu0 %1922, %v1771
        %v1924 = vpop.permute.xlu0 %1923
        %1927 = vset.pattern.permute.xlu0 0
        %1928 = vperm.xlu0 %1927, %v1773
        %v1929 = vpop.permute.xlu0 %1928
        %1932 = vset.pattern.permute.xlu0 0
        %1933 = vperm.xlu0 %1932, %v1775
        %v1934 = vpop.permute.xlu0 %1933
        %1937 = vset.pattern.permute.xlu0 0
        %1938 = vperm.xlu0 %1937, %v1777
        %v1939 = vpop.permute.xlu0 %1938
        %1942 = vset.pattern.permute.xlu0 0
        %1943 = vperm.xlu0 %1942, %v1779
        %v1944 = vpop.permute.xlu0 %1943
        %1947 = vset.pattern.permute.xlu0 0
        %1948 = vperm.xlu0 %1947, %v1781
        %v1949 = vpop.permute.xlu0 %1948
        %v1951 = vmul.f32 %v1914, %v1903
        %v1952 = vmul.f32 %v1919, %v1904
        %v1953 = vmul.f32 %v1924, %v1905
        %v1954 = vmul.f32 %v1929, %v1906
        %v1955 = vmul.f32 %v1934, %v1907
        %v1956 = vmul.f32 %v1939, %v1908
        %v1957 = vmul.f32 %v1944, %v1909
        %v1958 = vmul.f32 %v1949, %v1910
        %v1960 = vsel %vm1725, %v1831, 0
        %1962 = vmatprep.subr.mxu0 0.0
        %1963 = vmatpush1.msra.mxu0 %v1092
        %1964 = vmatprep.subr.mxu0 0.0
        %1965 = vmatpush1.msra.mxu0 0.0
        %1966 = vmatprep.subr.mxu0 0.0
        %1967 = vmatpush1.msra.mxu0 0.0
        %1968 = vmatprep.subr.mxu0 0.0
        %1969 = vmatpush1.msra.mxu0 0.0
        %1970 = vmatprep.subr.mxu0 0.0
        %1971 = vmatpush1.msra.mxu0 0.0
        %1972 = vmatprep.subr.mxu0 0.0
        %1973 = vmatpush1.msra.mxu0 0.0
        %1974 = vmatprep.subr.mxu0 0.0
        %1975 = vmatpush1.msra.mxu0 0.0
        %1976 = vmatprep.subr.mxu0 0.0
        %1977 = vmatpush1.msra.mxu0 0.0
        %1978 = vmatprep.subr.mxu0 0.0
        %1979 = vmatpush1.msra.mxu0 0.0
        %1980 = vmatprep.subr.mxu0 0.0
        %1981 = vmatpush1.msra.mxu0 0.0
        %1982 = vmatprep.subr.mxu0 0.0
        %1983 = vmatpush1.msra.mxu0 0.0
        %1984 = vmatprep.subr.mxu0 0.0
        %1985 = vmatpush1.msra.mxu0 0.0
        %1986 = vmatprep.subr.mxu0 0.0
        %1987 = vmatpush1.msra.mxu0 0.0
        %1988 = vmatprep.subr.mxu0 0.0
        %1989 = vmatpush1.msra.mxu0 0.0
        %1990 = vmatprep.subr.mxu0 0.0
        %1991 = vmatpush1.msra.mxu0 0.0
        %1992 = vmatprep.subr.mxu0 0.0
        %1993 = vmatpush1.msra.mxu0 0.0
        %1994 = vmatprep.subr.mxu0 0.0
        %1995 = vmatpush1.msra.mxu0 0.0
        %1996 = vmatprep.subr.mxu0 0.0
        %1997 = vmatpush1.msra.mxu0 0.0
        %1998 = vmatprep.subr.mxu0 0.0
        %1999 = vmatpush1.msra.mxu0 0.0
        %2000 = vmatprep.subr.mxu0 0.0
        %2001 = vmatpush1.msra.mxu0 0.0
        %2002 = vmatprep.subr.mxu0 0.0
        %2003 = vmatpush1.msra.mxu0 0.0
        %2004 = vmatprep.subr.mxu0 0.0
        %2005 = vmatpush1.msra.mxu0 0.0
        %2006 = vmatprep.subr.mxu0 0.0
        %2007 = vmatpush1.msra.mxu0 0.0
        %2008 = vmatprep.subr.mxu0 0.0
        %2009 = vmatpush1.msra.mxu0 0.0
        %2010 = vmatprep.subr.mxu0 0.0
        %2011 = vmatpush1.msra.mxu0 0.0
        %2012 = vmatprep.subr.mxu0 0.0
        %2013 = vmatpush1.msra.mxu0 0.0
        %2014 = vmatprep.subr.mxu0 0.0
        %2015 = vmatpush1.msra.mxu0 0.0
        %2016 = vmatprep.subr.mxu0 0.0
        %2017 = vmatpush1.msra.mxu0 0.0
        %2018 = vmatprep.subr.mxu0 0.0
        %2019 = vmatpush1.msra.mxu0 0.0
        %2020 = vmatprep.subr.mxu0 0.0
        %2021 = vmatpush1.msra.mxu0 0.0
        %2022 = vmatprep.subr.mxu0 0.0
        %2023 = vmatpush1.msra.mxu0 0.0
        %2024 = vmatprep.subr.mxu0 0.0
        %2025 = vmatpush1.msra.mxu0 0.0
        %2026 = vmatprep.mubr.f32.mxu0 0.0
        %2027 = vmatmul.mubr.f32.gmra.mrb[0].mxu0 %v1960
        %v2028 = vpop.f32.mrb[0].mxu0
        %v2029 = vadd.f32 0.0, %v2028
        %v2030 = vpop.f32.mrb[0].mxu0
        %2031 = vdwg.mxu0
        %v2033 = vsel %vm1725, %v1833, 0
        %2035 = vmatprep.subr.mxu0 0.0
        %2036 = vmatpush1.msra.mxu0 %v1093
        %2037 = vmatprep.subr.mxu0 0.0
        %2038 = vmatpush1.msra.mxu0 0.0
        %2039 = vmatprep.subr.mxu0 0.0
        %2040 = vmatpush1.msra.mxu0 0.0
        %2041 = vmatprep.subr.mxu0 0.0
        %2042 = vmatpush1.msra.mxu0 0.0
        %2043 = vmatprep.subr.mxu0 0.0
        %2044 = vmatpush1.msra.mxu0 0.0
        %2045 = vmatprep.subr.mxu0 0.0
        %2046 = vmatpush1.msra.mxu0 0.0
        %2047 = vmatprep.subr.mxu0 0.0
        %2048 = vmatpush1.msra.mxu0 0.0
        %2049 = vmatprep.subr.mxu0 0.0
        %2050 = vmatpush1.msra.mxu0 0.0
        %2051 = vmatprep.subr.mxu0 0.0
        %2052 = vmatpush1.msra.mxu0 0.0
        %2053 = vmatprep.subr.mxu0 0.0
        %2054 = vmatpush1.msra.mxu0 0.0
        %2055 = vmatprep.subr.mxu0 0.0
        %2056 = vmatpush1.msra.mxu0 0.0
        %2057 = vmatprep.subr.mxu0 0.0
        %2058 = vmatpush1.msra.mxu0 0.0
        %2059 = vmatprep.subr.mxu0 0.0
        %2060 = vmatpush1.msra.mxu0 0.0
        %2061 = vmatprep.subr.mxu0 0.0
        %2062 = vmatpush1.msra.mxu0 0.0
        %2063 = vmatprep.subr.mxu0 0.0
        %2064 = vmatpush1.msra.mxu0 0.0
        %2065 = vmatprep.subr.mxu0 0.0
        %2066 = vmatpush1.msra.mxu0 0.0
        %2067 = vmatprep.subr.mxu0 0.0
        %2068 = vmatpush1.msra.mxu0 0.0
        %2069 = vmatprep.subr.mxu0 0.0
        %2070 = vmatpush1.msra.mxu0 0.0
        %2071 = vmatprep.subr.mxu0 0.0
        %2072 = vmatpush1.msra.mxu0 0.0
        %2073 = vmatprep.subr.mxu0 0.0
        %2074 = vmatpush1.msra.mxu0 0.0
        %2075 = vmatprep.subr.mxu0 0.0
        %2076 = vmatpush1.msra.mxu0 0.0
        %2077 = vmatprep.subr.mxu0 0.0
        %2078 = vmatpush1.msra.mxu0 0.0
        %2079 = vmatprep.subr.mxu0 0.0
        %2080 = vmatpush1.msra.mxu0 0.0
        %2081 = vmatprep.subr.mxu0 0.0
        %2082 = vmatpush1.msra.mxu0 0.0
        %2083 = vmatprep.subr.mxu0 0.0
        %2084 = vmatpush1.msra.mxu0 0.0
        %2085 = vmatprep.subr.mxu0 0.0
        %2086 = vmatpush1.msra.mxu0 0.0
        %2087 = vmatprep.subr.mxu0 0.0
        %2088 = vmatpush1.msra.mxu0 0.0
        %2089 = vmatprep.subr.mxu0 0.0
        %2090 = vmatpush1.msra.mxu0 0.0
        %2091 = vmatprep.subr.mxu0 0.0
        %2092 = vmatpush1.msra.mxu0 0.0
        %2093 = vmatprep.subr.mxu0 0.0
        %2094 = vmatpush1.msra.mxu0 0.0
        %2095 = vmatprep.subr.mxu0 0.0
        %2096 = vmatpush1.msra.mxu0 0.0
        %2097 = vmatprep.subr.mxu0 0.0
        %2098 = vmatpush1.msra.mxu0 0.0
        %2099 = vmatprep.mubr.f32.mxu0 0.0
        %2100 = vmatmul.mubr.f32.gmra.mrb[0].mxu0 %v2033
        %v2101 = vpop.f32.mrb[0].mxu0
        %v2102 = vadd.f32 0.0, %v2101
        %v2103 = vpop.f32.mrb[0].mxu0
        %2104 = vdwg.mxu0
        %v2106 = vsel %vm1725, %v1835, 0
        %2108 = vmatprep.subr.mxu0 0.0
        %2109 = vmatpush1.msra.mxu0 %v1094
        %2110 = vmatprep.subr.mxu0 0.0
        %2111 = vmatpush1.msra.mxu0 0.0
        %2112 = vmatprep.subr.mxu0 0.0
        %2113 = vmatpush1.msra.mxu0 0.0
        %2114 = vmatprep.subr.mxu0 0.0
        %2115 = vmatpush1.msra.mxu0 0.0
        %2116 = vmatprep.subr.mxu0 0.0
        %2117 = vmatpush1.msra.mxu0 0.0
        %2118 = vmatprep.subr.mxu0 0.0
        %2119 = vmatpush1.msra.mxu0 0.0
        %2120 = vmatprep.subr.mxu0 0.0
        %2121 = vmatpush1.msra.mxu0 0.0
        %2122 = vmatprep.subr.mxu0 0.0
        %2123 = vmatpush1.msra.mxu0 0.0
        %2124 = vmatprep.subr.mxu0 0.0
        %2125 = vmatpush1.msra.mxu0 0.0
        %2126 = vmatprep.subr.mxu0 0.0
        %2127 = vmatpush1.msra.mxu0 0.0
        %2128 = vmatprep.subr.mxu0 0.0
        %2129 = vmatpush1.msra.mxu0 0.0
        %2130 = vmatprep.subr.mxu0 0.0
        %2131 = vmatpush1.msra.mxu0 0.0
        %2132 = vmatprep.subr.mxu0 0.0
        %2133 = vmatpush1.msra.mxu0 0.0
        %2134 = vmatprep.subr.mxu0 0.0
        %2135 = vmatpush1.msra.mxu0 0.0
        %2136 = vmatprep.subr.mxu0 0.0
        %2137 = vmatpush1.msra.mxu0 0.0
        %2138 = vmatprep.subr.mxu0 0.0
        %2139 = vmatpush1.msra.mxu0 0.0
        %2140 = vmatprep.subr.mxu0 0.0
        %2141 = vmatpush1.msra.mxu0 0.0
        %2142 = vmatprep.subr.mxu0 0.0
        %2143 = vmatpush1.msra.mxu0 0.0
        %2144 = vmatprep.subr.mxu0 0.0
        %2145 = vmatpush1.msra.mxu0 0.0
        %2146 = vmatprep.subr.mxu0 0.0
        %2147 = vmatpush1.msra.mxu0 0.0
        %2148 = vmatprep.subr.mxu0 0.0
        %2149 = vmatpush1.msra.mxu0 0.0
        %2150 = vmatprep.subr.mxu0 0.0
        %2151 = vmatpush1.msra.mxu0 0.0
        %2152 = vmatprep.subr.mxu0 0.0
        %2153 = vmatpush1.msra.mxu0 0.0
        %2154 = vmatprep.subr.mxu0 0.0
        %2155 = vmatpush1.msra.mxu0 0.0
        %2156 = vmatprep.subr.mxu0 0.0
        %2157 = vmatpush1.msra.mxu0 0.0
        %2158 = vmatprep.subr.mxu0 0.0
        %2159 = vmatpush1.msra.mxu0 0.0
        %2160 = vmatprep.subr.mxu0 0.0
        %2161 = vmatpush1.msra.mxu0 0.0
        %2162 = vmatprep.subr.mxu0 0.0
        %2163 = vmatpush1.msra.mxu0 0.0
        %2164 = vmatprep.subr.mxu0 0.0
        %2165 = vmatpush1.msra.mxu0 0.0
        %2166 = vmatprep.subr.mxu0 0.0
        %2167 = vmatpush1.msra.mxu0 0.0
        %2168 = vmatprep.subr.mxu0 0.0
        %2169 = vmatpush1.msra.mxu0 0.0
        %2170 = vmatprep.subr.mxu0 0.0
        %2171 = vmatpush1.msra.mxu0 0.0
        %2172 = vmatprep.mubr.f32.mxu0 0.0
        %2173 = vmatmul.mubr.f32.gmra.mrb[0].mxu0 %v2106
        %v2174 = vpop.f32.mrb[0].mxu0
        %v2175 = vadd.f32 0.0, %v2174
        %v2176 = vpop.f32.mrb[0].mxu0
        %2177 = vdwg.mxu0
        %v2179 = vsel %vm1725, %v1837, 0
        %2181 = vmatprep.subr.mxu0 0.0
        %2182 = vmatpush1.msra.mxu0 %v1095
        %2183 = vmatprep.subr.mxu0 0.0
        %2184 = vmatpush1.msra.mxu0 0.0
        %2185 = vmatprep.subr.mxu0 0.0
        %2186 = vmatpush1.msra.mxu0 0.0
        %2187 = vmatprep.subr.mxu0 0.0
        %2188 = vmatpush1.msra.mxu0 0.0
        %2189 = vmatprep.subr.mxu0 0.0
        %2190 = vmatpush1.msra.mxu0 0.0
        %2191 = vmatprep.subr.mxu0 0.0
        %2192 = vmatpush1.msra.mxu0 0.0
        %2193 = vmatprep.subr.mxu0 0.0
        %2194 = vmatpush1.msra.mxu0 0.0
        %2195 = vmatprep.subr.mxu0 0.0
        %2196 = vmatpush1.msra.mxu0 0.0
        %2197 = vmatprep.subr.mxu0 0.0
        %2198 = vmatpush1.msra.mxu0 0.0
        %2199 = vmatprep.subr.mxu0 0.0
        %2200 = vmatpush1.msra.mxu0 0.0
        %2201 = vmatprep.subr.mxu0 0.0
        %2202 = vmatpush1.msra.mxu0 0.0
        %2203 = vmatprep.subr.mxu0 0.0
        %2204 = vmatpush1.msra.mxu0 0.0
        %2205 = vmatprep.subr.mxu0 0.0
        %2206 = vmatpush1.msra.mxu0 0.0
        %2207 = vmatprep.subr.mxu0 0.0
        %2208 = vmatpush1.msra.mxu0 0.0
        %2209 = vmatprep.subr.mxu0 0.0
        %2210 = vmatpush1.msra.mxu0 0.0
        %2211 = vmatprep.subr.mxu0 0.0
        %2212 = vmatpush1.msra.mxu0 0.0
        %2213 = vmatprep.subr.mxu0 0.0
        %2214 = vmatpush1.msra.mxu0 0.0
        %2215 = vmatprep.subr.mxu0 0.0
        %2216 = vmatpush1.msra.mxu0 0.0
        %2217 = vmatprep.subr.mxu0 0.0
        %2218 = vmatpush1.msra.mxu0 0.0
        %2219 = vmatprep.subr.mxu0 0.0
        %2220 = vmatpush1.msra.mxu0 0.0
        %2221 = vmatprep.subr.mxu0 0.0
        %2222 = vmatpush1.msra.mxu0 0.0
        %2223 = vmatprep.subr.mxu0 0.0
        %2224 = vmatpush1.msra.mxu0 0.0
        %2225 = vmatprep.subr.mxu0 0.0
        %2226 = vmatpush1.msra.mxu0 0.0
        %2227 = vmatprep.subr.mxu0 0.0
        %2228 = vmatpush1.msra.mxu0 0.0
        %2229 = vmatprep.subr.mxu0 0.0
        %2230 = vmatpush1.msra.mxu0 0.0
        %2231 = vmatprep.subr.mxu0 0.0
        %2232 = vmatpush1.msra.mxu0 0.0
        %2233 = vmatprep.subr.mxu0 0.0
        %2234 = vmatpush1.msra.mxu0 0.0
        %2235 = vmatprep.subr.mxu0 0.0
        %2236 = vmatpush1.msra.mxu0 0.0
        %2237 = vmatprep.subr.mxu0 0.0
        %2238 = vmatpush1.msra.mxu0 0.0
        %2239 = vmatprep.subr.mxu0 0.0
        %2240 = vmatpush1.msra.mxu0 0.0
        %2241 = vmatprep.subr.mxu0 0.0
        %2242 = vmatpush1.msra.mxu0 0.0
        %2243 = vmatprep.subr.mxu0 0.0
        %2244 = vmatpush1.msra.mxu0 0.0
        %2245 = vmatprep.mubr.f32.mxu0 0.0
        %2246 = vmatmul.mubr.f32.gmra.mrb[0].mxu0 %v2179
        %v2247 = vpop.f32.mrb[0].mxu0
        %v2248 = vadd.f32 0.0, %v2247
        %v2249 = vpop.f32.mrb[0].mxu0
        %2250 = vdwg.mxu0
        %v2252 = vsel %vm1725, %v1839, 0
        %2254 = vmatprep.subr.mxu0 0.0
        %2255 = vmatpush1.msra.mxu0 %v1096
        %2256 = vmatprep.subr.mxu0 0.0
        %2257 = vmatpush1.msra.mxu0 0.0
        %2258 = vmatprep.subr.mxu0 0.0
        %2259 = vmatpush1.msra.mxu0 0.0
        %2260 = vmatprep.subr.mxu0 0.0
        %2261 = vmatpush1.msra.mxu0 0.0
        %2262 = vmatprep.subr.mxu0 0.0
        %2263 = vmatpush1.msra.mxu0 0.0
        %2264 = vmatprep.subr.mxu0 0.0
        %2265 = vmatpush1.msra.mxu0 0.0
        %2266 = vmatprep.subr.mxu0 0.0
        %2267 = vmatpush1.msra.mxu0 0.0
        %2268 = vmatprep.subr.mxu0 0.0
        %2269 = vmatpush1.msra.mxu0 0.0
        %2270 = vmatprep.subr.mxu0 0.0
        %2271 = vmatpush1.msra.mxu0 0.0
        %2272 = vmatprep.subr.mxu0 0.0
        %2273 = vmatpush1.msra.mxu0 0.0
        %2274 = vmatprep.subr.mxu0 0.0
        %2275 = vmatpush1.msra.mxu0 0.0
        %2276 = vmatprep.subr.mxu0 0.0
        %2277 = vmatpush1.msra.mxu0 0.0
        %2278 = vmatprep.subr.mxu0 0.0
        %2279 = vmatpush1.msra.mxu0 0.0
        %2280 = vmatprep.subr.mxu0 0.0
        %2281 = vmatpush1.msra.mxu0 0.0
        %2282 = vmatprep.subr.mxu0 0.0
        %2283 = vmatpush1.msra.mxu0 0.0
        %2284 = vmatprep.subr.mxu0 0.0
        %2285 = vmatpush1.msra.mxu0 0.0
        %2286 = vmatprep.subr.mxu0 0.0
        %2287 = vmatpush1.msra.mxu0 0.0
        %2288 = vmatprep.subr.mxu0 0.0
        %2289 = vmatpush1.msra.mxu0 0.0
        %2290 = vmatprep.subr.mxu0 0.0
        %2291 = vmatpush1.msra.mxu0 0.0
        %2292 = vmatprep.subr.mxu0 0.0
        %2293 = vmatpush1.msra.mxu0 0.0
        %2294 = vmatprep.subr.mxu0 0.0
        %2295 = vmatpush1.msra.mxu0 0.0
        %2296 = vmatprep.subr.mxu0 0.0
        %2297 = vmatpush1.msra.mxu0 0.0
        %2298 = vmatprep.subr.mxu0 0.0
        %2299 = vmatpush1.msra.mxu0 0.0
        %2300 = vmatprep.subr.mxu0 0.0
        %2301 = vmatpush1.msra.mxu0 0.0
        %2302 = vmatprep.subr.mxu0 0.0
        %2303 = vmatpush1.msra.mxu0 0.0
        %2304 = vmatprep.subr.mxu0 0.0
        %2305 = vmatpush1.msra.mxu0 0.0
        %2306 = vmatprep.subr.mxu0 0.0
        %2307 = vmatpush1.msra.mxu0 0.0
        %2308 = vmatprep.subr.mxu0 0.0
        %2309 = vmatpush1.msra.mxu0 0.0
        %2310 = vmatprep.subr.mxu0 0.0
        %2311 = vmatpush1.msra.mxu0 0.0
        %2312 = vmatprep.subr.mxu0 0.0
        %2313 = vmatpush1.msra.mxu0 0.0
        %2314 = vmatprep.subr.mxu0 0.0
        %2315 = vmatpush1.msra.mxu0 0.0
        %2316 = vmatprep.subr.mxu0 0.0
        %2317 = vmatpush1.msra.mxu0 0.0
        %2318 = vmatprep.mubr.f32.mxu0 0.0
        %2319 = vmatmul.mubr.f32.gmra.mrb[0].mxu0 %v2252
        %v2320 = vpop.f32.mrb[0].mxu0
        %v2321 = vadd.f32 0.0, %v2320
        %v2322 = vpop.f32.mrb[0].mxu0
        %2323 = vdwg.mxu0
        %v2325 = vsel %vm1725, %v1841, 0
        %2327 = vmatprep.subr.mxu0 0.0
        %2328 = vmatpush1.msra.mxu0 %v1097
        %2329 = vmatprep.subr.mxu0 0.0
        %2330 = vmatpush1.msra.mxu0 0.0
        %2331 = vmatprep.subr.mxu0 0.0
        %2332 = vmatpush1.msra.mxu0 0.0
        %2333 = vmatprep.subr.mxu0 0.0
        %2334 = vmatpush1.msra.mxu0 0.0
        %2335 = vmatprep.subr.mxu0 0.0
        %2336 = vmatpush1.msra.mxu0 0.0
        %2337 = vmatprep.subr.mxu0 0.0
        %2338 = vmatpush1.msra.mxu0 0.0
        %2339 = vmatprep.subr.mxu0 0.0
        %2340 = vmatpush1.msra.mxu0 0.0
        %2341 = vmatprep.subr.mxu0 0.0
        %2342 = vmatpush1.msra.mxu0 0.0
        %2343 = vmatprep.subr.mxu0 0.0
        %2344 = vmatpush1.msra.mxu0 0.0
        %2345 = vmatprep.subr.mxu0 0.0
        %2346 = vmatpush1.msra.mxu0 0.0
        %2347 = vmatprep.subr.mxu0 0.0
        %2348 = vmatpush1.msra.mxu0 0.0
        %2349 = vmatprep.subr.mxu0 0.0
        %2350 = vmatpush1.msra.mxu0 0.0
        %2351 = vmatprep.subr.mxu0 0.0
        %2352 = vmatpush1.msra.mxu0 0.0
        %2353 = vmatprep.subr.mxu0 0.0
        %2354 = vmatpush1.msra.mxu0 0.0
        %2355 = vmatprep.subr.mxu0 0.0
        %2356 = vmatpush1.msra.mxu0 0.0
        %2357 = vmatprep.subr.mxu0 0.0
        %2358 = vmatpush1.msra.mxu0 0.0
        %2359 = vmatprep.subr.mxu0 0.0
        %2360 = vmatpush1.msra.mxu0 0.0
        %2361 = vmatprep.subr.mxu0 0.0
        %2362 = vmatpush1.msra.mxu0 0.0
        %2363 = vmatprep.subr.mxu0 0.0
        %2364 = vmatpush1.msra.mxu0 0.0
        %2365 = vmatprep.subr.mxu0 0.0
        %2366 = vmatpush1.msra.mxu0 0.0
        %2367 = vmatprep.subr.mxu0 0.0
        %2368 = vmatpush1.msra.mxu0 0.0
        %2369 = vmatprep.subr.mxu0 0.0
        %2370 = vmatpush1.msra.mxu0 0.0
        %2371 = vmatprep.subr.mxu0 0.0
        %2372 = vmatpush1.msra.mxu0 0.0
        %2373 = vmatprep.subr.mxu0 0.0
        %2374 = vmatpush1.msra.mxu0 0.0
        %2375 = vmatprep.subr.mxu0 0.0
        %2376 = vmatpush1.msra.mxu0 0.0
        %2377 = vmatprep.subr.mxu0 0.0
        %2378 = vmatpush1.msra.mxu0 0.0
        %2379 = vmatprep.subr.mxu0 0.0
        %2380 = vmatpush1.msra.mxu0 0.0
        %2381 = vmatprep.subr.mxu0 0.0
        %2382 = vmatpush1.msra.mxu0 0.0
        %2383 = vmatprep.subr.mxu0 0.0
        %2384 = vmatpush1.msra.mxu0 0.0
        %2385 = vmatprep.subr.mxu0 0.0
        %2386 = vmatpush1.msra.mxu0 0.0
        %2387 = vmatprep.subr.mxu0 0.0
        %2388 = vmatpush1.msra.mxu0 0.0
        %2389 = vmatprep.subr.mxu0 0.0
        %2390 = vmatpush1.msra.mxu0 0.0
        %2391 = vmatprep.mubr.f32.mxu0 0.0
        %2392 = vmatmul.mubr.f32.gmra.mrb[0].mxu0 %v2325
        %v2393 = vpop.f32.mrb[0].mxu0
        %v2394 = vadd.f32 0.0, %v2393
        %v2395 = vpop.f32.mrb[0].mxu0
        %2396 = vdwg.mxu0
        %v2398 = vsel %vm1725, %v1843, 0
        %2400 = vmatprep.subr.mxu0 0.0
        %2401 = vmatpush1.msra.mxu0 %v1098
        %2402 = vmatprep.subr.mxu0 0.0
        %2403 = vmatpush1.msra.mxu0 0.0
        %2404 = vmatprep.subr.mxu0 0.0
        %2405 = vmatpush1.msra.mxu0 0.0
        %2406 = vmatprep.subr.mxu0 0.0
        %2407 = vmatpush1.msra.mxu0 0.0
        %2408 = vmatprep.subr.mxu0 0.0
        %2409 = vmatpush1.msra.mxu0 0.0
        %2410 = vmatprep.subr.mxu0 0.0
        %2411 = vmatpush1.msra.mxu0 0.0
        %2412 = vmatprep.subr.mxu0 0.0
        %2413 = vmatpush1.msra.mxu0 0.0
        %2414 = vmatprep.subr.mxu0 0.0
        %2415 = vmatpush1.msra.mxu0 0.0
        %2416 = vmatprep.subr.mxu0 0.0
        %2417 = vmatpush1.msra.mxu0 0.0
        %2418 = vmatprep.subr.mxu0 0.0
        %2419 = vmatpush1.msra.mxu0 0.0
        %2420 = vmatprep.subr.mxu0 0.0
        %2421 = vmatpush1.msra.mxu0 0.0
        %2422 = vmatprep.subr.mxu0 0.0
        %2423 = vmatpush1.msra.mxu0 0.0
        %2424 = vmatprep.subr.mxu0 0.0
        %2425 = vmatpush1.msra.mxu0 0.0
        %2426 = vmatprep.subr.mxu0 0.0
        %2427 = vmatpush1.msra.mxu0 0.0
        %2428 = vmatprep.subr.mxu0 0.0
        %2429 = vmatpush1.msra.mxu0 0.0
        %2430 = vmatprep.subr.mxu0 0.0
        %2431 = vmatpush1.msra.mxu0 0.0
        %2432 = vmatprep.subr.mxu0 0.0
        %2433 = vmatpush1.msra.mxu0 0.0
        %2434 = vmatprep.subr.mxu0 0.0
        %2435 = vmatpush1.msra.mxu0 0.0
        %2436 = vmatprep.subr.mxu0 0.0
        %2437 = vmatpush1.msra.mxu0 0.0
        %2438 = vmatprep.subr.mxu0 0.0
        %2439 = vmatpush1.msra.mxu0 0.0
        %2440 = vmatprep.subr.mxu0 0.0
        %2441 = vmatpush1.msra.mxu0 0.0
        %2442 = vmatprep.subr.mxu0 0.0
        %2443 = vmatpush1.msra.mxu0 0.0
        %2444 = vmatprep.subr.mxu0 0.0
        %2445 = vmatpush1.msra.mxu0 0.0
        %2446 = vmatprep.subr.mxu0 0.0
        %2447 = vmatpush1.msra.mxu0 0.0
        %2448 = vmatprep.subr.mxu0 0.0
        %2449 = vmatpush1.msra.mxu0 0.0
        %2450 = vmatprep.subr.mxu0 0.0
        %2451 = vmatpush1.msra.mxu0 0.0
        %2452 = vmatprep.subr.mxu0 0.0
        %2453 = vmatpush1.msra.mxu0 0.0
        %2454 = vmatprep.subr.mxu0 0.0
        %2455 = vmatpush1.msra.mxu0 0.0
        %2456 = vmatprep.subr.mxu0 0.0
        %2457 = vmatpush1.msra.mxu0 0.0
        %2458 = vmatprep.subr.mxu0 0.0
        %2459 = vmatpush1.msra.mxu0 0.0
        %2460 = vmatprep.subr.mxu0 0.0
        %2461 = vmatpush1.msra.mxu0 0.0
        %2462 = vmatprep.subr.mxu0 0.0
        %2463 = vmatpush1.msra.mxu0 0.0
        %2464 = vmatprep.mubr.f32.mxu0 0.0
        %2465 = vmatmul.mubr.f32.gmra.mrb[0].mxu0 %v2398
        %v2466 = vpop.f32.mrb[0].mxu0
        %v2467 = vadd.f32 0.0, %v2466
        %v2468 = vpop.f32.mrb[0].mxu0
        %2469 = vdwg.mxu0
        %v2471 = vsel %vm1725, %v1845, 0
        %2473 = vmatprep.subr.mxu0 0.0
        %2474 = vmatpush1.msra.mxu0 %v1099
        %2475 = vmatprep.subr.mxu0 0.0
        %2476 = vmatpush1.msra.mxu0 0.0
        %2477 = vmatprep.subr.mxu0 0.0
        %2478 = vmatpush1.msra.mxu0 0.0
        %2479 = vmatprep.subr.mxu0 0.0
        %2480 = vmatpush1.msra.mxu0 0.0
        %2481 = vmatprep.subr.mxu0 0.0
        %2482 = vmatpush1.msra.mxu0 0.0
        %2483 = vmatprep.subr.mxu0 0.0
        %2484 = vmatpush1.msra.mxu0 0.0
        %2485 = vmatprep.subr.mxu0 0.0
        %2486 = vmatpush1.msra.mxu0 0.0
        %2487 = vmatprep.subr.mxu0 0.0
        %2488 = vmatpush1.msra.mxu0 0.0
        %2489 = vmatprep.subr.mxu0 0.0
        %2490 = vmatpush1.msra.mxu0 0.0
        %2491 = vmatprep.subr.mxu0 0.0
        %2492 = vmatpush1.msra.mxu0 0.0
        %2493 = vmatprep.subr.mxu0 0.0
        %2494 = vmatpush1.msra.mxu0 0.0
        %2495 = vmatprep.subr.mxu0 0.0
        %2496 = vmatpush1.msra.mxu0 0.0
        %2497 = vmatprep.subr.mxu0 0.0
        %2498 = vmatpush1.msra.mxu0 0.0
        %2499 = vmatprep.subr.mxu0 0.0
        %2500 = vmatpush1.msra.mxu0 0.0
        %2501 = vmatprep.subr.mxu0 0.0
        %2502 = vmatpush1.msra.mxu0 0.0
        %2503 = vmatprep.subr.mxu0 0.0
        %2504 = vmatpush1.msra.mxu0 0.0
        %2505 = vmatprep.subr.mxu0 0.0
        %2506 = vmatpush1.msra.mxu0 0.0
        %2507 = vmatprep.subr.mxu0 0.0
        %2508 = vmatpush1.msra.mxu0 0.0
        %2509 = vmatprep.subr.mxu0 0.0
        %2510 = vmatpush1.msra.mxu0 0.0
        %2511 = vmatprep.subr.mxu0 0.0
        %2512 = vmatpush1.msra.mxu0 0.0
        %2513 = vmatprep.subr.mxu0 0.0
        %2514 = vmatpush1.msra.mxu0 0.0
        %2515 = vmatprep.subr.mxu0 0.0
        %2516 = vmatpush1.msra.mxu0 0.0
        %2517 = vmatprep.subr.mxu0 0.0
        %2518 = vmatpush1.msra.mxu0 0.0
        %2519 = vmatprep.subr.mxu0 0.0
        %2520 = vmatpush1.msra.mxu0 0.0
        %2521 = vmatprep.subr.mxu0 0.0
        %2522 = vmatpush1.msra.mxu0 0.0
        %2523 = vmatprep.subr.mxu0 0.0
        %2524 = vmatpush1.msra.mxu0 0.0
        %2525 = vmatprep.subr.mxu0 0.0
        %2526 = vmatpush1.msra.mxu0 0.0
        %2527 = vmatprep.subr.mxu0 0.0
        %2528 = vmatpush1.msra.mxu0 0.0
        %2529 = vmatprep.subr.mxu0 0.0
        %2530 = vmatpush1.msra.mxu0 0.0
        %2531 = vmatprep.subr.mxu0 0.0
        %2532 = vmatpush1.msra.mxu0 0.0
        %2533 = vmatprep.subr.mxu0 0.0
        %2534 = vmatpush1.msra.mxu0 0.0
        %2535 = vmatprep.subr.mxu0 0.0
        %2536 = vmatpush1.msra.mxu0 0.0
        %2537 = vmatprep.mubr.f32.mxu0 0.0
        %2538 = vmatmul.mubr.f32.gmra.mrb[0].mxu0 %v2471
        %v2539 = vpop.f32.mrb[0].mxu0
        %v2540 = vadd.f32 0.0, %v2539
        %v2541 = vpop.f32.mrb[0].mxu0
        %2542 = vdwg.mxu0
        %v2543 = vadd.f32 %v1951, %v2029
        %v2544 = vadd.f32 %v1952, %v2102
        %v2545 = vadd.f32 %v1953, %v2175
        %v2546 = vadd.f32 %v1954, %v2248
        %v2547 = vadd.f32 %v1955, %v2321
        %v2548 = vadd.f32 %v1956, %v2394
        %v2549 = vadd.f32 %v1957, %v2467
        %v2550 = vadd.f32 %v1958, %v2540
        %2551 = vst.msk [vmem:[#allocation5] sm:$0xff] %vm1108, %v2543
        %2552 = vst.msk [vmem:[#allocation5 + $0x8] sm:$0xff] %vm1108, %v2544
        %2553 = vst.msk [vmem:[#allocation5 + $0x10] sm:$0xff] %vm1108, %v2545
        %2554 = vst.msk [vmem:[#allocation5 + $0x18] sm:$0xff] %vm1108, %v2546
        %2555 = vst.msk [vmem:[#allocation5 + $0x20] sm:$0xff] %vm1108, %v2547
        %2556 = vst.msk [vmem:[#allocation5 + $0x28] sm:$0xff] %vm1108, %v2548
        %2557 = vst.msk [vmem:[#allocation5 + $0x30] sm:$0xff] %vm1108, %v2549
        %2558 = vst.msk [vmem:[#allocation5 + $0x38] sm:$0xff] %vm1108, %v2550
        %2559 = vst.msk [vmem:[#allocation3] sm:$0xff] %vm1894, %v1750
        %2560 = vst.msk [vmem:[#allocation3 + $0x8] sm:$0xff] %vm1894, %v1751
        %2561 = vst.msk [vmem:[#allocation3 + $0x10] sm:$0xff] %vm1894, %v1752
        %2562 = vst.msk [vmem:[#allocation3 + $0x18] sm:$0xff] %vm1894, %v1753
        %2563 = vst.msk [vmem:[#allocation3 + $0x20] sm:$0xff] %vm1894, %v1754
        %2564 = vst.msk [vmem:[#allocation3 + $0x28] sm:$0xff] %vm1894, %v1755
        %2565 = vst.msk [vmem:[#allocation3 + $0x30] sm:$0xff] %vm1894, %v1756
        %2566 = vst.msk [vmem:[#allocation3 + $0x38] sm:$0xff] %vm1894, %v1757
        %p2567 = scmp.eq.s32.totalorder %s36, 1
        // Predicated region
        $region69: #{tpu_custom_call.1} parent=51 // pred_check
          %p2568 = pneg %p2567
        $region70: #{tpu_custom_call.1} parent=51 // pred_check_branch
          %2570 = sbr.rel (%p2568) target = $region72
        $region71: #{tpu_custom_call.1} parent=51 // pred_region
          %v2571 = vld [vmem:[#allocation5] sm:$0xff]
          %v2572 = vld [vmem:[#allocation5 + $0x8] sm:$0xff]
          %v2573 = vld [vmem:[#allocation5 + $0x10] sm:$0xff]
          %v2574 = vld [vmem:[#allocation5 + $0x18] sm:$0xff]
          %v2575 = vld [vmem:[#allocation5 + $0x20] sm:$0xff]
          %v2576 = vld [vmem:[#allocation5 + $0x28] sm:$0xff]
          %v2577 = vld [vmem:[#allocation5 + $0x30] sm:$0xff]
          %v2578 = vld [vmem:[#allocation5 + $0x38] sm:$0xff]
          %v2579 = vld [vmem:[#allocation4] sm:$0xff]
          %v2580 = vld [vmem:[#allocation4 + $0x8] sm:$0xff]
          %v2581 = vld [vmem:[#allocation4 + $0x10] sm:$0xff]
          %v2582 = vld [vmem:[#allocation4 + $0x18] sm:$0xff]
          %v2583 = vld [vmem:[#allocation4 + $0x20] sm:$0xff]
          %v2584 = vld [vmem:[#allocation4 + $0x28] sm:$0xff]
          %v2585 = vld [vmem:[#allocation4 + $0x30] sm:$0xff]
          %v2586 = vld [vmem:[#allocation4 + $0x38] sm:$0xff]
          %v2587 = vrcp.pop %v2579
          %v2588 = vrcp.pop %v2580
          %v2589 = vrcp.pop %v2581
          %v2590 = vrcp.pop %v2582
          %v2591 = vrcp.pop %v2583
          %v2592 = vrcp.pop %v2584
          %v2593 = vrcp.pop %v2585
          %v2594 = vrcp.pop %v2586
          %2596 = vset.pattern.permute.xlu0 0
          %2597 = vperm.xlu0 %2596, %v2587
          %v2598 = vpop.permute.xlu0 %2597
          %2601 = vset.pattern.permute.xlu0 0
          %2602 = vperm.xlu0 %2601, %v2588
          %v2603 = vpop.permute.xlu0 %2602
          %2606 = vset.pattern.permute.xlu0 0
          %2607 = vperm.xlu0 %2606, %v2589
          %v2608 = vpop.permute.xlu0 %2607
          %2611 = vset.pattern.permute.xlu0 0
          %2612 = vperm.xlu0 %2611, %v2590
          %v2613 = vpop.permute.xlu0 %2612
          %2616 = vset.pattern.permute.xlu0 0
          %2617 = vperm.xlu0 %2616, %v2591
          %v2618 = vpop.permute.xlu0 %2617
          %2621 = vset.pattern.permute.xlu0 0
          %2622 = vperm.xlu0 %2621, %v2592
          %v2623 = vpop.permute.xlu0 %2622
          %2626 = vset.pattern.permute.xlu0 0
          %2627 = vperm.xlu0 %2626, %v2593
          %v2628 = vpop.permute.xlu0 %2627
          %2631 = vset.pattern.permute.xlu0 0
          %2632 = vperm.xlu0 %2631, %v2594
          %v2633 = vpop.permute.xlu0 %2632
          %v2635 = vmul.f32 %v2571, %v2598
          %v2636 = vmul.f32 %v2572, %v2603
          %v2637 = vmul.f32 %v2573, %v2608
          %v2638 = vmul.f32 %v2574, %v2613
          %v2639 = vmul.f32 %v2575, %v2618
          %v2640 = vmul.f32 %v2576, %v2623
          %v2641 = vmul.f32 %v2577, %v2628
          %v2642 = vmul.f32 %v2578, %v2633
          %v2643 = vld [vmem:[%s6 + $0x3] sm:$0x1]
          %v2644 = vld [vmem:[%s6 + $0x4] sm:$0x1]
          %v2645 = vsel %vm1108, %v2635, 0.0
          %2646 = vadd.xlane.f32.xlu0 %v2645
          %v2647 = vpop.xlane.xlu0 %2646
          %v2648 = vsel %vm1108, %v2636, 0.0
          %2649 = vadd.xlane.f32.xlu0 %v2648
          %v2650 = vpop.xlane.xlu0 %2649
          %v2651 = vsel %vm1108, %v2637, 0.0
          %2652 = vadd.xlane.f32.xlu0 %v2651
          %v2653 = vpop.xlane.xlu0 %2652
          %v2654 = vsel %vm1108, %v2638, 0.0
          %2655 = vadd.xlane.f32.xlu0 %v2654
          %v2656 = vpop.xlane.xlu0 %2655
          %v2657 = vsel %vm1108, %v2639, 0.0
          %2658 = vadd.xlane.f32.xlu0 %v2657
          %v2659 = vpop.xlane.xlu0 %2658
          %v2660 = vsel %vm1108, %v2640, 0.0
          %2661 = vadd.xlane.f32.xlu0 %v2660
          %v2662 = vpop.xlane.xlu0 %2661
          %v2663 = vsel %vm1108, %v2641, 0.0
          %2664 = vadd.xlane.f32.xlu0 %v2663
          %v2665 = vpop.xlane.xlu0 %2664
          %v2666 = vsel %vm1108, %v2642, 0.0
          %2667 = vadd.xlane.f32.xlu0 %v2666
          %v2668 = vpop.xlane.xlu0 %2667
          %v2669 = vrcp.pop 32.0
          %v2670 = vmul.f32 %v2647, %v2669
          %v2671 = vmul.f32 %v2650, %v2669
          %v2672 = vmul.f32 %v2653, %v2669
          %v2673 = vmul.f32 %v2656, %v2669
          %v2674 = vmul.f32 %v2659, %v2669
          %v2675 = vmul.f32 %v2662, %v2669
          %v2676 = vmul.f32 %v2665, %v2669
          %v2677 = vmul.f32 %v2668, %v2669
          %v2678 = vsub.f32 %v2635, %v2670
          %v2679 = vsub.f32 %v2636, %v2671
          %v2680 = vsub.f32 %v2637, %v2672
          %v2681 = vsub.f32 %v2638, %v2673
          %v2682 = vsub.f32 %v2639, %v2674
          %v2683 = vsub.f32 %v2640, %v2675
          %v2684 = vsub.f32 %v2641, %v2676
          %v2685 = vsub.f32 %v2642, %v2677
          %v2686 = vmul.f32 %v2678, %v2678
          %v2687 = vmul.f32 %v2679, %v2679
          %v2688 = vmul.f32 %v2680, %v2680
          %v2689 = vmul.f32 %v2681, %v2681
          %v2690 = vmul.f32 %v2682, %v2682
          %v2691 = vmul.f32 %v2683, %v2683
          %v2692 = vmul.f32 %v2684, %v2684
          %v2693 = vmul.f32 %v2685, %v2685
          %v2694 = vsel %vm1108, %v2686, 0.0
          %2695 = vadd.xlane.f32.xlu0 %v2694
          %v2696 = vpop.xlane.xlu0 %2695
          %v2697 = vsel %vm1108, %v2687, 0.0
          %2698 = vadd.xlane.f32.xlu0 %v2697
          %v2699 = vpop.xlane.xlu0 %2698
          %v2700 = vsel %vm1108, %v2688, 0.0
          %2701 = vadd.xlane.f32.xlu0 %v2700
          %v2702 = vpop.xlane.xlu0 %2701
          %v2703 = vsel %vm1108, %v2689, 0.0
          %2704 = vadd.xlane.f32.xlu0 %v2703
          %v2705 = vpop.xlane.xlu0 %2704
          %v2706 = vsel %vm1108, %v2690, 0.0
          %2707 = vadd.xlane.f32.xlu0 %v2706
          %v2708 = vpop.xlane.xlu0 %2707
          %v2709 = vsel %vm1108, %v2691, 0.0
          %2710 = vadd.xlane.f32.xlu0 %v2709
          %v2711 = vpop.xlane.xlu0 %2710
          %v2712 = vsel %vm1108, %v2692, 0.0
          %2713 = vadd.xlane.f32.xlu0 %v2712
          %v2714 = vpop.xlane.xlu0 %2713
          %v2715 = vsel %vm1108, %v2693, 0.0
          %2716 = vadd.xlane.f32.xlu0 %v2715
          %v2717 = vpop.xlane.xlu0 %2716
          %v2718 = vmul.f32 %v2696, %v2669
          %v2719 = vmul.f32 %v2699, %v2669
          %v2720 = vmul.f32 %v2702, %v2669
          %v2721 = vmul.f32 %v2705, %v2669
          %v2722 = vmul.f32 %v2708, %v2669
          %v2723 = vmul.f32 %v2711, %v2669
          %v2724 = vmul.f32 %v2714, %v2669
          %v2725 = vmul.f32 %v2717, %v2669
          %v2726 = vadd.f32 %v2718, 1e-05
          %v2727 = vadd.f32 %v2719, 1e-05
          %v2728 = vadd.f32 %v2720, 1e-05
          %v2729 = vadd.f32 %v2721, 1e-05
          %v2730 = vadd.f32 %v2722, 1e-05
          %v2731 = vadd.f32 %v2723, 1e-05
          %v2732 = vadd.f32 %v2724, 1e-05
          %v2733 = vadd.f32 %v2725, 1e-05
          %v2734 = vrsqrt.pop %v2726
          %v2735 = vrsqrt.pop %v2727
          %v2736 = vrsqrt.pop %v2728
          %v2737 = vrsqrt.pop %v2729
          %v2738 = vrsqrt.pop %v2730
          %v2739 = vrsqrt.pop %v2731
          %v2740 = vrsqrt.pop %v2732
          %v2741 = vrsqrt.pop %v2733
          %v2742 = vmul.f32 %v2678, %v2734
          %v2743 = vmul.f32 %v2679, %v2735
          %v2744 = vmul.f32 %v2680, %v2736
          %v2745 = vmul.f32 %v2681, %v2737
          %v2746 = vmul.f32 %v2682, %v2738
          %v2747 = vmul.f32 %v2683, %v2739
          %v2748 = vmul.f32 %v2684, %v2740
          %v2749 = vmul.f32 %v2685, %v2741
          %v2750 = vlaneseq
          %v2751 = vshrl.u32 %v2750, 7
          %v2752 = vsub.s32 0, %v2751
          %v2753 = vrot.slane %v2643, %v2752
          %v2754 = vmul.f32 %v2742, %v2753
          %v2755 = vmul.f32 %v2743, %v2753
          %v2756 = vmul.f32 %v2744, %v2753
          %v2757 = vmul.f32 %v2745, %v2753
          %v2758 = vmul.f32 %v2746, %v2753
          %v2759 = vmul.f32 %v2747, %v2753
          %v2760 = vmul.f32 %v2748, %v2753
          %v2761 = vmul.f32 %v2749, %v2753
          %v2762 = vlaneseq
          %v2763 = vshrl.u32 %v2762, 7
          %v2764 = vsub.s32 0, %v2763
          %v2765 = vrot.slane %v2644, %v2764
          %v2766 = vadd.f32 %v2754, %v2765
          %v2767 = vadd.f32 %v2755, %v2765
          %v2768 = vadd.f32 %v2756, %v2765
          %v2769 = vadd.f32 %v2757, %v2765
          %v2770 = vadd.f32 %v2758, %v2765
          %v2771 = vadd.f32 %v2759, %v2765
          %v2772 = vadd.f32 %v2760, %v2765
          %v2773 = vadd.f32 %v2761, %v2765
          %v2774 = vld [vmem:[%s4] sm:$0xff]
          %v2775 = vld [vmem:[%s4 + $0x8] sm:$0xff]
          %v2776 = vld [vmem:[%s4 + $0x10] sm:$0xff]
          %v2777 = vld [vmem:[%s4 + $0x18] sm:$0xff]
          %v2778 = vld [vmem:[%s5 + $0x4] sm:$0x1]
          %v2779 = vlaneseq
          %v2780 = vshrl.u32 %v2779, 7
          %v2781 = vsub.s32 0, %v2780
          %v2782 = vrot.slane %v2778, %v2781
          %v2784 = vsel %vm1108, %v2766, 0
          %v2787 = vsel %vm1108, %v2767, 0
          %v2790 = vsel %vm1108, %v2768, 0
          %v2793 = vsel %vm1108, %v2769, 0
          %v2796 = vsel %vm1108, %v2770, 0
          %v2799 = vsel %vm1108, %v2771, 0
          %v2802 = vsel %vm1108, %v2772, 0
          %v2805 = vsel %vm1108, %v2773, 0
          %2807 = vmatprep.subr.mxu0 0.0
          %2808 = vmatpush1.msra.mxu0 %v2774
          %2809 = vmatprep.subr.mxu0 0.0
          %2810 = vmatpush1.msra.mxu0 %v2775
          %2811 = vmatprep.subr.mxu0 0.0
          %2812 = vmatpush1.msra.mxu0 %v2776
          %2813 = vmatprep.subr.mxu0 0.0
          %2814 = vmatpush1.msra.mxu0 %v2777
          %2815 = vmatprep.subr.mxu0 0.0
          %2816 = vmatpush1.msra.mxu0 0.0
          %2817 = vmatprep.subr.mxu0 0.0
          %2818 = vmatpush1.msra.mxu0 0.0
          %2819 = vmatprep.subr.mxu0 0.0
          %2820 = vmatpush1.msra.mxu0 0.0
          %2821 = vmatprep.subr.mxu0 0.0
          %2822 = vmatpush1.msra.mxu0 0.0
          %2823 = vmatprep.subr.mxu0 0.0
          %2824 = vmatpush1.msra.mxu0 0.0
          %2825 = vmatprep.subr.mxu0 0.0
          %2826 = vmatpush1.msra.mxu0 0.0
          %2827 = vmatprep.subr.mxu0 0.0
          %2828 = vmatpush1.msra.mxu0 0.0
          %2829 = vmatprep.subr.mxu0 0.0
          %2830 = vmatpush1.msra.mxu0 0.0
          %2831 = vmatprep.subr.mxu0 0.0
          %2832 = vmatpush1.msra.mxu0 0.0
          %2833 = vmatprep.subr.mxu0 0.0
          %2834 = vmatpush1.msra.mxu0 0.0
          %2835 = vmatprep.subr.mxu0 0.0
          %2836 = vmatpush1.msra.mxu0 0.0
          %2837 = vmatprep.subr.mxu0 0.0
          %2838 = vmatpush1.msra.mxu0 0.0
          %2839 = vmatprep.subr.mxu0 0.0
          %2840 = vmatpush1.msra.mxu0 0.0
          %2841 = vmatprep.subr.mxu0 0.0
          %2842 = vmatpush1.msra.mxu0 0.0
          %2843 = vmatprep.subr.mxu0 0.0
          %2844 = vmatpush1.msra.mxu0 0.0
          %2845 = vmatprep.subr.mxu0 0.0
          %2846 = vmatpush1.msra.mxu0 0.0
          %2847 = vmatprep.subr.mxu0 0.0
          %2848 = vmatpush1.msra.mxu0 0.0
          %2849 = vmatprep.subr.mxu0 0.0
          %2850 = vmatpush1.msra.mxu0 0.0
          %2851 = vmatprep.subr.mxu0 0.0
          %2852 = vmatpush1.msra.mxu0 0.0
          %2853 = vmatprep.subr.mxu0 0.0
          %2854 = vmatpush1.msra.mxu0 0.0
          %2855 = vmatprep.subr.mxu0 0.0
          %2856 = vmatpush1.msra.mxu0 0.0
          %2857 = vmatprep.subr.mxu0 0.0
          %2858 = vmatpush1.msra.mxu0 0.0
          %2859 = vmatprep.subr.mxu0 0.0
          %2860 = vmatpush1.msra.mxu0 0.0
          %2861 = vmatprep.subr.mxu0 0.0
          %2862 = vmatpush1.msra.mxu0 0.0
          %2863 = vmatprep.subr.mxu0 0.0
          %2864 = vmatpush1.msra.mxu0 0.0
          %2865 = vmatprep.subr.mxu0 0.0
          %2866 = vmatpush1.msra.mxu0 0.0
          %2867 = vmatprep.subr.mxu0 0.0
          %2868 = vmatpush1.msra.mxu0 0.0
          %2869 = vmatprep.subr.mxu0 0.0
          %2870 = vmatpush1.msra.mxu0 0.0
          %2871 = vmatprep.mubr.f32.mxu0 0.0
          %2872 = vmatmul.mubr.f32.gmra.mrb[0].mxu0 %v2784
          %v2873 = vpop.f32.mrb[0].mxu0
          %v2874 = vadd.f32 %v2782, %v2873
          %v2875 = vpop.f32.mrb[0].mxu0
          %2876 = vmatprep.mubr.f32.mxu0 0.0
          %2877 = vmatmul.mubr.f32.gmra.mrb[0].mxu0 %v2787
          %v2878 = vpop.f32.mrb[0].mxu0
          %v2879 = vadd.f32 %v2782, %v2878
          %v2880 = vpop.f32.mrb[0].mxu0
          %2881 = vmatprep.mubr.f32.mxu0 0.0
          %2882 = vmatmul.mubr.f32.gmra.mrb[0].mxu0 %v2790
          %v2883 = vpop.f32.mrb[0].mxu0
          %v2884 = vadd.f32 %v2782, %v2883
          %v2885 = vpop.f32.mrb[0].mxu0
          %2886 = vmatprep.mubr.f32.mxu0 0.0
          %2887 = vmatmul.mubr.f32.gmra.mrb[0].mxu0 %v2793
          %v2888 = vpop.f32.mrb[0].mxu0
          %v2889 = vadd.f32 %v2782, %v2888
          %v2890 = vpop.f32.mrb[0].mxu0
          %2891 = vmatprep.mubr.f32.mxu0 0.0
          %2892 = vmatmul.mubr.f32.gmra.mrb[0].mxu0 %v2796
          %v2893 = vpop.f32.mrb[0].mxu0
          %v2894 = vadd.f32 %v2782, %v2893
          %v2895 = vpop.f32.mrb[0].mxu0
          %2896 = vmatprep.mubr.f32.mxu0 0.0
          %2897 = vmatmul.mubr.f32.gmra.mrb[0].mxu0 %v2799
          %v2898 = vpop.f32.mrb[0].mxu0
          %v2899 = vadd.f32 %v2782, %v2898
          %v2900 = vpop.f32.mrb[0].mxu0
          %2901 = vmatprep.mubr.f32.mxu0 0.0
          %2902 = vmatmul.mubr.f32.gmra.mrb[0].mxu0 %v2802
          %v2903 = vpop.f32.mrb[0].mxu0
          %v2904 = vadd.f32 %v2782, %v2903
          %v2905 = vpop.f32.mrb[0].mxu0
          %2906 = vmatprep.mubr.f32.mxu0 0.0
          %2907 = vmatmul.mubr.f32.gmra.mrb[0].mxu0 %v2805
          %v2908 = vpop.f32.mrb[0].mxu0
          %v2909 = vadd.f32 %v2782, %v2908
          %v2910 = vpop.f32.mrb[0].mxu0
          %2911 = vdwg.mxu0
          %v2912 = vld [vmem:[%s5 + $0x2] sm:$0x1]
          %v2913 = vld [vmem:[%s5 + $0x3] sm:$0x1]
          %vm2914 = vcmask 130048
          %v2915 = vsel %vm2914, %v2874, 0.0
          %2916 = vadd.xlane.f32.xlu0 %v2915
          %v2917 = vpop.xlane.xlu0 %2916
          %v2918 = vsel %vm2914, %v2879, 0.0
          %2919 = vadd.xlane.f32.xlu0 %v2918
          %v2920 = vpop.xlane.xlu0 %2919
          %v2921 = vsel %vm2914, %v2884, 0.0
          %2922 = vadd.xlane.f32.xlu0 %v2921
          %v2923 = vpop.xlane.xlu0 %2922
          %v2924 = vsel %vm2914, %v2889, 0.0
          %2925 = vadd.xlane.f32.xlu0 %v2924
          %v2926 = vpop.xlane.xlu0 %2925
          %v2927 = vsel %vm2914, %v2894, 0.0
          %2928 = vadd.xlane.f32.xlu0 %v2927
          %v2929 = vpop.xlane.xlu0 %2928
          %v2930 = vsel %vm2914, %v2899, 0.0
          %2931 = vadd.xlane.f32.xlu0 %v2930
          %v2932 = vpop.xlane.xlu0 %2931
          %v2933 = vsel %vm2914, %v2904, 0.0
          %2934 = vadd.xlane.f32.xlu0 %v2933
          %v2935 = vpop.xlane.xlu0 %2934
          %v2936 = vsel %vm2914, %v2909, 0.0
          %2937 = vadd.xlane.f32.xlu0 %v2936
          %v2938 = vpop.xlane.xlu0 %2937
          %v2939 = vrcp.pop 16.0
          %v2940 = vmul.f32 %v2917, %v2939
          %v2941 = vmul.f32 %v2920, %v2939
          %v2942 = vmul.f32 %v2923, %v2939
          %v2943 = vmul.f32 %v2926, %v2939
          %v2944 = vmul.f32 %v2929, %v2939
          %v2945 = vmul.f32 %v2932, %v2939
          %v2946 = vmul.f32 %v2935, %v2939
          %v2947 = vmul.f32 %v2938, %v2939
          %v2948 = vsub.f32 %v2874, %v2940
          %v2949 = vsub.f32 %v2879, %v2941
          %v2950 = vsub.f32 %v2884, %v2942
          %v2951 = vsub.f32 %v2889, %v2943
          %v2952 = vsub.f32 %v2894, %v2944
          %v2953 = vsub.f32 %v2899, %v2945
          %v2954 = vsub.f32 %v2904, %v2946
          %v2955 = vsub.f32 %v2909, %v2947
          %v2956 = vmul.f32 %v2948, %v2948
          %v2957 = vmul.f32 %v2949, %v2949
          %v2958 = vmul.f32 %v2950, %v2950
          %v2959 = vmul.f32 %v2951, %v2951
          %v2960 = vmul.f32 %v2952, %v2952
          %v2961 = vmul.f32 %v2953, %v2953
          %v2962 = vmul.f32 %v2954, %v2954
          %v2963 = vmul.f32 %v2955, %v2955
          %v2964 = vsel %vm2914, %v2956, 0.0
          %2965 = vadd.xlane.f32.xlu0 %v2964
          %v2966 = vpop.xlane.xlu0 %2965
          %v2967 = vsel %vm2914, %v2957, 0.0
          %2968 = vadd.xlane.f32.xlu0 %v2967
          %v2969 = vpop.xlane.xlu0 %2968
          %v2970 = vsel %vm2914, %v2958, 0.0
          %2971 = vadd.xlane.f32.xlu0 %v2970
          %v2972 = vpop.xlane.xlu0 %2971
          %v2973 = vsel %vm2914, %v2959, 0.0
          %2974 = vadd.xlane.f32.xlu0 %v2973
          %v2975 = vpop.xlane.xlu0 %2974
          %v2976 = vsel %vm2914, %v2960, 0.0
          %2977 = vadd.xlane.f32.xlu0 %v2976
          %v2978 = vpop.xlane.xlu0 %2977
          %v2979 = vsel %vm2914, %v2961, 0.0
          %2980 = vadd.xlane.f32.xlu0 %v2979
          %v2981 = vpop.xlane.xlu0 %2980
          %v2982 = vsel %vm2914, %v2962, 0.0
          %2983 = vadd.xlane.f32.xlu0 %v2982
          %v2984 = vpop.xlane.xlu0 %2983
          %v2985 = vsel %vm2914, %v2963, 0.0
          %2986 = vadd.xlane.f32.xlu0 %v2985
          %v2987 = vpop.xlane.xlu0 %2986
          %v2988 = vmul.f32 %v2966, %v2939
          %v2989 = vmul.f32 %v2969, %v2939
          %v2990 = vmul.f32 %v2972, %v2939
          %v2991 = vmul.f32 %v2975, %v2939
          %v2992 = vmul.f32 %v2978, %v2939
          %v2993 = vmul.f32 %v2981, %v2939
          %v2994 = vmul.f32 %v2984, %v2939
          %v2995 = vmul.f32 %v2987, %v2939
          %v2996 = vadd.f32 %v2988, 1e-05
          %v2997 = vadd.f32 %v2989, 1e-05
          %v2998 = vadd.f32 %v2990, 1e-05
          %v2999 = vadd.f32 %v2991, 1e-05
          %v3000 = vadd.f32 %v2992, 1e-05
          %v3001 = vadd.f32 %v2993, 1e-05
          %v3002 = vadd.f32 %v2994, 1e-05
          %v3003 = vadd.f32 %v2995, 1e-05
          %v3004 = vrsqrt.pop %v2996
          %v3005 = vrsqrt.pop %v2997
          %v3006 = vrsqrt.pop %v2998
          %v3007 = vrsqrt.pop %v2999
          %v3008 = vrsqrt.pop %v3000
          %v3009 = vrsqrt.pop %v3001
          %v3010 = vrsqrt.pop %v3002
          %v3011 = vrsqrt.pop %v3003
          %v3012 = vmul.f32 %v2948, %v3004
          %v3013 = vmul.f32 %v2949, %v3005
          %v3014 = vmul.f32 %v2950, %v3006
          %v3015 = vmul.f32 %v2951, %v3007
          %v3016 = vmul.f32 %v2952, %v3008
          %v3017 = vmul.f32 %v2953, %v3009
          %v3018 = vmul.f32 %v2954, %v3010
          %v3019 = vmul.f32 %v2955, %v3011
          %v3020 = vlaneseq
          %v3021 = vshrl.u32 %v3020, 7
          %v3022 = vsub.s32 0, %v3021
          %v3023 = vrot.slane %v2912, %v3022
          %v3024 = vmul.f32 %v3012, %v3023
          %v3025 = vmul.f32 %v3013, %v3023
          %v3026 = vmul.f32 %v3014, %v3023
          %v3027 = vmul.f32 %v3015, %v3023
          %v3028 = vmul.f32 %v3016, %v3023
          %v3029 = vmul.f32 %v3017, %v3023
          %v3030 = vmul.f32 %v3018, %v3023
          %v3031 = vmul.f32 %v3019, %v3023
          %v3032 = vlaneseq
          %v3033 = vshrl.u32 %v3032, 7
          %v3034 = vsub.s32 0, %v3033
          %v3035 = vrot.slane %v2913, %v3034
          %v3036 = vadd.f32 %v3024, %v3035
          %v3037 = vadd.f32 %v3025, %v3035
          %v3038 = vadd.f32 %v3026, %v3035
          %v3039 = vadd.f32 %v3027, %v3035
          %v3040 = vadd.f32 %v3028, %v3035
          %v3041 = vadd.f32 %v3029, %v3035
          %v3042 = vadd.f32 %v3030, %v3035
          %v3043 = vadd.f32 %v3031, %v3035
          %s3044 = sld [smem:[#allocation8]]
          %vm3045 = vcmp.ge.f32.partialorder %v3036, 0.0
          %vm3046 = vcmp.ge.f32.partialorder %v3037, 0.0
          %vm3047 = vcmp.ge.f32.partialorder %v3038, 0.0
          %vm3048 = vcmp.ge.f32.partialorder %v3039, 0.0
          %vm3049 = vcmp.ge.f32.partialorder %v3040, 0.0
          %vm3050 = vcmp.ge.f32.partialorder %v3041, 0.0
          %vm3051 = vcmp.ge.f32.partialorder %v3042, 0.0
          %vm3052 = vcmp.ge.f32.partialorder %v3043, 0.0
          %v3053 = vstv %s3044
          %v3054 = vmul.f32 %v3053, %v3036
          %v3055 = vmul.f32 %v3053, %v3037
          %v3056 = vmul.f32 %v3053, %v3038
          %v3057 = vmul.f32 %v3053, %v3039
          %v3058 = vmul.f32 %v3053, %v3040
          %v3059 = vmul.f32 %v3053, %v3041
          %v3060 = vmul.f32 %v3053, %v3042
          %v3061 = vmul.f32 %v3053, %v3043
          %v3062 = vsel %vm3045, %v3036, %v3054
          %v3063 = vsel %vm3046, %v3037, %v3055
          %v3064 = vsel %vm3047, %v3038, %v3056
          %v3065 = vsel %vm3048, %v3039, %v3057
          %v3066 = vsel %vm3049, %v3040, %v3058
          %v3067 = vsel %vm3050, %v3041, %v3059
          %v3068 = vsel %vm3051, %v3042, %v3060
          %v3069 = vsel %vm3052, %v3043, %v3061
          %v3070 = vld [vmem:[%s353] sm:$0xff]
          %v3071 = vld [vmem:[%s353 + $0x8] sm:$0xff]
          %v3072 = vld [vmem:[%s353 + $0x10] sm:$0xff]
          %v3073 = vld [vmem:[%s353 + $0x18] sm:$0xff]
          %v3074 = vld [vmem:[%s353 + $0x20] sm:$0xff]
          %v3075 = vld [vmem:[%s353 + $0x28] sm:$0xff]
          %v3076 = vld [vmem:[%s353 + $0x30] sm:$0xff]
          %v3077 = vld [vmem:[%s353 + $0x38] sm:$0xff]
          %v3078 = vadd.f32 %v3062, %v3070
          %v3079 = vadd.f32 %v3063, %v3071
          %v3080 = vadd.f32 %v3064, %v3072
          %v3081 = vadd.f32 %v3065, %v3073
          %v3082 = vadd.f32 %v3066, %v3074
          %v3083 = vadd.f32 %v3067, %v3075
          %v3084 = vadd.f32 %v3068, %v3076
          %v3085 = vadd.f32 %v3069, %v3077
          %v3086 = vcombine.low %v3078, %v3080
          %v3087 = vcombine.high %v3078, %v3080
          %v3089 = vunpack.c.l.s4 1983009808
          %v3090 = vunpack.c.0.s8 %v3089
          %v3091 = vlaneseq
          %v3092 = vshrl.u32 %v3091, 7
          %v3093 = vsub.s32 %v3090, %v3092
          %v3094 = vrot.slane %v3086, %v3093
          %v3096 = vunpack.c.l.s4 1983009808
          %v3097 = vunpack.c.0.s8 %v3096
          %v3098 = vlaneseq
          %v3099 = vshrl.u32 %v3098, 7
          %v3100 = vsub.s32 %v3097, %v3099
          %v3101 = vrot.slane %v3087, %v3100
          %v3102 = vcombine.low %v3079, %v3081
          %v3103 = vcombine.high %v3079, %v3081
          %v3105 = vunpack.c.l.s4 1983009808
          %v3106 = vunpack.c.0.s8 %v3105
          %v3107 = vlaneseq
          %v3108 = vshrl.u32 %v3107, 7
          %v3109 = vsub.s32 %v3106, %v3108
          %v3110 = vrot.slane %v3102, %v3109
          %v3112 = vunpack.c.l.s4 1983009808
          %v3113 = vunpack.c.0.s8 %v3112
          %v3114 = vlaneseq
          %v3115 = vshrl.u32 %v3114, 7
          %v3116 = vsub.s32 %v3113, %v3115
          %v3117 = vrot.slane %v3103, %v3116
          %v3118 = vcombine.low %v3082, %v3084
          %v3119 = vcombine.high %v3082, %v3084
          %v3121 = vunpack.c.l.s4 1983009808
          %v3122 = vunpack.c.0.s8 %v3121
          %v3123 = vlaneseq
          %v3124 = vshrl.u32 %v3123, 7
          %v3125 = vsub.s32 %v3122, %v3124
          %v3126 = vrot.slane %v3118, %v3125
          %v3128 = vunpack.c.l.s4 1983009808
          %v3129 = vunpack.c.0.s8 %v3128
          %v3130 = vlaneseq
          %v3131 = vshrl.u32 %v3130, 7
          %v3132 = vsub.s32 %v3129, %v3131
          %v3133 = vrot.slane %v3119, %v3132
          %v3134 = vcombine.low %v3083, %v3085
          %v3135 = vcombine.high %v3083, %v3085
          %v3137 = vunpack.c.l.s4 1983009808
          %v3138 = vunpack.c.0.s8 %v3137
          %v3139 = vlaneseq
          %v3140 = vshrl.u32 %v3139, 7
          %v3141 = vsub.s32 %v3138, %v3140
          %v3142 = vrot.slane %v3134, %v3141
          %v3144 = vunpack.c.l.s4 1983009808
          %v3145 = vunpack.c.0.s8 %v3144
          %v3146 = vlaneseq
          %v3147 = vshrl.u32 %v3146, 7
          %v3148 = vsub.s32 %v3145, %v3147
          %v3149 = vrot.slane %v3135, %v3148
          %v3150 = vcombine.low %v3094, %v3110
          %v3151 = vcombine.high %v3094, %v3110
          %v3153 = vunpack.c.l.s4 1934713408
          %v3154 = vunpack.c.0.s8 %v3153
          %v3155 = vlaneseq
          %v3156 = vshrl.u32 %v3155, 7
          %v3157 = vsub.s32 %v3154, %v3156
          %v3158 = vrot.slane %v3150, %v3157
          %v3160 = vunpack.c.l.s4 1934713408
          %v3161 = vunpack.c.0.s8 %v3160
          %v3162 = vlaneseq
          %v3163 = vshrl.u32 %v3162, 7
          %v3164 = vsub.s32 %v3161, %v3163
          %v3165 = vrot.slane %v3151, %v3164
          %v3166 = vcombine.low %v3101, %v3117
          %v3167 = vcombine.high %v3101, %v3117
          %v3169 = vunpack.c.l.s4 1934713408
          %v3170 = vunpack.c.0.s8 %v3169
          %v3171 = vlaneseq
          %v3172 = vshrl.u32 %v3171, 7
          %v3173 = vsub.s32 %v3170, %v3172
          %v3174 = vrot.slane %v3166, %v3173
          %v3176 = vunpack.c.l.s4 1934713408
          %v3177 = vunpack.c.0.s8 %v3176
          %v3178 = vlaneseq
          %v3179 = vshrl.u32 %v3178, 7
          %v3180 = vsub.s32 %v3177, %v3179
          %v3181 = vrot.slane %v3167, %v3180
          %v3182 = vcombine.low %v3126, %v3142
          %v3183 = vcombine.high %v3126, %v3142
          %v3185 = vunpack.c.l.s4 1934713408
          %v3186 = vunpack.c.0.s8 %v3185
          %v3187 = vlaneseq
          %v3188 = vshrl.u32 %v3187, 7
          %v3189 = vsub.s32 %v3186, %v3188
          %v3190 = vrot.slane %v3182, %v3189
          %v3192 = vunpack.c.l.s4 1934713408
          %v3193 = vunpack.c.0.s8 %v3192
          %v3194 = vlaneseq
          %v3195 = vshrl.u32 %v3194, 7
          %v3196 = vsub.s32 %v3193, %v3195
          %v3197 = vrot.slane %v3183, %v3196
          %v3198 = vcombine.low %v3133, %v3149
          %v3199 = vcombine.high %v3133, %v3149
          %v3201 = vunpack.c.l.s4 1934713408
          %v3202 = vunpack.c.0.s8 %v3201
          %v3203 = vlaneseq
          %v3204 = vshrl.u32 %v3203, 7
          %v3205 = vsub.s32 %v3202, %v3204
          %v3206 = vrot.slane %v3198, %v3205
          %v3208 = vunpack.c.l.s4 1934713408
          %v3209 = vunpack.c.0.s8 %v3208
          %v3210 = vlaneseq
          %v3211 = vshrl.u32 %v3210, 7
          %v3212 = vsub.s32 %v3209, %v3211
          %v3213 = vrot.slane %v3199, %v3212
          %v3214 = vcombine.low %v3158, %v3190
          %v3215 = vcombine.high %v3158, %v3190
          %v3216 = vcombine.low %v3165, %v3197
          %v3217 = vcombine.high %v3165, %v3197
          %v3218 = vcombine.low %v3174, %v3206
          %v3219 = vcombine.high %v3174, %v3206
          %v3220 = vcombine.low %v3181, %v3213
          %v3221 = vcombine.high %v3181, %v3213
          %3223 = vrot.lane.b32.xlu0 %v3215, 16
          %v3224 = vpop.permute.xlu0 %3223
          %3227 = vrot.lane.b32.xlu0 %v3216, 32
          %v3228 = vpop.permute.xlu0 %3227
          %3231 = vrot.lane.b32.xlu0 %v3217, 48
          %v3232 = vpop.permute.xlu0 %3231
          %3235 = vrot.lane.b32.xlu0 %v3218, 64
          %v3236 = vpop.permute.xlu0 %3235
          %3239 = vrot.lane.b32.xlu0 %v3219, 80
          %v3240 = vpop.permute.xlu0 %3239
          %3243 = vrot.lane.b32.xlu0 %v3220, 96
          %v3244 = vpop.permute.xlu0 %3243
          %3247 = vrot.lane.b32.xlu0 %v3221, 112
          %v3248 = vpop.permute.xlu0 %3247
          %v3250 = vsel %vm2914, %v3214, %v3224
          %v3251 = vsel %vm1108, %v3250, %v3228
          %vm3252 = vcmask 392192
          %v3253 = vsel %vm3252, %v3251, %v3232
          %vm3254 = vcmask 523264
          %v3255 = vsel %vm3254, %v3253, %v3236
          %vm3256 = vcmask 654336
          %v3257 = vsel %vm3256, %v3255, %v3240
          %vm3258 = vcmask 785408
          %v3259 = vsel %vm3258, %v3257, %v3244
          %vm3260 = vcmask 916480
          %v3261 = vsel %vm3260, %v3259, %v3248
          %3262 = vst [vmem:[%s399] sm:$0xff] %v3261
        $region72: #{tpu_custom_call.1} parent=51 // pred_fallthru
          _
        %s3263 = sand.u32 %s244, 1
        %s3264 = scalar_lea.sflag [#allocation11], %s3263
        %s3265 = sand.u32 %s244, 1
        %s3266 = smul.addr %s3265, 8
        %s3267 = scalar_lea.vmem [#allocation14], %s3266
        // Predicated region
        $region73: #{tpu_custom_call.1} parent=51 // pred_check
          %p3268 = pneg %p254
        $region74: #{tpu_custom_call.1} parent=51 // pred_check_branch
          %3270 = sbr.rel (%p3268) target = $region76
        $region75: #{tpu_custom_call.1} parent=51 // pred_region
          %s3272 = ssub.s32 128, 128
          %3273 = vsyncadd %s3264, %s3272
          %s3274 = smul.addr %s34, 2
          %s3275 = sadd.s32 %s35, %s3274
          %s3276 = smul.addr %s3275, 128
          %s3277 = scalar_lea.hbm %s8, %s3276
          %s3279 = sshll.u32 %s3267, 4
          %s3280 = int_to_ptr.vmem [resolvable:$true] %s3279
          %3282 = dma.vmem_to_hbm [thread:$0]  %s3280, 128, %s3277, %s3264
        $region76: #{tpu_custom_call.1} parent=51 // pred_fallthru
          _
      $region52: #{tpu_custom_call.1} parent=5 // pred_fallthru
        _
      %p3283 = scmp.le.s32.totalorder 2, %s24
      // Predicated region
      $region77: #{tpu_custom_call.1} parent=5 // pred_check
        %p3284 = pneg %p3283
      $region78: #{tpu_custom_call.1} parent=5 // pred_check_branch
        %3286 = sbr.rel (%p3284) target = $region80
      $region79: #{tpu_custom_call.1} parent=5 // pred_region
        %s3287 = ssub.s32 %s24, 2
        // Predicated region
        $region81: #{tpu_custom_call.1} parent=79 // pred_check
          %p3288 = pneg %p260
        $region82: #{tpu_custom_call.1} parent=79 // pred_check_branch
          %3290 = sbr.rel (%p3288) target = $region84
        $region83: #{tpu_custom_call.1} parent=79 // pred_region
          %s3291 = sand.u32 %s245, 1
          %s3292 = scalar_lea.sflag [#allocation11], %s3291
          %s3293 = sand.u32 %s245, 1
          %s3294 = smul.addr %s3293, 8
          %s3295 = scalar_lea.vmem [#allocation14], %s3294
          %3296 = dma.done %s3292, 128
        $region84: #{tpu_custom_call.1} parent=79 // pred_fallthru
          _
      $region80: #{tpu_custom_call.1} parent=5 // pred_fallthru
        _
    $region6: #{tpu_custom_call.1} parent=1 // loop_footer
      %s28 = sadd.s32 1, %s24
    $region7: #{tpu_custom_call.1} parent=1 // loop_footer_branch
      %23 = sbr.rel target = $region3
    $region8: #{tpu_custom_call.1} parent=1 // loop_exit
      _
    %3297 = vsyncpa [#allocation10], 1
    %s3298 = scalar_lea.sflag [#allocation10], 1
    %3299 = vsyncpa %s3298, 1
    %3300 = vsyncpa [#allocation13], 1
    %s3301 = scalar_lea.sflag [#allocation13], 1
    %3302 = vsyncpa %s3301, 1
    %3303 = vsyncpa [#allocation11], 1
    %s3304 = scalar_lea.sflag [#allocation11], 1
    %3305 = vsyncpa %s3304, 1

</llo_original>
